<compile_context>
chip_gen: v7x
topology: tpu7x:2x2x1
jax: 0.10.0
libtpu: 0.0.40
codegen_flags: <defaults>
</compile_context>

<pallas_src>
from functools import partial

import numpy as np
import jax
import jax.numpy as jnp
from jax.experimental import pallas as pl
from jax.experimental.pallas import tpu as pltpu


def _round_up(v, m):
    return (v + m - 1) // m * m


_SQRT_HALF = 0.7071067811865476


def _erf_approx(z):
    # Abramowitz & Stegun 7.1.26, |err| <= 1.5e-7.
    a = jnp.abs(z)
    t = 1.0 / (1.0 + 0.3275911 * a)
    poly = t * (0.254829592 + t * (-0.284496736 + t * (1.421413741
             + t * (-1.453152027 + t * 1.061405429))))
    r = 1.0 - poly * jnp.exp(-a * a)
    return jnp.where(z < 0, -r, r)


def _gelu_exact(x):
    # torch.nn.GELU() default (erf form), to ~1e-7.
    # TODO(synk): switch to the tanh form (EUP slot) if exact-torch GELU isn't required.
    return 0.5 * x * (1.0 + _erf_approx(x * _SQRT_HALF))


# ---------------------------------------------------------------------------
# Pallas kernel: fused merged-inception conv1 -> GELU -> conv2, shift-and-accumulate
# ---------------------------------------------------------------------------
def _fused_inception_kernel(x_ref, hw_ref, w1_ref, b1_ref, w2_ref, b2_ref, o_ref,
                            *, H, W, K):
    # x_ref : (1, Cin_p, Lp)      f32  lane-flattened (image, h, w) activations
    # hw_ref: (2, Lp)             i32  per-lane (h, w); -1 on lane padding
    # w1_ref: (K*K, Dff_p, Cin_p) f32  merged conv1 weights, tap-major
    # b1_ref: (Dff_p, 1)          f32
    # w2_ref: (K*K, Cout_p, Dff_p) f32 merged conv2 weights, tap-major
    # b2_ref: (Cout_p, 1)         f32
    # o_ref : (1, Cout_p, Lp)     f32  lane-dense output slab
    P = (K - 1) // 2
    Lp = x_ref.shape[-1]

    hw = hw_ref[...]
    hh = hw[0:1, :]                                   # (1, Lp)
    ww = hw[1:2, :]

    # Boundary masks (computed once, reused by both convs). mask[a*K+b]==1 where the
    # input position (h+a-P, w+b-P) is inside the HxW image of the same batch element;
    # this also blocks cross-image and lane-padding contamination from the rolls.
    row_ok = [jnp.logical_and(hh + (a - P) >= 0, hh + (a - P) < H) for a in range(K)]
    col_ok = [jnp.logical_and(ww + (b - P) >= 0, ww + (b - P) < W) for b in range(K)]
    masks = [jnp.logical_and(row_ok[a], col_ok[b]).astype(jnp.float32)
             for a in range(K) for b in range(K)]

    def same_conv(val, w_ref, b_ref):
        # val: (C, Lp) -> (Co, Lp); "SAME" KxK conv + bias as K*K shifted matmuls.
        # Shifts ride the XLU (pltpu.roll); accumulation stays in f32.
        acc = None
        for a in range(K):
            for b in range(K):
                t = a * K + b
                shift = (-((a - P) * W + (b - P))) % Lp
                tap = val if shift == 0 else pltpu.roll(val, shift=shift, axis=1)
                if not (a == P and b == P):           # center tap's mask is all-ones
                    tap = tap * masks[t]
                contrib = jnp.dot(w_ref[t], tap, preferred_element_type=jnp.float32)
                acc = contrib if acc is None else acc + contrib
        return acc + b_ref[...]

    y = _gelu_exact(same_conv(x_ref[0], w1_ref, b1_ref))
    o_ref[0] = same_conv(y, w2_ref, b2_ref).astype(o_ref.dtype)


def fused_inception_pallas(x_slab, hw_idx, w1_tap, b1_col, w2_tap, b2_col, *, H, W, K):
    """x_slab: (G, Cin_p, Lp) f32 -> (G, Cout_p, Lp) f32 (lane-dense output slab)."""
    G, Cin_p, Lp = x_slab.shape
    KK, Dff_p, _ = w1_tap.shape
    Cout_p = w2_tap.shape[1]

    # VMEM: double-buffered in/out blocks, resident weights/indices, f32 intermediate
    # (Dff_p, Lp) + one rolled tap. Headroom kept below v7x's 64 MiB physical VMEM.
    vmem_est = 4 * (2 * Cin_p * Lp + 2 * Cout_p * Lp + 3 * Dff_p * Lp
                    + KK * (Dff_p * Cin_p + Cout_p * Dff_p) + 2 * Lp) + (1 << 20)
    vmem_limit = int(min(48 * 1024 * 1024, max(16 * 1024 * 1024, 2 * vmem_est)))

    flops = 2 * G * KK * Lp * (Cin_p * Dff_p + Dff_p * Cout_p)
    bytes_accessed = 4 * (G * (Cin_p + Cout_p) * Lp + 2 * Lp
                          + KK * (Dff_p * Cin_p + Cout_p * Dff_p) + Dff_p + Cout_p)

    kernel = partial(_fused_inception_kernel, H=H, W=W, K=K)
    return pl.pallas_call(
        kernel,
        out_shape=jax.ShapeDtypeStruct((G, Cout_p, Lp), jnp.float32),
        grid_spec=pltpu.PrefetchScalarGridSpec(
            num_scalar_prefetch=0,
            grid=(G,),
            in_specs=[
                pl.BlockSpec((1, Cin_p, Lp), lambda g: (g, 0, 0)),
                pl.BlockSpec((2, Lp), lambda g: (0, 0)),
                pl.BlockSpec((KK, Dff_p, Cin_p), lambda g: (0, 0, 0)),
                pl.BlockSpec((Dff_p, 1), lambda g: (0, 0)),
                pl.BlockSpec((KK, Cout_p, Dff_p), lambda g: (0, 0, 0)),
                pl.BlockSpec((Cout_p, 1), lambda g: (0, 0)),
            ],
            out_specs=pl.BlockSpec((1, Cout_p, Lp), lambda g: (g, 0, 0)),
        ),
        compiler_params=pltpu.CompilerParams(
            dimension_semantics=("parallel",),    # 2 TCs on v7x; no-op on v5e/v6e
            vmem_limit_bytes=vmem_limit,
        ),
        cost_estimate=pl.CostEstimate(
            flops=flops,
            transcendentals=G * Dff_p * Lp,       # exp inside the erf polynomial
            bytes_accessed=bytes_accessed,
        ),
    )(x_slab, hw_idx, w1_tap, b1_col, w2_tap, b2_col)


# ---------------------------------------------------------------------------
# Wrapper-side layout plumbing (stays in XLA, not the kernel)
# ---------------------------------------------------------------------------
def conv_stack_pallas(x_nhwc, params, num_kernels):
    B, H, W, N = x_nhwc.shape
    K = 2 * num_kernels - 1
    w1_tap, b1_col = params["w1_tap"], params["b1_col"]
    w2_tap, b2_col = params["w2_tap"], params["b2_col"]
    Cin_p = w1_tap.shape[2]

    # Fold batch into the lane axis; small "parallel" grid over batch chunks.
    G = 2 if B >= 2 else 1
    Bc = -(-B // G)
    Bpad = G * Bc
    HW = H * W
    Lc = Bc * HW
    Lp = _round_up(Lc, 128)

    x_cf = jnp.transpose(x_nhwc, (0, 3, 1, 2)).reshape(B, N, HW)
    if Bpad > B:
        x_cf = jnp.concatenate(
            [x_cf, jnp.zeros((Bpad - B, N, HW), x_cf.dtype)], axis=0)
    x_g = x_cf.reshape(G, Bc, N, HW).transpose(0, 2, 1, 3).reshape(G, N, Lc)
    x_slab = jnp.zeros((G, Cin_p, Lp), jnp.float32).at[:, :N, :Lc].set(x_g)

    # Per-lane (h, w) decode (static numpy); -1 on lane padding so every tap is masked.
    lane = np.arange(Lp)
    hh = np.where(lane < Lc, (lane % HW) // W, -1).astype(np.int32)
    ww = np.where(lane < Lc, lane % W, -1).astype(np.int32)
    hw_idx = jnp.asarray(np.stack([hh, ww], axis=0))          # (2, Lp) int32

    out = fused_inception_pallas(x_slab, hw_idx, w1_tap, b1_col, w2_tap, b2_col,
                                 H=H, W=W, K=K)               # (G, Cout_p, Lp)

    out = out[:, :N, :Lc].reshape(G, N, Bc, HW).transpose(0, 2, 1, 3)
    out = out.reshape(Bpad, N, HW)[:B]
    return jnp.transpose(out, (0, 2, 1)).reshape(B, H, W, N)


def conv_stack_ref(x_nhwc, params, num_kernels):
    P = num_kernels - 1
    dn = ("NHWC", "HWIO", "NHWC")
    y = jax.lax.conv_general_dilated(x_nhwc, params["w1"], (1, 1), [(P, P), (P, P)],
                                     dimension_numbers=dn) + params["b1"]
    y = jax.nn.gelu(y, approximate=False)
    y = jax.lax.conv_general_dilated(y, params["w2"], (1, 1), [(P, P), (P, P)],
                                     dimension_numbers=dn) + params["b2"]
    return y


# ---------------------------------------------------------------------------
# Parameter setup: Inception_Block_V1 (mean of odd-sized convs) merged into one KxK conv
# ---------------------------------------------------------------------------
def merge_inception_params(key, cin, cout, num_kernels):
    maxk = 2 * num_kernels - 1
    w_merged = jnp.zeros((maxk, maxk, cin, cout), jnp.float32)
    b_merged = jnp.zeros((cout,), jnp.float32)
    for i in range(num_kernels):
        ks = 2 * i + 1
        key, kw, kb = jax.random.split(key, 3)
        w = jax.random.normal(kw, (cout, cin, ks, ks), jnp.float32) * (1.0 / (cin * ks * ks)) ** 0.5
        b = jax.random.normal(kb, (cout,), jnp.float32) * 0.02
        w_hwio = jnp.transpose(w, (2, 3, 1, 0))               # (ks, ks, cin, cout)
        pad = num_kernels - 1 - i
        w_merged = w_merged + jnp.pad(w_hwio, ((pad, pad), (pad, pad), (0, 0), (0, 0)))
        b_merged = b_merged + b
    return w_merged / num_kernels, b_merged / num_kernels


def to_tap_layout(w_hwio, bias, cin_p, cout_p):
    """Merged HWIO weights -> tap-major (K*K, Cout_p, Cin_p) f32 + (Cout_p, 1) bias."""
    K, _, cin, cout = w_hwio.shape
    w_pad = jnp.zeros((K, K, cin_p, cout_p), jnp.float32).at[:, :, :cin, :cout].set(w_hwio)
    w_tap = jnp.transpose(w_pad, (0, 1, 3, 2)).reshape(K * K, cout_p, cin_p)
    b_col = jnp.zeros((cout_p, 1), jnp.float32).at[:cout, 0].set(bias)
    return w_tap, b_col


# ---------------------------------------------------------------------------
# FFT period selection (matches PyTorch .cpu().numpy() host sync)
# ---------------------------------------------------------------------------
def fft_for_period(x, k):
    # TODO(synk): rfft + top-k with data-dependent reshape periods needs concrete
    # indices on host (same sync as the reference); a Pallas FFT would not remove it
    # because each branch's (H, W) must be static at trace time.
    xf = jnp.fft.rfft(x, axis=1)
    amp = jnp.abs(xf)
    freq = amp.mean(0).mean(-1)
    freq = freq.at[0].set(0.0)
    _, top = jax.lax.top_k(freq, k)
    top = np.asarray(jax.device_get(top))
    period = x.shape[1] // np.maximum(top, 1)     # guard top==0 on degenerate inputs
    period_weight = amp.mean(-1)[:, top]
    return period, period_weight


# ---------------------------------------------------------------------------
# TimesBlock forward
# ---------------------------------------------------------------------------
def timesblock_forward(x, params, *, seq_len, pred_len, top_k, num_kernels, conv_stack):
    B, T, N = x.shape
    period_list, period_weight = fft_for_period(x, top_k)
    total = seq_len + pred_len
    res = []
    # TODO(synk): the top_k branches still launch one pallas_call each (each branch has
    # its own static (H, W)); batching them into one call needs scalar-prefetched
    # per-branch widths plus dynamic roll shifts/masks.
    for i in range(top_k):
        period = int(period_list[i])
        if total % period != 0:
            length = (total // period + 1) * period
            out = jnp.concatenate(
                [x, jnp.zeros((B, length - total, N), x.dtype)], axis=1)
        else:
            length = total
            out = x
        out = out.reshape(B, length // period, period, N)     # NHWC: H=len//p, W=p, C=N
        out = conv_stack(out, params, num_kernels)
        out = out.reshape(B, length, N)[:, :total, :]
        res.append(out)
    res = jnp.stack(res, axis=-1)                             # (B, T, N, k)
    pw = jax.nn.softmax(period_weight, axis=1)                # (B, k)
    res = jnp.sum(res * pw[:, None, None, :], axis=-1)        # adaptive aggregation
    return res + x                                            # residual


# ---------------------------------------------------------------------------
if __name__ == "__main__":
    key = jax.random.PRNGKey(0)

    # configs: seq_len=16, pred_len=0, d_model=8, d_ff=16, top_k=3, num_kernels=3
    B, seq_len, pred_len = 2, 16, 0
    d_model, d_ff, top_k, num_kernels = 8, 16, 3, 3
    T = seq_len + pred_len

    key, kx, k1, k2 = jax.random.split(key, 4)
    x = jax.random.normal(kx, (B, T, d_model), jnp.float32)

    w1, b1 = merge_inception_params(k1, d_model, d_ff, num_kernels)   # d_model -> d_ff
    w2, b2 = merge_inception_params(k2, d_ff, d_model, num_kernels)   # d_ff   -> d_model
    cin_p = _round_up(d_model, 8)
    dff_p = _round_up(d_ff, 8)
    cout_p = _round_up(d_model, 8)
    w1_tap, b1_col = to_tap_layout(w1, b1, cin_p, dff_p)
    w2_tap, b2_col = to_tap_layout(w2, b2, dff_p, cout_p)
    params = {"w1": w1, "b1": b1, "w2": w2, "b2": b2,
              "w1_tap": w1_tap, "b1_col": b1_col,
              "w2_tap": w2_tap, "b2_col": b2_col}

    out = timesblock_forward(x, params, seq_len=seq_len, pred_len=pred_len,
                             top_k=top_k, num_kernels=num_kernels,
                             conv_stack=conv_stack_pallas)
    out = jax.block_until_ready(out)

    ref = timesblock_forward(x, params, seq_len=seq_len, pred_len=pred_len,
                             top_k=top_k, num_kernels=num_kernels,
                             conv_stack=conv_stack_ref)
    ref = jax.block_until_ready(ref)

    # Fully f32 path (weights + activations) -> tight tolerance.
    np.testing.assert_allclose(np.asarray(out), np.asarray(ref), rtol=1e-4, atol=1e-4)
    print("KERNEL_OK")
</pallas_src>

<mosaic_0001>
module attributes {stable_mosaic.version = 11 : i64} {
  func.func @_fused_inception_kernel(%arg0: i32, %arg1: memref<1x8x128xf32, #tpu.memory_space<vmem>>, %arg2: memref<2x128xi32, #tpu.memory_space<vmem>>, %arg3: memref<25x16x8xf32, #tpu.memory_space<vmem>>, %arg4: memref<16x1xf32, #tpu.memory_space<vmem>>, %arg5: memref<25x8x16xf32, #tpu.memory_space<vmem>>, %arg6: memref<8x1xf32, #tpu.memory_space<vmem>>, %arg7: memref<1x8x128xf32, #tpu.memory_space<vmem>>) attributes {dimension_semantics = [#tpu.dimension_semantics<parallel>], iteration_bounds = array<i64: 2>, scalar_prefetch = 0 : i64, scratch_operands = 0 : i64, tpu.core_type = #tpu.core_type<tc>, window_params = [{transform_indices = @transform_0, window_bounds = array<i64: 1, 8, 128>}, {pipeline_mode = #tpu.pipeline_mode<synchronous>, transform_indices = @transform_1, window_bounds = array<i64: 2, 128>}, {pipeline_mode = #tpu.pipeline_mode<synchronous>, transform_indices = @transform_2, window_bounds = array<i64: 25, 16, 8>}, {pipeline_mode = #tpu.pipeline_mode<synchronous>, transform_indices = @transform_3, window_bounds = array<i64: 16, 1>}, {pipeline_mode = #tpu.pipeline_mode<synchronous>, transform_indices = @transform_4, window_bounds = array<i64: 25, 8, 16>}, {pipeline_mode = #tpu.pipeline_mode<synchronous>, transform_indices = @transform_5, window_bounds = array<i64: 8, 1>}, {transform_indices = @transform_6, window_bounds = array<i64: 1, 8, 128>}]} {
    %c0 = arith.constant 0 : index
    %c0_0 = arith.constant 0 : index
    %0 = vector.load %arg2[%c0, %c0_0] : memref<2x128xi32, #tpu.memory_space<vmem>>, vector<2x128xi32>
    %1 = vector.extract_strided_slice %0 {offsets = [0, 0], sizes = [1, 128], strides = [1, 1]} : vector<2x128xi32> to vector<1x128xi32>
    %2 = vector.extract_strided_slice %0 {offsets = [1, 0], sizes = [1, 128], strides = [1, 1]} : vector<2x128xi32> to vector<1x128xi32>
    %c-2_i32 = arith.constant -2 : i32
    %3 = vector.broadcast %c-2_i32 : i32 to vector<1x128xi32>
    %4 = arith.addi %1, %3 : vector<1x128xi32>
    %c0_i32 = arith.constant 0 : i32
    %5 = vector.broadcast %c0_i32 : i32 to vector<1x128xi32>
    %6 = arith.cmpi sge, %4, %5 : vector<1x128xi32>
    %c-2_i32_1 = arith.constant -2 : i32
    %7 = vector.broadcast %c-2_i32_1 : i32 to vector<1x128xi32>
    %8 = arith.addi %1, %7 : vector<1x128xi32>
    %c8_i32 = arith.constant 8 : i32
    %9 = vector.broadcast %c8_i32 : i32 to vector<1x128xi32>
    %10 = arith.cmpi slt, %8, %9 : vector<1x128xi32>
    %11 = arith.andi %6, %10 : vector<1x128xi1>
    %c-1_i32 = arith.constant -1 : i32
    %12 = vector.broadcast %c-1_i32 : i32 to vector<1x128xi32>
    %13 = arith.addi %1, %12 : vector<1x128xi32>
    %c0_i32_2 = arith.constant 0 : i32
    %14 = vector.broadcast %c0_i32_2 : i32 to vector<1x128xi32>
    %15 = arith.cmpi sge, %13, %14 : vector<1x128xi32>
    %c-1_i32_3 = arith.constant -1 : i32
    %16 = vector.broadcast %c-1_i32_3 : i32 to vector<1x128xi32>
    %17 = arith.addi %1, %16 : vector<1x128xi32>
    %c8_i32_4 = arith.constant 8 : i32
    %18 = vector.broadcast %c8_i32_4 : i32 to vector<1x128xi32>
    %19 = arith.cmpi slt, %17, %18 : vector<1x128xi32>
    %20 = arith.andi %15, %19 : vector<1x128xi1>
    %c0_i32_5 = arith.constant 0 : i32
    %21 = vector.broadcast %c0_i32_5 : i32 to vector<1x128xi32>
    %22 = arith.addi %1, %21 : vector<1x128xi32>
    %c0_i32_6 = arith.constant 0 : i32
    %23 = vector.broadcast %c0_i32_6 : i32 to vector<1x128xi32>
    %24 = arith.cmpi sge, %22, %23 : vector<1x128xi32>
    %c0_i32_7 = arith.constant 0 : i32
    %25 = vector.broadcast %c0_i32_7 : i32 to vector<1x128xi32>
    %26 = arith.addi %1, %25 : vector<1x128xi32>
    %c8_i32_8 = arith.constant 8 : i32
    %27 = vector.broadcast %c8_i32_8 : i32 to vector<1x128xi32>
    %28 = arith.cmpi slt, %26, %27 : vector<1x128xi32>
    %29 = arith.andi %24, %28 : vector<1x128xi1>
    %c1_i32 = arith.constant 1 : i32
    %30 = vector.broadcast %c1_i32 : i32 to vector<1x128xi32>
    %31 = arith.addi %1, %30 : vector<1x128xi32>
    %c0_i32_9 = arith.constant 0 : i32
    %32 = vector.broadcast %c0_i32_9 : i32 to vector<1x128xi32>
    %33 = arith.cmpi sge, %31, %32 : vector<1x128xi32>
    %c1_i32_10 = arith.constant 1 : i32
    %34 = vector.broadcast %c1_i32_10 : i32 to vector<1x128xi32>
    %35 = arith.addi %1, %34 : vector<1x128xi32>
    %c8_i32_11 = arith.constant 8 : i32
    %36 = vector.broadcast %c8_i32_11 : i32 to vector<1x128xi32>
    %37 = arith.cmpi slt, %35, %36 : vector<1x128xi32>
    %38 = arith.andi %33, %37 : vector<1x128xi1>
    %c2_i32 = arith.constant 2 : i32
    %39 = vector.broadcast %c2_i32 : i32 to vector<1x128xi32>
    %40 = arith.addi %1, %39 : vector<1x128xi32>
    %c0_i32_12 = arith.constant 0 : i32
    %41 = vector.broadcast %c0_i32_12 : i32 to vector<1x128xi32>
    %42 = arith.cmpi sge, %40, %41 : vector<1x128xi32>
    %c2_i32_13 = arith.constant 2 : i32
    %43 = vector.broadcast %c2_i32_13 : i32 to vector<1x128xi32>
    %44 = arith.addi %1, %43 : vector<1x128xi32>
    %c8_i32_14 = arith.constant 8 : i32
    %45 = vector.broadcast %c8_i32_14 : i32 to vector<1x128xi32>
    %46 = arith.cmpi slt, %44, %45 : vector<1x128xi32>
    %47 = arith.andi %42, %46 : vector<1x128xi1>
    %c-2_i32_15 = arith.constant -2 : i32
    %48 = vector.broadcast %c-2_i32_15 : i32 to vector<1x128xi32>
    %49 = arith.addi %2, %48 : vector<1x128xi32>
    %c0_i32_16 = arith.constant 0 : i32
    %50 = vector.broadcast %c0_i32_16 : i32 to vector<1x128xi32>
    %51 = arith.cmpi sge, %49, %50 : vector<1x128xi32>
    %c-2_i32_17 = arith.constant -2 : i32
    %52 = vector.broadcast %c-2_i32_17 : i32 to vector<1x128xi32>
    %53 = arith.addi %2, %52 : vector<1x128xi32>
    %c2_i32_18 = arith.constant 2 : i32
    %54 = vector.broadcast %c2_i32_18 : i32 to vector<1x128xi32>
    %55 = arith.cmpi slt, %53, %54 : vector<1x128xi32>
    %56 = arith.andi %51, %55 : vector<1x128xi1>
    %c-1_i32_19 = arith.constant -1 : i32
    %57 = vector.broadcast %c-1_i32_19 : i32 to vector<1x128xi32>
    %58 = arith.addi %2, %57 : vector<1x128xi32>
    %c0_i32_20 = arith.constant 0 : i32
    %59 = vector.broadcast %c0_i32_20 : i32 to vector<1x128xi32>
    %60 = arith.cmpi sge, %58, %59 : vector<1x128xi32>
    %c-1_i32_21 = arith.constant -1 : i32
    %61 = vector.broadcast %c-1_i32_21 : i32 to vector<1x128xi32>
    %62 = arith.addi %2, %61 : vector<1x128xi32>
    %c2_i32_22 = arith.constant 2 : i32
    %63 = vector.broadcast %c2_i32_22 : i32 to vector<1x128xi32>
    %64 = arith.cmpi slt, %62, %63 : vector<1x128xi32>
    %65 = arith.andi %60, %64 : vector<1x128xi1>
    %c0_i32_23 = arith.constant 0 : i32
    %66 = vector.broadcast %c0_i32_23 : i32 to vector<1x128xi32>
    %67 = arith.addi %2, %66 : vector<1x128xi32>
    %c0_i32_24 = arith.constant 0 : i32
    %68 = vector.broadcast %c0_i32_24 : i32 to vector<1x128xi32>
    %69 = arith.cmpi sge, %67, %68 : vector<1x128xi32>
    %c0_i32_25 = arith.constant 0 : i32
    %70 = vector.broadcast %c0_i32_25 : i32 to vector<1x128xi32>
    %71 = arith.addi %2, %70 : vector<1x128xi32>
    %c2_i32_26 = arith.constant 2 : i32
    %72 = vector.broadcast %c2_i32_26 : i32 to vector<1x128xi32>
    %73 = arith.cmpi slt, %71, %72 : vector<1x128xi32>
    %74 = arith.andi %69, %73 : vector<1x128xi1>
    %c1_i32_27 = arith.constant 1 : i32
    %75 = vector.broadcast %c1_i32_27 : i32 to vector<1x128xi32>
    %76 = arith.addi %2, %75 : vector<1x128xi32>
    %c0_i32_28 = arith.constant 0 : i32
    %77 = vector.broadcast %c0_i32_28 : i32 to vector<1x128xi32>
    %78 = arith.cmpi sge, %76, %77 : vector<1x128xi32>
    %c1_i32_29 = arith.constant 1 : i32
    %79 = vector.broadcast %c1_i32_29 : i32 to vector<1x128xi32>
    %80 = arith.addi %2, %79 : vector<1x128xi32>
    %c2_i32_30 = arith.constant 2 : i32
    %81 = vector.broadcast %c2_i32_30 : i32 to vector<1x128xi32>
    %82 = arith.cmpi slt, %80, %81 : vector<1x128xi32>
    %83 = arith.andi %78, %82 : vector<1x128xi1>
    %c2_i32_31 = arith.constant 2 : i32
    %84 = vector.broadcast %c2_i32_31 : i32 to vector<1x128xi32>
    %85 = arith.addi %2, %84 : vector<1x128xi32>
    %c0_i32_32 = arith.constant 0 : i32
    %86 = vector.broadcast %c0_i32_32 : i32 to vector<1x128xi32>
    %87 = arith.cmpi sge, %85, %86 : vector<1x128xi32>
    %c2_i32_33 = arith.constant 2 : i32
    %88 = vector.broadcast %c2_i32_33 : i32 to vector<1x128xi32>
    %89 = arith.addi %2, %88 : vector<1x128xi32>
    %c2_i32_34 = arith.constant 2 : i32
    %90 = vector.broadcast %c2_i32_34 : i32 to vector<1x128xi32>
    %91 = arith.cmpi slt, %89, %90 : vector<1x128xi32>
    %92 = arith.andi %87, %91 : vector<1x128xi1>
    %93 = arith.andi %11, %56 : vector<1x128xi1>
    %94 = arith.extui %93 : vector<1x128xi1> to vector<1x128xi32>
    %95 = arith.sitofp %94 : vector<1x128xi32> to vector<1x128xf32>
    %96 = arith.andi %11, %65 : vector<1x128xi1>
    %97 = arith.extui %96 : vector<1x128xi1> to vector<1x128xi32>
    %98 = arith.sitofp %97 : vector<1x128xi32> to vector<1x128xf32>
    %99 = arith.andi %11, %74 : vector<1x128xi1>
    %100 = arith.extui %99 : vector<1x128xi1> to vector<1x128xi32>
    %101 = arith.sitofp %100 : vector<1x128xi32> to vector<1x128xf32>
    %102 = arith.andi %11, %83 : vector<1x128xi1>
    %103 = arith.extui %102 : vector<1x128xi1> to vector<1x128xi32>
    %104 = arith.sitofp %103 : vector<1x128xi32> to vector<1x128xf32>
    %105 = arith.andi %11, %92 : vector<1x128xi1>
    %106 = arith.extui %105 : vector<1x128xi1> to vector<1x128xi32>
    %107 = arith.sitofp %106 : vector<1x128xi32> to vector<1x128xf32>
    %108 = arith.andi %20, %56 : vector<1x128xi1>
    %109 = arith.extui %108 : vector<1x128xi1> to vector<1x128xi32>
    %110 = arith.sitofp %109 : vector<1x128xi32> to vector<1x128xf32>
    %111 = arith.andi %20, %65 : vector<1x128xi1>
    %112 = arith.extui %111 : vector<1x128xi1> to vector<1x128xi32>
    %113 = arith.sitofp %112 : vector<1x128xi32> to vector<1x128xf32>
    %114 = arith.andi %20, %74 : vector<1x128xi1>
    %115 = arith.extui %114 : vector<1x128xi1> to vector<1x128xi32>
    %116 = arith.sitofp %115 : vector<1x128xi32> to vector<1x128xf32>
    %117 = arith.andi %20, %83 : vector<1x128xi1>
    %118 = arith.extui %117 : vector<1x128xi1> to vector<1x128xi32>
    %119 = arith.sitofp %118 : vector<1x128xi32> to vector<1x128xf32>
    %120 = arith.andi %20, %92 : vector<1x128xi1>
    %121 = arith.extui %120 : vector<1x128xi1> to vector<1x128xi32>
    %122 = arith.sitofp %121 : vector<1x128xi32> to vector<1x128xf32>
    %123 = arith.andi %29, %56 : vector<1x128xi1>
    %124 = arith.extui %123 : vector<1x128xi1> to vector<1x128xi32>
    %125 = arith.sitofp %124 : vector<1x128xi32> to vector<1x128xf32>
    %126 = arith.andi %29, %65 : vector<1x128xi1>
    %127 = arith.extui %126 : vector<1x128xi1> to vector<1x128xi32>
    %128 = arith.sitofp %127 : vector<1x128xi32> to vector<1x128xf32>
    %129 = arith.andi %29, %83 : vector<1x128xi1>
    %130 = arith.extui %129 : vector<1x128xi1> to vector<1x128xi32>
    %131 = arith.sitofp %130 : vector<1x128xi32> to vector<1x128xf32>
    %132 = arith.andi %29, %92 : vector<1x128xi1>
    %133 = arith.extui %132 : vector<1x128xi1> to vector<1x128xi32>
    %134 = arith.sitofp %133 : vector<1x128xi32> to vector<1x128xf32>
    %135 = arith.andi %38, %56 : vector<1x128xi1>
    %136 = arith.extui %135 : vector<1x128xi1> to vector<1x128xi32>
    %137 = arith.sitofp %136 : vector<1x128xi32> to vector<1x128xf32>
    %138 = arith.andi %38, %65 : vector<1x128xi1>
    %139 = arith.extui %138 : vector<1x128xi1> to vector<1x128xi32>
    %140 = arith.sitofp %139 : vector<1x128xi32> to vector<1x128xf32>
    %141 = arith.andi %38, %74 : vector<1x128xi1>
    %142 = arith.extui %141 : vector<1x128xi1> to vector<1x128xi32>
    %143 = arith.sitofp %142 : vector<1x128xi32> to vector<1x128xf32>
    %144 = arith.andi %38, %83 : vector<1x128xi1>
    %145 = arith.extui %144 : vector<1x128xi1> to vector<1x128xi32>
    %146 = arith.sitofp %145 : vector<1x128xi32> to vector<1x128xf32>
    %147 = arith.andi %38, %92 : vector<1x128xi1>
    %148 = arith.extui %147 : vector<1x128xi1> to vector<1x128xi32>
    %149 = arith.sitofp %148 : vector<1x128xi32> to vector<1x128xf32>
    %150 = arith.andi %47, %56 : vector<1x128xi1>
    %151 = arith.extui %150 : vector<1x128xi1> to vector<1x128xi32>
    %152 = arith.sitofp %151 : vector<1x128xi32> to vector<1x128xf32>
    %153 = arith.andi %47, %65 : vector<1x128xi1>
    %154 = arith.extui %153 : vector<1x128xi1> to vector<1x128xi32>
    %155 = arith.sitofp %154 : vector<1x128xi32> to vector<1x128xf32>
    %156 = arith.andi %47, %74 : vector<1x128xi1>
    %157 = arith.extui %156 : vector<1x128xi1> to vector<1x128xi32>
    %158 = arith.sitofp %157 : vector<1x128xi32> to vector<1x128xf32>
    %159 = arith.andi %47, %83 : vector<1x128xi1>
    %160 = arith.extui %159 : vector<1x128xi1> to vector<1x128xi32>
    %161 = arith.sitofp %160 : vector<1x128xi32> to vector<1x128xf32>
    %162 = arith.andi %47, %92 : vector<1x128xi1>
    %163 = arith.extui %162 : vector<1x128xi1> to vector<1x128xi32>
    %164 = arith.sitofp %163 : vector<1x128xi32> to vector<1x128xf32>
    %c0_35 = arith.constant 0 : index
    %c0_36 = arith.constant 0 : index
    %c0_37 = arith.constant 0 : index
    %165 = vector.load %arg1[%c0_35, %c0_36, %c0_37] : memref<1x8x128xf32, #tpu.memory_space<vmem>>, vector<1x8x128xf32>
    %166 = vector.shape_cast %165 : vector<1x8x128xf32> to vector<8x128xf32>
    %c6_i32 = arith.constant 6 : i32
    %167 = tpu.dynamic_rotate %166 by %c6_i32 dim 1 : vector<8x128xf32>, i32 -> vector<8x128xf32>
    %168 = vector.broadcast %95 : vector<1x128xf32> to vector<8x128xf32>
    %169 = arith.mulf %167, %168 : vector<8x128xf32>
    %c0_38 = arith.constant 0 : index
    %c0_39 = arith.constant 0 : index
    %c0_40 = arith.constant 0 : index
    %170 = vector.load %arg3[%c0_38, %c0_39, %c0_40] : memref<25x16x8xf32, #tpu.memory_space<vmem>>, vector<1x16x8xf32>
    %171 = vector.shape_cast %170 : vector<1x16x8xf32> to vector<16x8xf32>
    %cst = arith.constant dense<0.000000e+00> : vector<16x128xf32>
    %172 = tpu.matmul %171, %169, %cst {dimension_numbers = #tpu.dot_dimension_numbers<[1], [0], [0], [1], [0, 0, 1, 1], [], []>} : vector<16x8xf32>, vector<8x128xf32>, vector<16x128xf32> -> vector<16x128xf32>
    %c5_i32 = arith.constant 5 : i32
    %173 = tpu.dynamic_rotate %166 by %c5_i32 dim 1 : vector<8x128xf32>, i32 -> vector<8x128xf32>
    %174 = vector.broadcast %98 : vector<1x128xf32> to vector<8x128xf32>
    %175 = arith.mulf %173, %174 : vector<8x128xf32>
    %c1 = arith.constant 1 : index
    %c0_41 = arith.constant 0 : index
    %c0_42 = arith.constant 0 : index
    %176 = vector.load %arg3[%c1, %c0_41, %c0_42] : memref<25x16x8xf32, #tpu.memory_space<vmem>>, vector<1x16x8xf32>
    %177 = vector.shape_cast %176 : vector<1x16x8xf32> to vector<16x8xf32>
    %cst_43 = arith.constant dense<0.000000e+00> : vector<16x128xf32>
    %178 = tpu.matmul %177, %175, %cst_43 {dimension_numbers = #tpu.dot_dimension_numbers<[1], [0], [0], [1], [0, 0, 1, 1], [], []>} : vector<16x8xf32>, vector<8x128xf32>, vector<16x128xf32> -> vector<16x128xf32>
    %179 = arith.addf %172, %178 : vector<16x128xf32>
    %c4_i32 = arith.constant 4 : i32
    %180 = tpu.dynamic_rotate %166 by %c4_i32 dim 1 : vector<8x128xf32>, i32 -> vector<8x128xf32>
    %181 = vector.broadcast %101 : vector<1x128xf32> to vector<8x128xf32>
    %182 = arith.mulf %180, %181 : vector<8x128xf32>
    %c2 = arith.constant 2 : index
    %c0_44 = arith.constant 0 : index
    %c0_45 = arith.constant 0 : index
    %183 = vector.load %arg3[%c2, %c0_44, %c0_45] : memref<25x16x8xf32, #tpu.memory_space<vmem>>, vector<1x16x8xf32>
    %184 = vector.shape_cast %183 : vector<1x16x8xf32> to vector<16x8xf32>
    %cst_46 = arith.constant dense<0.000000e+00> : vector<16x128xf32>
    %185 = tpu.matmul %184, %182, %cst_46 {dimension_numbers = #tpu.dot_dimension_numbers<[1], [0], [0], [1], [0, 0, 1, 1], [], []>} : vector<16x8xf32>, vector<8x128xf32>, vector<16x128xf32> -> vector<16x128xf32>
    %186 = arith.addf %179, %185 : vector<16x128xf32>
    %c3_i32 = arith.constant 3 : i32
    %187 = tpu.dynamic_rotate %166 by %c3_i32 dim 1 : vector<8x128xf32>, i32 -> vector<8x128xf32>
    %188 = vector.broadcast %104 : vector<1x128xf32> to vector<8x128xf32>
    %189 = arith.mulf %187, %188 : vector<8x128xf32>
    %c3 = arith.constant 3 : index
    %c0_47 = arith.constant 0 : index
    %c0_48 = arith.constant 0 : index
    %190 = vector.load %arg3[%c3, %c0_47, %c0_48] : memref<25x16x8xf32, #tpu.memory_space<vmem>>, vector<1x16x8xf32>
    %191 = vector.shape_cast %190 : vector<1x16x8xf32> to vector<16x8xf32>
    %cst_49 = arith.constant dense<0.000000e+00> : vector<16x128xf32>
    %192 = tpu.matmul %191, %189, %cst_49 {dimension_numbers = #tpu.dot_dimension_numbers<[1], [0], [0], [1], [0, 0, 1, 1], [], []>} : vector<16x8xf32>, vector<8x128xf32>, vector<16x128xf32> -> vector<16x128xf32>
    %193 = arith.addf %186, %192 : vector<16x128xf32>
    %c2_i32_50 = arith.constant 2 : i32
    %194 = tpu.dynamic_rotate %166 by %c2_i32_50 dim 1 : vector<8x128xf32>, i32 -> vector<8x128xf32>
    %195 = vector.broadcast %107 : vector<1x128xf32> to vector<8x128xf32>
    %196 = arith.mulf %194, %195 : vector<8x128xf32>
    %c4 = arith.constant 4 : index
    %c0_51 = arith.constant 0 : index
    %c0_52 = arith.constant 0 : index
    %197 = vector.load %arg3[%c4, %c0_51, %c0_52] : memref<25x16x8xf32, #tpu.memory_space<vmem>>, vector<1x16x8xf32>
    %198 = vector.shape_cast %197 : vector<1x16x8xf32> to vector<16x8xf32>
    %cst_53 = arith.constant dense<0.000000e+00> : vector<16x128xf32>
    %199 = tpu.matmul %198, %196, %cst_53 {dimension_numbers = #tpu.dot_dimension_numbers<[1], [0], [0], [1], [0, 0, 1, 1], [], []>} : vector<16x8xf32>, vector<8x128xf32>, vector<16x128xf32> -> vector<16x128xf32>
    %200 = arith.addf %193, %199 : vector<16x128xf32>
    %c4_i32_54 = arith.constant 4 : i32
    %201 = tpu.dynamic_rotate %166 by %c4_i32_54 dim 1 : vector<8x128xf32>, i32 -> vector<8x128xf32>
    %202 = vector.broadcast %110 : vector<1x128xf32> to vector<8x128xf32>
    %203 = arith.mulf %201, %202 : vector<8x128xf32>
    %c5 = arith.constant 5 : index
    %c0_55 = arith.constant 0 : index
    %c0_56 = arith.constant 0 : index
    %204 = vector.load %arg3[%c5, %c0_55, %c0_56] : memref<25x16x8xf32, #tpu.memory_space<vmem>>, vector<1x16x8xf32>
    %205 = vector.shape_cast %204 : vector<1x16x8xf32> to vector<16x8xf32>
    %cst_57 = arith.constant dense<0.000000e+00> : vector<16x128xf32>
    %206 = tpu.matmul %205, %203, %cst_57 {dimension_numbers = #tpu.dot_dimension_numbers<[1], [0], [0], [1], [0, 0, 1, 1], [], []>} : vector<16x8xf32>, vector<8x128xf32>, vector<16x128xf32> -> vector<16x128xf32>
    %207 = arith.addf %200, %206 : vector<16x128xf32>
    %c3_i32_58 = arith.constant 3 : i32
    %208 = tpu.dynamic_rotate %166 by %c3_i32_58 dim 1 : vector<8x128xf32>, i32 -> vector<8x128xf32>
    %209 = vector.broadcast %113 : vector<1x128xf32> to vector<8x128xf32>
    %210 = arith.mulf %208, %209 : vector<8x128xf32>
    %c6 = arith.constant 6 : index
    %c0_59 = arith.constant 0 : index
    %c0_60 = arith.constant 0 : index
    %211 = vector.load %arg3[%c6, %c0_59, %c0_60] : memref<25x16x8xf32, #tpu.memory_space<vmem>>, vector<1x16x8xf32>
    %212 = vector.shape_cast %211 : vector<1x16x8xf32> to vector<16x8xf32>
    %cst_61 = arith.constant dense<0.000000e+00> : vector<16x128xf32>
    %213 = tpu.matmul %212, %210, %cst_61 {dimension_numbers = #tpu.dot_dimension_numbers<[1], [0], [0], [1], [0, 0, 1, 1], [], []>} : vector<16x8xf32>, vector<8x128xf32>, vector<16x128xf32> -> vector<16x128xf32>
    %214 = arith.addf %207, %213 : vector<16x128xf32>
    %c2_i32_62 = arith.constant 2 : i32
    %215 = tpu.dynamic_rotate %166 by %c2_i32_62 dim 1 : vector<8x128xf32>, i32 -> vector<8x128xf32>
    %216 = vector.broadcast %116 : vector<1x128xf32> to vector<8x128xf32>
    %217 = arith.mulf %215, %216 : vector<8x128xf32>
    %c7 = arith.constant 7 : index
    %c0_63 = arith.constant 0 : index
    %c0_64 = arith.constant 0 : index
    %218 = vector.load %arg3[%c7, %c0_63, %c0_64] : memref<25x16x8xf32, #tpu.memory_space<vmem>>, vector<1x16x8xf32>
    %219 = vector.shape_cast %218 : vector<1x16x8xf32> to vector<16x8xf32>
    %cst_65 = arith.constant dense<0.000000e+00> : vector<16x128xf32>
    %220 = tpu.matmul %219, %217, %cst_65 {dimension_numbers = #tpu.dot_dimension_numbers<[1], [0], [0], [1], [0, 0, 1, 1], [], []>} : vector<16x8xf32>, vector<8x128xf32>, vector<16x128xf32> -> vector<16x128xf32>
    %221 = arith.addf %214, %220 : vector<16x128xf32>
    %c1_i32_66 = arith.constant 1 : i32
    %222 = tpu.dynamic_rotate %166 by %c1_i32_66 dim 1 : vector<8x128xf32>, i32 -> vector<8x128xf32>
    %223 = vector.broadcast %119 : vector<1x128xf32> to vector<8x128xf32>
    %224 = arith.mulf %222, %223 : vector<8x128xf32>
    %c8 = arith.constant 8 : index
    %c0_67 = arith.constant 0 : index
    %c0_68 = arith.constant 0 : index
    %225 = vector.load %arg3[%c8, %c0_67, %c0_68] : memref<25x16x8xf32, #tpu.memory_space<vmem>>, vector<1x16x8xf32>
    %226 = vector.shape_cast %225 : vector<1x16x8xf32> to vector<16x8xf32>
    %cst_69 = arith.constant dense<0.000000e+00> : vector<16x128xf32>
    %227 = tpu.matmul %226, %224, %cst_69 {dimension_numbers = #tpu.dot_dimension_numbers<[1], [0], [0], [1], [0, 0, 1, 1], [], []>} : vector<16x8xf32>, vector<8x128xf32>, vector<16x128xf32> -> vector<16x128xf32>
    %228 = arith.addf %221, %227 : vector<16x128xf32>
    %229 = vector.broadcast %122 : vector<1x128xf32> to vector<8x128xf32>
    %230 = arith.mulf %166, %229 : vector<8x128xf32>
    %c9 = arith.constant 9 : index
    %c0_70 = arith.constant 0 : index
    %c0_71 = arith.constant 0 : index
    %231 = vector.load %arg3[%c9, %c0_70, %c0_71] : memref<25x16x8xf32, #tpu.memory_space<vmem>>, vector<1x16x8xf32>
    %232 = vector.shape_cast %231 : vector<1x16x8xf32> to vector<16x8xf32>
    %cst_72 = arith.constant dense<0.000000e+00> : vector<16x128xf32>
    %233 = tpu.matmul %232, %230, %cst_72 {dimension_numbers = #tpu.dot_dimension_numbers<[1], [0], [0], [1], [0, 0, 1, 1], [], []>} : vector<16x8xf32>, vector<8x128xf32>, vector<16x128xf32> -> vector<16x128xf32>
    %234 = arith.addf %228, %233 : vector<16x128xf32>
    %c2_i32_73 = arith.constant 2 : i32
    %235 = tpu.dynamic_rotate %166 by %c2_i32_73 dim 1 : vector<8x128xf32>, i32 -> vector<8x128xf32>
    %236 = vector.broadcast %125 : vector<1x128xf32> to vector<8x128xf32>
    %237 = arith.mulf %235, %236 : vector<8x128xf32>
    %c10 = arith.constant 10 : index
    %c0_74 = arith.constant 0 : index
    %c0_75 = arith.constant 0 : index
    %238 = vector.load %arg3[%c10, %c0_74, %c0_75] : memref<25x16x8xf32, #tpu.memory_space<vmem>>, vector<1x16x8xf32>
    %239 = vector.shape_cast %238 : vector<1x16x8xf32> to vector<16x8xf32>
    %cst_76 = arith.constant dense<0.000000e+00> : vector<16x128xf32>
    %240 = tpu.matmul %239, %237, %cst_76 {dimension_numbers = #tpu.dot_dimension_numbers<[1], [0], [0], [1], [0, 0, 1, 1], [], []>} : vector<16x8xf32>, vector<8x128xf32>, vector<16x128xf32> -> vector<16x128xf32>
    %241 = arith.addf %234, %240 : vector<16x128xf32>
    %c1_i32_77 = arith.constant 1 : i32
    %242 = tpu.dynamic_rotate %166 by %c1_i32_77 dim 1 : vector<8x128xf32>, i32 -> vector<8x128xf32>
    %243 = vector.broadcast %128 : vector<1x128xf32> to vector<8x128xf32>
    %244 = arith.mulf %242, %243 : vector<8x128xf32>
    %c11 = arith.constant 11 : index
    %c0_78 = arith.constant 0 : index
    %c0_79 = arith.constant 0 : index
    %245 = vector.load %arg3[%c11, %c0_78, %c0_79] : memref<25x16x8xf32, #tpu.memory_space<vmem>>, vector<1x16x8xf32>
    %246 = vector.shape_cast %245 : vector<1x16x8xf32> to vector<16x8xf32>
    %cst_80 = arith.constant dense<0.000000e+00> : vector<16x128xf32>
    %247 = tpu.matmul %246, %244, %cst_80 {dimension_numbers = #tpu.dot_dimension_numbers<[1], [0], [0], [1], [0, 0, 1, 1], [], []>} : vector<16x8xf32>, vector<8x128xf32>, vector<16x128xf32> -> vector<16x128xf32>
    %248 = arith.addf %241, %247 : vector<16x128xf32>
    %c12 = arith.constant 12 : index
    %c0_81 = arith.constant 0 : index
    %c0_82 = arith.constant 0 : index
    %249 = vector.load %arg3[%c12, %c0_81, %c0_82] : memref<25x16x8xf32, #tpu.memory_space<vmem>>, vector<1x16x8xf32>
    %250 = vector.shape_cast %249 : vector<1x16x8xf32> to vector<16x8xf32>
    %cst_83 = arith.constant dense<0.000000e+00> : vector<16x128xf32>
    %251 = tpu.matmul %250, %166, %cst_83 {dimension_numbers = #tpu.dot_dimension_numbers<[1], [0], [0], [1], [0, 0, 1, 1], [], []>} : vector<16x8xf32>, vector<8x128xf32>, vector<16x128xf32> -> vector<16x128xf32>
    %252 = arith.addf %248, %251 : vector<16x128xf32>
    %c127_i32 = arith.constant 127 : i32
    %253 = tpu.dynamic_rotate %166 by %c127_i32 dim 1 : vector<8x128xf32>, i32 -> vector<8x128xf32>
    %254 = vector.broadcast %131 : vector<1x128xf32> to vector<8x128xf32>
    %255 = arith.mulf %253, %254 : vector<8x128xf32>
    %c13 = arith.constant 13 : index
    %c0_84 = arith.constant 0 : index
    %c0_85 = arith.constant 0 : index
    %256 = vector.load %arg3[%c13, %c0_84, %c0_85] : memref<25x16x8xf32, #tpu.memory_space<vmem>>, vector<1x16x8xf32>
    %257 = vector.shape_cast %256 : vector<1x16x8xf32> to vector<16x8xf32>
    %cst_86 = arith.constant dense<0.000000e+00> : vector<16x128xf32>
    %258 = tpu.matmul %257, %255, %cst_86 {dimension_numbers = #tpu.dot_dimension_numbers<[1], [0], [0], [1], [0, 0, 1, 1], [], []>} : vector<16x8xf32>, vector<8x128xf32>, vector<16x128xf32> -> vector<16x128xf32>
    %259 = arith.addf %252, %258 : vector<16x128xf32>
    %c126_i32 = arith.constant 126 : i32
    %260 = tpu.dynamic_rotate %166 by %c126_i32 dim 1 : vector<8x128xf32>, i32 -> vector<8x128xf32>
    %261 = vector.broadcast %134 : vector<1x128xf32> to vector<8x128xf32>
    %262 = arith.mulf %260, %261 : vector<8x128xf32>
    %c14 = arith.constant 14 : index
    %c0_87 = arith.constant 0 : index
    %c0_88 = arith.constant 0 : index
    %263 = vector.load %arg3[%c14, %c0_87, %c0_88] : memref<25x16x8xf32, #tpu.memory_space<vmem>>, vector<1x16x8xf32>
    %264 = vector.shape_cast %263 : vector<1x16x8xf32> to vector<16x8xf32>
    %cst_89 = arith.constant dense<0.000000e+00> : vector<16x128xf32>
    %265 = tpu.matmul %264, %262, %cst_89 {dimension_numbers = #tpu.dot_dimension_numbers<[1], [0], [0], [1], [0, 0, 1, 1], [], []>} : vector<16x8xf32>, vector<8x128xf32>, vector<16x128xf32> -> vector<16x128xf32>
    %266 = arith.addf %259, %265 : vector<16x128xf32>
    %267 = vector.broadcast %137 : vector<1x128xf32> to vector<8x128xf32>
    %268 = arith.mulf %166, %267 : vector<8x128xf32>
    %c15 = arith.constant 15 : index
    %c0_90 = arith.constant 0 : index
    %c0_91 = arith.constant 0 : index
    %269 = vector.load %arg3[%c15, %c0_90, %c0_91] : memref<25x16x8xf32, #tpu.memory_space<vmem>>, vector<1x16x8xf32>
    %270 = vector.shape_cast %269 : vector<1x16x8xf32> to vector<16x8xf32>
    %cst_92 = arith.constant dense<0.000000e+00> : vector<16x128xf32>
    %271 = tpu.matmul %270, %268, %cst_92 {dimension_numbers = #tpu.dot_dimension_numbers<[1], [0], [0], [1], [0, 0, 1, 1], [], []>} : vector<16x8xf32>, vector<8x128xf32>, vector<16x128xf32> -> vector<16x128xf32>
    %272 = arith.addf %266, %271 : vector<16x128xf32>
    %c127_i32_93 = arith.constant 127 : i32
    %273 = tpu.dynamic_rotate %166 by %c127_i32_93 dim 1 : vector<8x128xf32>, i32 -> vector<8x128xf32>
    %274 = vector.broadcast %140 : vector<1x128xf32> to vector<8x128xf32>
    %275 = arith.mulf %273, %274 : vector<8x128xf32>
    %c16 = arith.constant 16 : index
    %c0_94 = arith.constant 0 : index
    %c0_95 = arith.constant 0 : index
    %276 = vector.load %arg3[%c16, %c0_94, %c0_95] : memref<25x16x8xf32, #tpu.memory_space<vmem>>, vector<1x16x8xf32>
    %277 = vector.shape_cast %276 : vector<1x16x8xf32> to vector<16x8xf32>
    %cst_96 = arith.constant dense<0.000000e+00> : vector<16x128xf32>
    %278 = tpu.matmul %277, %275, %cst_96 {dimension_numbers = #tpu.dot_dimension_numbers<[1], [0], [0], [1], [0, 0, 1, 1], [], []>} : vector<16x8xf32>, vector<8x128xf32>, vector<16x128xf32> -> vector<16x128xf32>
    %279 = arith.addf %272, %278 : vector<16x128xf32>
    %c126_i32_97 = arith.constant 126 : i32
    %280 = tpu.dynamic_rotate %166 by %c126_i32_97 dim 1 : vector<8x128xf32>, i32 -> vector<8x128xf32>
    %281 = vector.broadcast %143 : vector<1x128xf32> to vector<8x128xf32>
    %282 = arith.mulf %280, %281 : vector<8x128xf32>
    %c17 = arith.constant 17 : index
    %c0_98 = arith.constant 0 : index
    %c0_99 = arith.constant 0 : index
    %283 = vector.load %arg3[%c17, %c0_98, %c0_99] : memref<25x16x8xf32, #tpu.memory_space<vmem>>, vector<1x16x8xf32>
    %284 = vector.shape_cast %283 : vector<1x16x8xf32> to vector<16x8xf32>
    %cst_100 = arith.constant dense<0.000000e+00> : vector<16x128xf32>
    %285 = tpu.matmul %284, %282, %cst_100 {dimension_numbers = #tpu.dot_dimension_numbers<[1], [0], [0], [1], [0, 0, 1, 1], [], []>} : vector<16x8xf32>, vector<8x128xf32>, vector<16x128xf32> -> vector<16x128xf32>
    %286 = arith.addf %279, %285 : vector<16x128xf32>
    %c125_i32 = arith.constant 125 : i32
    %287 = tpu.dynamic_rotate %166 by %c125_i32 dim 1 : vector<8x128xf32>, i32 -> vector<8x128xf32>
    %288 = vector.broadcast %146 : vector<1x128xf32> to vector<8x128xf32>
    %289 = arith.mulf %287, %288 : vector<8x128xf32>
    %c18 = arith.constant 18 : index
    %c0_101 = arith.constant 0 : index
    %c0_102 = arith.constant 0 : index
    %290 = vector.load %arg3[%c18, %c0_101, %c0_102] : memref<25x16x8xf32, #tpu.memory_space<vmem>>, vector<1x16x8xf32>
    %291 = vector.shape_cast %290 : vector<1x16x8xf32> to vector<16x8xf32>
    %cst_103 = arith.constant dense<0.000000e+00> : vector<16x128xf32>
    %292 = tpu.matmul %291, %289, %cst_103 {dimension_numbers = #tpu.dot_dimension_numbers<[1], [0], [0], [1], [0, 0, 1, 1], [], []>} : vector<16x8xf32>, vector<8x128xf32>, vector<16x128xf32> -> vector<16x128xf32>
    %293 = arith.addf %286, %292 : vector<16x128xf32>
    %c124_i32 = arith.constant 124 : i32
    %294 = tpu.dynamic_rotate %166 by %c124_i32 dim 1 : vector<8x128xf32>, i32 -> vector<8x128xf32>
    %295 = vector.broadcast %149 : vector<1x128xf32> to vector<8x128xf32>
    %296 = arith.mulf %294, %295 : vector<8x128xf32>
    %c19 = arith.constant 19 : index
    %c0_104 = arith.constant 0 : index
    %c0_105 = arith.constant 0 : index
    %297 = vector.load %arg3[%c19, %c0_104, %c0_105] : memref<25x16x8xf32, #tpu.memory_space<vmem>>, vector<1x16x8xf32>
    %298 = vector.shape_cast %297 : vector<1x16x8xf32> to vector<16x8xf32>
    %cst_106 = arith.constant dense<0.000000e+00> : vector<16x128xf32>
    %299 = tpu.matmul %298, %296, %cst_106 {dimension_numbers = #tpu.dot_dimension_numbers<[1], [0], [0], [1], [0, 0, 1, 1], [], []>} : vector<16x8xf32>, vector<8x128xf32>, vector<16x128xf32> -> vector<16x128xf32>
    %300 = arith.addf %293, %299 : vector<16x128xf32>
    %c126_i32_107 = arith.constant 126 : i32
    %301 = tpu.dynamic_rotate %166 by %c126_i32_107 dim 1 : vector<8x128xf32>, i32 -> vector<8x128xf32>
    %302 = vector.broadcast %152 : vector<1x128xf32> to vector<8x128xf32>
    %303 = arith.mulf %301, %302 : vector<8x128xf32>
    %c20 = arith.constant 20 : index
    %c0_108 = arith.constant 0 : index
    %c0_109 = arith.constant 0 : index
    %304 = vector.load %arg3[%c20, %c0_108, %c0_109] : memref<25x16x8xf32, #tpu.memory_space<vmem>>, vector<1x16x8xf32>
    %305 = vector.shape_cast %304 : vector<1x16x8xf32> to vector<16x8xf32>
    %cst_110 = arith.constant dense<0.000000e+00> : vector<16x128xf32>
    %306 = tpu.matmul %305, %303, %cst_110 {dimension_numbers = #tpu.dot_dimension_numbers<[1], [0], [0], [1], [0, 0, 1, 1], [], []>} : vector<16x8xf32>, vector<8x128xf32>, vector<16x128xf32> -> vector<16x128xf32>
    %307 = arith.addf %300, %306 : vector<16x128xf32>
    %c125_i32_111 = arith.constant 125 : i32
    %308 = tpu.dynamic_rotate %166 by %c125_i32_111 dim 1 : vector<8x128xf32>, i32 -> vector<8x128xf32>
    %309 = vector.broadcast %155 : vector<1x128xf32> to vector<8x128xf32>
    %310 = arith.mulf %308, %309 : vector<8x128xf32>
    %c21 = arith.constant 21 : index
    %c0_112 = arith.constant 0 : index
    %c0_113 = arith.constant 0 : index
    %311 = vector.load %arg3[%c21, %c0_112, %c0_113] : memref<25x16x8xf32, #tpu.memory_space<vmem>>, vector<1x16x8xf32>
    %312 = vector.shape_cast %311 : vector<1x16x8xf32> to vector<16x8xf32>
    %cst_114 = arith.constant dense<0.000000e+00> : vector<16x128xf32>
    %313 = tpu.matmul %312, %310, %cst_114 {dimension_numbers = #tpu.dot_dimension_numbers<[1], [0], [0], [1], [0, 0, 1, 1], [], []>} : vector<16x8xf32>, vector<8x128xf32>, vector<16x128xf32> -> vector<16x128xf32>
    %314 = arith.addf %307, %313 : vector<16x128xf32>
    %c124_i32_115 = arith.constant 124 : i32
    %315 = tpu.dynamic_rotate %166 by %c124_i32_115 dim 1 : vector<8x128xf32>, i32 -> vector<8x128xf32>
    %316 = vector.broadcast %158 : vector<1x128xf32> to vector<8x128xf32>
    %317 = arith.mulf %315, %316 : vector<8x128xf32>
    %c22 = arith.constant 22 : index
    %c0_116 = arith.constant 0 : index
    %c0_117 = arith.constant 0 : index
    %318 = vector.load %arg3[%c22, %c0_116, %c0_117] : memref<25x16x8xf32, #tpu.memory_space<vmem>>, vector<1x16x8xf32>
    %319 = vector.shape_cast %318 : vector<1x16x8xf32> to vector<16x8xf32>
    %cst_118 = arith.constant dense<0.000000e+00> : vector<16x128xf32>
    %320 = tpu.matmul %319, %317, %cst_118 {dimension_numbers = #tpu.dot_dimension_numbers<[1], [0], [0], [1], [0, 0, 1, 1], [], []>} : vector<16x8xf32>, vector<8x128xf32>, vector<16x128xf32> -> vector<16x128xf32>
    %321 = arith.addf %314, %320 : vector<16x128xf32>
    %c123_i32 = arith.constant 123 : i32
    %322 = tpu.dynamic_rotate %166 by %c123_i32 dim 1 : vector<8x128xf32>, i32 -> vector<8x128xf32>
    %323 = vector.broadcast %161 : vector<1x128xf32> to vector<8x128xf32>
    %324 = arith.mulf %322, %323 : vector<8x128xf32>
    %c23 = arith.constant 23 : index
    %c0_119 = arith.constant 0 : index
    %c0_120 = arith.constant 0 : index
    %325 = vector.load %arg3[%c23, %c0_119, %c0_120] : memref<25x16x8xf32, #tpu.memory_space<vmem>>, vector<1x16x8xf32>
    %326 = vector.shape_cast %325 : vector<1x16x8xf32> to vector<16x8xf32>
    %cst_121 = arith.constant dense<0.000000e+00> : vector<16x128xf32>
    %327 = tpu.matmul %326, %324, %cst_121 {dimension_numbers = #tpu.dot_dimension_numbers<[1], [0], [0], [1], [0, 0, 1, 1], [], []>} : vector<16x8xf32>, vector<8x128xf32>, vector<16x128xf32> -> vector<16x128xf32>
    %328 = arith.addf %321, %327 : vector<16x128xf32>
    %c122_i32 = arith.constant 122 : i32
    %329 = tpu.dynamic_rotate %166 by %c122_i32 dim 1 : vector<8x128xf32>, i32 -> vector<8x128xf32>
    %330 = vector.broadcast %164 : vector<1x128xf32> to vector<8x128xf32>
    %331 = arith.mulf %329, %330 : vector<8x128xf32>
    %c24 = arith.constant 24 : index
    %c0_122 = arith.constant 0 : index
    %c0_123 = arith.constant 0 : index
    %332 = vector.load %arg3[%c24, %c0_122, %c0_123] : memref<25x16x8xf32, #tpu.memory_space<vmem>>, vector<1x16x8xf32>
    %333 = vector.shape_cast %332 : vector<1x16x8xf32> to vector<16x8xf32>
    %cst_124 = arith.constant dense<0.000000e+00> : vector<16x128xf32>
    %334 = tpu.matmul %333, %331, %cst_124 {dimension_numbers = #tpu.dot_dimension_numbers<[1], [0], [0], [1], [0, 0, 1, 1], [], []>} : vector<16x8xf32>, vector<8x128xf32>, vector<16x128xf32> -> vector<16x128xf32>
    %335 = arith.addf %328, %334 : vector<16x128xf32>
    %c0_125 = arith.constant 0 : index
    %c0_126 = arith.constant 0 : index
    %336 = vector.load %arg4[%c0_125, %c0_126] : memref<16x1xf32, #tpu.memory_space<vmem>>, vector<16x1xf32>
    %337 = vector.broadcast %336 : vector<16x1xf32> to vector<16x128xf32>
    %338 = arith.addf %335, %337 : vector<16x128xf32>
    %cst_127 = arith.constant 5.000000e-01 : f32
    %339 = vector.broadcast %cst_127 : f32 to vector<16x128xf32>
    %340 = arith.mulf %339, %338 : vector<16x128xf32>
    %cst_128 = arith.constant 0.707106769 : f32
    %341 = vector.broadcast %cst_128 : f32 to vector<16x128xf32>
    %342 = arith.mulf %338, %341 : vector<16x128xf32>
    %343 = math.absf %342 : vector<16x128xf32>
    %cst_129 = arith.constant 0.327591091 : f32
    %344 = vector.broadcast %cst_129 : f32 to vector<16x128xf32>
    %345 = arith.mulf %344, %343 : vector<16x128xf32>
    %cst_130 = arith.constant 1.000000e+00 : f32
    %346 = vector.broadcast %cst_130 : f32 to vector<16x128xf32>
    %347 = arith.addf %346, %345 : vector<16x128xf32>
    %cst_131 = arith.constant 1.000000e+00 : f32
    %348 = vector.broadcast %cst_131 : f32 to vector<16x128xf32>
    %349 = arith.divf %348, %347 : vector<16x128xf32>
    %cst_132 = arith.constant 1.06140542 : f32
    %350 = vector.broadcast %cst_132 : f32 to vector<16x128xf32>
    %351 = arith.mulf %349, %350 : vector<16x128xf32>
    %cst_133 = arith.constant -1.45315206 : f32
    %352 = vector.broadcast %cst_133 : f32 to vector<16x128xf32>
    %353 = arith.addf %352, %351 : vector<16x128xf32>
    %354 = arith.mulf %349, %353 : vector<16x128xf32>
    %cst_134 = arith.constant 1.42141378 : f32
    %355 = vector.broadcast %cst_134 : f32 to vector<16x128xf32>
    %356 = arith.addf %355, %354 : vector<16x128xf32>
    %357 = arith.mulf %349, %356 : vector<16x128xf32>
    %cst_135 = arith.constant -0.284496725 : f32
    %358 = vector.broadcast %cst_135 : f32 to vector<16x128xf32>
    %359 = arith.addf %358, %357 : vector<16x128xf32>
    %360 = arith.mulf %349, %359 : vector<16x128xf32>
    %cst_136 = arith.constant 0.254829586 : f32
    %361 = vector.broadcast %cst_136 : f32 to vector<16x128xf32>
    %362 = arith.addf %361, %360 : vector<16x128xf32>
    %363 = arith.mulf %349, %362 : vector<16x128xf32>
    %cst_137 = arith.constant 0.000000e+00 : f32
    %364 = vector.broadcast %cst_137 : f32 to vector<16x128xf32>
    %365 = arith.subf %364, %343 : vector<16x128xf32>
    %366 = arith.mulf %365, %343 : vector<16x128xf32>
    %367 = math.exp %366 : vector<16x128xf32>
    %368 = arith.mulf %363, %367 : vector<16x128xf32>
    %cst_138 = arith.constant 1.000000e+00 : f32
    %369 = vector.broadcast %cst_138 : f32 to vector<16x128xf32>
    %370 = arith.subf %369, %368 : vector<16x128xf32>
    %cst_139 = arith.constant 0.000000e+00 : f32
    %371 = vector.broadcast %cst_139 : f32 to vector<16x128xf32>
    %372 = arith.cmpf olt, %342, %371 : vector<16x128xf32>
    %cst_140 = arith.constant 0.000000e+00 : f32
    %373 = vector.broadcast %cst_140 : f32 to vector<16x128xf32>
    %374 = arith.subf %373, %370 : vector<16x128xf32>
    %375 = arith.select %372, %374, %370 : vector<16x128xi1>, vector<16x128xf32>
    %cst_141 = arith.constant 1.000000e+00 : f32
    %376 = vector.broadcast %cst_141 : f32 to vector<16x128xf32>
    %377 = arith.addf %376, %375 : vector<16x128xf32>
    %378 = arith.mulf %340, %377 : vector<16x128xf32>
    %c6_i32_142 = arith.constant 6 : i32
    %379 = tpu.dynamic_rotate %378 by %c6_i32_142 dim 1 : vector<16x128xf32>, i32 -> vector<16x128xf32>
    %380 = vector.broadcast %95 : vector<1x128xf32> to vector<16x128xf32>
    %381 = arith.mulf %379, %380 : vector<16x128xf32>
    %c0_143 = arith.constant 0 : index
    %c0_144 = arith.constant 0 : index
    %c0_145 = arith.constant 0 : index
    %382 = vector.load %arg5[%c0_143, %c0_144, %c0_145] : memref<25x8x16xf32, #tpu.memory_space<vmem>>, vector<1x8x16xf32>
    %383 = vector.shape_cast %382 : vector<1x8x16xf32> to vector<8x16xf32>
    %cst_146 = arith.constant dense<0.000000e+00> : vector<8x128xf32>
    %384 = tpu.matmul %383, %381, %cst_146 {dimension_numbers = #tpu.dot_dimension_numbers<[1], [0], [0], [1], [0, 0, 1, 1], [], []>} : vector<8x16xf32>, vector<16x128xf32>, vector<8x128xf32> -> vector<8x128xf32>
    %c5_i32_147 = arith.constant 5 : i32
    %385 = tpu.dynamic_rotate %378 by %c5_i32_147 dim 1 : vector<16x128xf32>, i32 -> vector<16x128xf32>
    %386 = vector.broadcast %98 : vector<1x128xf32> to vector<16x128xf32>
    %387 = arith.mulf %385, %386 : vector<16x128xf32>
    %c1_148 = arith.constant 1 : index
    %c0_149 = arith.constant 0 : index
    %c0_150 = arith.constant 0 : index
    %388 = vector.load %arg5[%c1_148, %c0_149, %c0_150] : memref<25x8x16xf32, #tpu.memory_space<vmem>>, vector<1x8x16xf32>
    %389 = vector.shape_cast %388 : vector<1x8x16xf32> to vector<8x16xf32>
    %cst_151 = arith.constant dense<0.000000e+00> : vector<8x128xf32>
    %390 = tpu.matmul %389, %387, %cst_151 {dimension_numbers = #tpu.dot_dimension_numbers<[1], [0], [0], [1], [0, 0, 1, 1], [], []>} : vector<8x16xf32>, vector<16x128xf32>, vector<8x128xf32> -> vector<8x128xf32>
    %391 = arith.addf %384, %390 : vector<8x128xf32>
    %c4_i32_152 = arith.constant 4 : i32
    %392 = tpu.dynamic_rotate %378 by %c4_i32_152 dim 1 : vector<16x128xf32>, i32 -> vector<16x128xf32>
    %393 = vector.broadcast %101 : vector<1x128xf32> to vector<16x128xf32>
    %394 = arith.mulf %392, %393 : vector<16x128xf32>
    %c2_153 = arith.constant 2 : index
    %c0_154 = arith.constant 0 : index
    %c0_155 = arith.constant 0 : index
    %395 = vector.load %arg5[%c2_153, %c0_154, %c0_155] : memref<25x8x16xf32, #tpu.memory_space<vmem>>, vector<1x8x16xf32>
    %396 = vector.shape_cast %395 : vector<1x8x16xf32> to vector<8x16xf32>
    %cst_156 = arith.constant dense<0.000000e+00> : vector<8x128xf32>
    %397 = tpu.matmul %396, %394, %cst_156 {dimension_numbers = #tpu.dot_dimension_numbers<[1], [0], [0], [1], [0, 0, 1, 1], [], []>} : vector<8x16xf32>, vector<16x128xf32>, vector<8x128xf32> -> vector<8x128xf32>
    %398 = arith.addf %391, %397 : vector<8x128xf32>
    %c3_i32_157 = arith.constant 3 : i32
    %399 = tpu.dynamic_rotate %378 by %c3_i32_157 dim 1 : vector<16x128xf32>, i32 -> vector<16x128xf32>
    %400 = vector.broadcast %104 : vector<1x128xf32> to vector<16x128xf32>
    %401 = arith.mulf %399, %400 : vector<16x128xf32>
    %c3_158 = arith.constant 3 : index
    %c0_159 = arith.constant 0 : index
    %c0_160 = arith.constant 0 : index
    %402 = vector.load %arg5[%c3_158, %c0_159, %c0_160] : memref<25x8x16xf32, #tpu.memory_space<vmem>>, vector<1x8x16xf32>
    %403 = vector.shape_cast %402 : vector<1x8x16xf32> to vector<8x16xf32>
    %cst_161 = arith.constant dense<0.000000e+00> : vector<8x128xf32>
    %404 = tpu.matmul %403, %401, %cst_161 {dimension_numbers = #tpu.dot_dimension_numbers<[1], [0], [0], [1], [0, 0, 1, 1], [], []>} : vector<8x16xf32>, vector<16x128xf32>, vector<8x128xf32> -> vector<8x128xf32>
    %405 = arith.addf %398, %404 : vector<8x128xf32>
    %c2_i32_162 = arith.constant 2 : i32
    %406 = tpu.dynamic_rotate %378 by %c2_i32_162 dim 1 : vector<16x128xf32>, i32 -> vector<16x128xf32>
    %407 = vector.broadcast %107 : vector<1x128xf32> to vector<16x128xf32>
    %408 = arith.mulf %406, %407 : vector<16x128xf32>
    %c4_163 = arith.constant 4 : index
    %c0_164 = arith.constant 0 : index
    %c0_165 = arith.constant 0 : index
    %409 = vector.load %arg5[%c4_163, %c0_164, %c0_165] : memref<25x8x16xf32, #tpu.memory_space<vmem>>, vector<1x8x16xf32>
    %410 = vector.shape_cast %409 : vector<1x8x16xf32> to vector<8x16xf32>
    %cst_166 = arith.constant dense<0.000000e+00> : vector<8x128xf32>
    %411 = tpu.matmul %410, %408, %cst_166 {dimension_numbers = #tpu.dot_dimension_numbers<[1], [0], [0], [1], [0, 0, 1, 1], [], []>} : vector<8x16xf32>, vector<16x128xf32>, vector<8x128xf32> -> vector<8x128xf32>
    %412 = arith.addf %405, %411 : vector<8x128xf32>
    %c4_i32_167 = arith.constant 4 : i32
    %413 = tpu.dynamic_rotate %378 by %c4_i32_167 dim 1 : vector<16x128xf32>, i32 -> vector<16x128xf32>
    %414 = vector.broadcast %110 : vector<1x128xf32> to vector<16x128xf32>
    %415 = arith.mulf %413, %414 : vector<16x128xf32>
    %c5_168 = arith.constant 5 : index
    %c0_169 = arith.constant 0 : index
    %c0_170 = arith.constant 0 : index
    %416 = vector.load %arg5[%c5_168, %c0_169, %c0_170] : memref<25x8x16xf32, #tpu.memory_space<vmem>>, vector<1x8x16xf32>
    %417 = vector.shape_cast %416 : vector<1x8x16xf32> to vector<8x16xf32>
    %cst_171 = arith.constant dense<0.000000e+00> : vector<8x128xf32>
    %418 = tpu.matmul %417, %415, %cst_171 {dimension_numbers = #tpu.dot_dimension_numbers<[1], [0], [0], [1], [0, 0, 1, 1], [], []>} : vector<8x16xf32>, vector<16x128xf32>, vector<8x128xf32> -> vector<8x128xf32>
    %419 = arith.addf %412, %418 : vector<8x128xf32>
    %c3_i32_172 = arith.constant 3 : i32
    %420 = tpu.dynamic_rotate %378 by %c3_i32_172 dim 1 : vector<16x128xf32>, i32 -> vector<16x128xf32>
    %421 = vector.broadcast %113 : vector<1x128xf32> to vector<16x128xf32>
    %422 = arith.mulf %420, %421 : vector<16x128xf32>
    %c6_173 = arith.constant 6 : index
    %c0_174 = arith.constant 0 : index
    %c0_175 = arith.constant 0 : index
    %423 = vector.load %arg5[%c6_173, %c0_174, %c0_175] : memref<25x8x16xf32, #tpu.memory_space<vmem>>, vector<1x8x16xf32>
    %424 = vector.shape_cast %423 : vector<1x8x16xf32> to vector<8x16xf32>
    %cst_176 = arith.constant dense<0.000000e+00> : vector<8x128xf32>
    %425 = tpu.matmul %424, %422, %cst_176 {dimension_numbers = #tpu.dot_dimension_numbers<[1], [0], [0], [1], [0, 0, 1, 1], [], []>} : vector<8x16xf32>, vector<16x128xf32>, vector<8x128xf32> -> vector<8x128xf32>
    %426 = arith.addf %419, %425 : vector<8x128xf32>
    %c2_i32_177 = arith.constant 2 : i32
    %427 = tpu.dynamic_rotate %378 by %c2_i32_177 dim 1 : vector<16x128xf32>, i32 -> vector<16x128xf32>
    %428 = vector.broadcast %116 : vector<1x128xf32> to vector<16x128xf32>
    %429 = arith.mulf %427, %428 : vector<16x128xf32>
    %c7_178 = arith.constant 7 : index
    %c0_179 = arith.constant 0 : index
    %c0_180 = arith.constant 0 : index
    %430 = vector.load %arg5[%c7_178, %c0_179, %c0_180] : memref<25x8x16xf32, #tpu.memory_space<vmem>>, vector<1x8x16xf32>
    %431 = vector.shape_cast %430 : vector<1x8x16xf32> to vector<8x16xf32>
    %cst_181 = arith.constant dense<0.000000e+00> : vector<8x128xf32>
    %432 = tpu.matmul %431, %429, %cst_181 {dimension_numbers = #tpu.dot_dimension_numbers<[1], [0], [0], [1], [0, 0, 1, 1], [], []>} : vector<8x16xf32>, vector<16x128xf32>, vector<8x128xf32> -> vector<8x128xf32>
    %433 = arith.addf %426, %432 : vector<8x128xf32>
    %c1_i32_182 = arith.constant 1 : i32
    %434 = tpu.dynamic_rotate %378 by %c1_i32_182 dim 1 : vector<16x128xf32>, i32 -> vector<16x128xf32>
    %435 = vector.broadcast %119 : vector<1x128xf32> to vector<16x128xf32>
    %436 = arith.mulf %434, %435 : vector<16x128xf32>
    %c8_183 = arith.constant 8 : index
    %c0_184 = arith.constant 0 : index
    %c0_185 = arith.constant 0 : index
    %437 = vector.load %arg5[%c8_183, %c0_184, %c0_185] : memref<25x8x16xf32, #tpu.memory_space<vmem>>, vector<1x8x16xf32>
    %438 = vector.shape_cast %437 : vector<1x8x16xf32> to vector<8x16xf32>
    %cst_186 = arith.constant dense<0.000000e+00> : vector<8x128xf32>
    %439 = tpu.matmul %438, %436, %cst_186 {dimension_numbers = #tpu.dot_dimension_numbers<[1], [0], [0], [1], [0, 0, 1, 1], [], []>} : vector<8x16xf32>, vector<16x128xf32>, vector<8x128xf32> -> vector<8x128xf32>
    %440 = arith.addf %433, %439 : vector<8x128xf32>
    %441 = vector.broadcast %122 : vector<1x128xf32> to vector<16x128xf32>
    %442 = arith.mulf %378, %441 : vector<16x128xf32>
    %c9_187 = arith.constant 9 : index
    %c0_188 = arith.constant 0 : index
    %c0_189 = arith.constant 0 : index
    %443 = vector.load %arg5[%c9_187, %c0_188, %c0_189] : memref<25x8x16xf32, #tpu.memory_space<vmem>>, vector<1x8x16xf32>
    %444 = vector.shape_cast %443 : vector<1x8x16xf32> to vector<8x16xf32>
    %cst_190 = arith.constant dense<0.000000e+00> : vector<8x128xf32>
    %445 = tpu.matmul %444, %442, %cst_190 {dimension_numbers = #tpu.dot_dimension_numbers<[1], [0], [0], [1], [0, 0, 1, 1], [], []>} : vector<8x16xf32>, vector<16x128xf32>, vector<8x128xf32> -> vector<8x128xf32>
    %446 = arith.addf %440, %445 : vector<8x128xf32>
    %c2_i32_191 = arith.constant 2 : i32
    %447 = tpu.dynamic_rotate %378 by %c2_i32_191 dim 1 : vector<16x128xf32>, i32 -> vector<16x128xf32>
    %448 = vector.broadcast %125 : vector<1x128xf32> to vector<16x128xf32>
    %449 = arith.mulf %447, %448 : vector<16x128xf32>
    %c10_192 = arith.constant 10 : index
    %c0_193 = arith.constant 0 : index
    %c0_194 = arith.constant 0 : index
    %450 = vector.load %arg5[%c10_192, %c0_193, %c0_194] : memref<25x8x16xf32, #tpu.memory_space<vmem>>, vector<1x8x16xf32>
    %451 = vector.shape_cast %450 : vector<1x8x16xf32> to vector<8x16xf32>
    %cst_195 = arith.constant dense<0.000000e+00> : vector<8x128xf32>
    %452 = tpu.matmul %451, %449, %cst_195 {dimension_numbers = #tpu.dot_dimension_numbers<[1], [0], [0], [1], [0, 0, 1, 1], [], []>} : vector<8x16xf32>, vector<16x128xf32>, vector<8x128xf32> -> vector<8x128xf32>
    %453 = arith.addf %446, %452 : vector<8x128xf32>
    %c1_i32_196 = arith.constant 1 : i32
    %454 = tpu.dynamic_rotate %378 by %c1_i32_196 dim 1 : vector<16x128xf32>, i32 -> vector<16x128xf32>
    %455 = vector.broadcast %128 : vector<1x128xf32> to vector<16x128xf32>
    %456 = arith.mulf %454, %455 : vector<16x128xf32>
    %c11_197 = arith.constant 11 : index
    %c0_198 = arith.constant 0 : index
    %c0_199 = arith.constant 0 : index
    %457 = vector.load %arg5[%c11_197, %c0_198, %c0_199] : memref<25x8x16xf32, #tpu.memory_space<vmem>>, vector<1x8x16xf32>
    %458 = vector.shape_cast %457 : vector<1x8x16xf32> to vector<8x16xf32>
    %cst_200 = arith.constant dense<0.000000e+00> : vector<8x128xf32>
    %459 = tpu.matmul %458, %456, %cst_200 {dimension_numbers = #tpu.dot_dimension_numbers<[1], [0], [0], [1], [0, 0, 1, 1], [], []>} : vector<8x16xf32>, vector<16x128xf32>, vector<8x128xf32> -> vector<8x128xf32>
    %460 = arith.addf %453, %459 : vector<8x128xf32>
    %c12_201 = arith.constant 12 : index
    %c0_202 = arith.constant 0 : index
    %c0_203 = arith.constant 0 : index
    %461 = vector.load %arg5[%c12_201, %c0_202, %c0_203] : memref<25x8x16xf32, #tpu.memory_space<vmem>>, vector<1x8x16xf32>
    %462 = vector.shape_cast %461 : vector<1x8x16xf32> to vector<8x16xf32>
    %cst_204 = arith.constant dense<0.000000e+00> : vector<8x128xf32>
    %463 = tpu.matmul %462, %378, %cst_204 {dimension_numbers = #tpu.dot_dimension_numbers<[1], [0], [0], [1], [0, 0, 1, 1], [], []>} : vector<8x16xf32>, vector<16x128xf32>, vector<8x128xf32> -> vector<8x128xf32>
    %464 = arith.addf %460, %463 : vector<8x128xf32>
    %c127_i32_205 = arith.constant 127 : i32
    %465 = tpu.dynamic_rotate %378 by %c127_i32_205 dim 1 : vector<16x128xf32>, i32 -> vector<16x128xf32>
    %466 = vector.broadcast %131 : vector<1x128xf32> to vector<16x128xf32>
    %467 = arith.mulf %465, %466 : vector<16x128xf32>
    %c13_206 = arith.constant 13 : index
    %c0_207 = arith.constant 0 : index
    %c0_208 = arith.constant 0 : index
    %468 = vector.load %arg5[%c13_206, %c0_207, %c0_208] : memref<25x8x16xf32, #tpu.memory_space<vmem>>, vector<1x8x16xf32>
    %469 = vector.shape_cast %468 : vector<1x8x16xf32> to vector<8x16xf32>
    %cst_209 = arith.constant dense<0.000000e+00> : vector<8x128xf32>
    %470 = tpu.matmul %469, %467, %cst_209 {dimension_numbers = #tpu.dot_dimension_numbers<[1], [0], [0], [1], [0, 0, 1, 1], [], []>} : vector<8x16xf32>, vector<16x128xf32>, vector<8x128xf32> -> vector<8x128xf32>
    %471 = arith.addf %464, %470 : vector<8x128xf32>
    %c126_i32_210 = arith.constant 126 : i32
    %472 = tpu.dynamic_rotate %378 by %c126_i32_210 dim 1 : vector<16x128xf32>, i32 -> vector<16x128xf32>
    %473 = vector.broadcast %134 : vector<1x128xf32> to vector<16x128xf32>
    %474 = arith.mulf %472, %473 : vector<16x128xf32>
    %c14_211 = arith.constant 14 : index
    %c0_212 = arith.constant 0 : index
    %c0_213 = arith.constant 0 : index
    %475 = vector.load %arg5[%c14_211, %c0_212, %c0_213] : memref<25x8x16xf32, #tpu.memory_space<vmem>>, vector<1x8x16xf32>
    %476 = vector.shape_cast %475 : vector<1x8x16xf32> to vector<8x16xf32>
    %cst_214 = arith.constant dense<0.000000e+00> : vector<8x128xf32>
    %477 = tpu.matmul %476, %474, %cst_214 {dimension_numbers = #tpu.dot_dimension_numbers<[1], [0], [0], [1], [0, 0, 1, 1], [], []>} : vector<8x16xf32>, vector<16x128xf32>, vector<8x128xf32> -> vector<8x128xf32>
    %478 = arith.addf %471, %477 : vector<8x128xf32>
    %479 = vector.broadcast %137 : vector<1x128xf32> to vector<16x128xf32>
    %480 = arith.mulf %378, %479 : vector<16x128xf32>
    %c15_215 = arith.constant 15 : index
    %c0_216 = arith.constant 0 : index
    %c0_217 = arith.constant 0 : index
    %481 = vector.load %arg5[%c15_215, %c0_216, %c0_217] : memref<25x8x16xf32, #tpu.memory_space<vmem>>, vector<1x8x16xf32>
    %482 = vector.shape_cast %481 : vector<1x8x16xf32> to vector<8x16xf32>
    %cst_218 = arith.constant dense<0.000000e+00> : vector<8x128xf32>
    %483 = tpu.matmul %482, %480, %cst_218 {dimension_numbers = #tpu.dot_dimension_numbers<[1], [0], [0], [1], [0, 0, 1, 1], [], []>} : vector<8x16xf32>, vector<16x128xf32>, vector<8x128xf32> -> vector<8x128xf32>
    %484 = arith.addf %478, %483 : vector<8x128xf32>
    %c127_i32_219 = arith.constant 127 : i32
    %485 = tpu.dynamic_rotate %378 by %c127_i32_219 dim 1 : vector<16x128xf32>, i32 -> vector<16x128xf32>
    %486 = vector.broadcast %140 : vector<1x128xf32> to vector<16x128xf32>
    %487 = arith.mulf %485, %486 : vector<16x128xf32>
    %c16_220 = arith.constant 16 : index
    %c0_221 = arith.constant 0 : index
    %c0_222 = arith.constant 0 : index
    %488 = vector.load %arg5[%c16_220, %c0_221, %c0_222] : memref<25x8x16xf32, #tpu.memory_space<vmem>>, vector<1x8x16xf32>
    %489 = vector.shape_cast %488 : vector<1x8x16xf32> to vector<8x16xf32>
    %cst_223 = arith.constant dense<0.000000e+00> : vector<8x128xf32>
    %490 = tpu.matmul %489, %487, %cst_223 {dimension_numbers = #tpu.dot_dimension_numbers<[1], [0], [0], [1], [0, 0, 1, 1], [], []>} : vector<8x16xf32>, vector<16x128xf32>, vector<8x128xf32> -> vector<8x128xf32>
    %491 = arith.addf %484, %490 : vector<8x128xf32>
    %c126_i32_224 = arith.constant 126 : i32
    %492 = tpu.dynamic_rotate %378 by %c126_i32_224 dim 1 : vector<16x128xf32>, i32 -> vector<16x128xf32>
    %493 = vector.broadcast %143 : vector<1x128xf32> to vector<16x128xf32>
    %494 = arith.mulf %492, %493 : vector<16x128xf32>
    %c17_225 = arith.constant 17 : index
    %c0_226 = arith.constant 0 : index
    %c0_227 = arith.constant 0 : index
    %495 = vector.load %arg5[%c17_225, %c0_226, %c0_227] : memref<25x8x16xf32, #tpu.memory_space<vmem>>, vector<1x8x16xf32>
    %496 = vector.shape_cast %495 : vector<1x8x16xf32> to vector<8x16xf32>
    %cst_228 = arith.constant dense<0.000000e+00> : vector<8x128xf32>
    %497 = tpu.matmul %496, %494, %cst_228 {dimension_numbers = #tpu.dot_dimension_numbers<[1], [0], [0], [1], [0, 0, 1, 1], [], []>} : vector<8x16xf32>, vector<16x128xf32>, vector<8x128xf32> -> vector<8x128xf32>
    %498 = arith.addf %491, %497 : vector<8x128xf32>
    %c125_i32_229 = arith.constant 125 : i32
    %499 = tpu.dynamic_rotate %378 by %c125_i32_229 dim 1 : vector<16x128xf32>, i32 -> vector<16x128xf32>
    %500 = vector.broadcast %146 : vector<1x128xf32> to vector<16x128xf32>
    %501 = arith.mulf %499, %500 : vector<16x128xf32>
    %c18_230 = arith.constant 18 : index
    %c0_231 = arith.constant 0 : index
    %c0_232 = arith.constant 0 : index
    %502 = vector.load %arg5[%c18_230, %c0_231, %c0_232] : memref<25x8x16xf32, #tpu.memory_space<vmem>>, vector<1x8x16xf32>
    %503 = vector.shape_cast %502 : vector<1x8x16xf32> to vector<8x16xf32>
    %cst_233 = arith.constant dense<0.000000e+00> : vector<8x128xf32>
    %504 = tpu.matmul %503, %501, %cst_233 {dimension_numbers = #tpu.dot_dimension_numbers<[1], [0], [0], [1], [0, 0, 1, 1], [], []>} : vector<8x16xf32>, vector<16x128xf32>, vector<8x128xf32> -> vector<8x128xf32>
    %505 = arith.addf %498, %504 : vector<8x128xf32>
    %c124_i32_234 = arith.constant 124 : i32
    %506 = tpu.dynamic_rotate %378 by %c124_i32_234 dim 1 : vector<16x128xf32>, i32 -> vector<16x128xf32>
    %507 = vector.broadcast %149 : vector<1x128xf32> to vector<16x128xf32>
    %508 = arith.mulf %506, %507 : vector<16x128xf32>
    %c19_235 = arith.constant 19 : index
    %c0_236 = arith.constant 0 : index
    %c0_237 = arith.constant 0 : index
    %509 = vector.load %arg5[%c19_235, %c0_236, %c0_237] : memref<25x8x16xf32, #tpu.memory_space<vmem>>, vector<1x8x16xf32>
    %510 = vector.shape_cast %509 : vector<1x8x16xf32> to vector<8x16xf32>
    %cst_238 = arith.constant dense<0.000000e+00> : vector<8x128xf32>
    %511 = tpu.matmul %510, %508, %cst_238 {dimension_numbers = #tpu.dot_dimension_numbers<[1], [0], [0], [1], [0, 0, 1, 1], [], []>} : vector<8x16xf32>, vector<16x128xf32>, vector<8x128xf32> -> vector<8x128xf32>
    %512 = arith.addf %505, %511 : vector<8x128xf32>
    %c126_i32_239 = arith.constant 126 : i32
    %513 = tpu.dynamic_rotate %378 by %c126_i32_239 dim 1 : vector<16x128xf32>, i32 -> vector<16x128xf32>
    %514 = vector.broadcast %152 : vector<1x128xf32> to vector<16x128xf32>
    %515 = arith.mulf %513, %514 : vector<16x128xf32>
    %c20_240 = arith.constant 20 : index
    %c0_241 = arith.constant 0 : index
    %c0_242 = arith.constant 0 : index
    %516 = vector.load %arg5[%c20_240, %c0_241, %c0_242] : memref<25x8x16xf32, #tpu.memory_space<vmem>>, vector<1x8x16xf32>
    %517 = vector.shape_cast %516 : vector<1x8x16xf32> to vector<8x16xf32>
    %cst_243 = arith.constant dense<0.000000e+00> : vector<8x128xf32>
    %518 = tpu.matmul %517, %515, %cst_243 {dimension_numbers = #tpu.dot_dimension_numbers<[1], [0], [0], [1], [0, 0, 1, 1], [], []>} : vector<8x16xf32>, vector<16x128xf32>, vector<8x128xf32> -> vector<8x128xf32>
    %519 = arith.addf %512, %518 : vector<8x128xf32>
    %c125_i32_244 = arith.constant 125 : i32
    %520 = tpu.dynamic_rotate %378 by %c125_i32_244 dim 1 : vector<16x128xf32>, i32 -> vector<16x128xf32>
    %521 = vector.broadcast %155 : vector<1x128xf32> to vector<16x128xf32>
    %522 = arith.mulf %520, %521 : vector<16x128xf32>
    %c21_245 = arith.constant 21 : index
    %c0_246 = arith.constant 0 : index
    %c0_247 = arith.constant 0 : index
    %523 = vector.load %arg5[%c21_245, %c0_246, %c0_247] : memref<25x8x16xf32, #tpu.memory_space<vmem>>, vector<1x8x16xf32>
    %524 = vector.shape_cast %523 : vector<1x8x16xf32> to vector<8x16xf32>
    %cst_248 = arith.constant dense<0.000000e+00> : vector<8x128xf32>
    %525 = tpu.matmul %524, %522, %cst_248 {dimension_numbers = #tpu.dot_dimension_numbers<[1], [0], [0], [1], [0, 0, 1, 1], [], []>} : vector<8x16xf32>, vector<16x128xf32>, vector<8x128xf32> -> vector<8x128xf32>
    %526 = arith.addf %519, %525 : vector<8x128xf32>
    %c124_i32_249 = arith.constant 124 : i32
    %527 = tpu.dynamic_rotate %378 by %c124_i32_249 dim 1 : vector<16x128xf32>, i32 -> vector<16x128xf32>
    %528 = vector.broadcast %158 : vector<1x128xf32> to vector<16x128xf32>
    %529 = arith.mulf %527, %528 : vector<16x128xf32>
    %c22_250 = arith.constant 22 : index
    %c0_251 = arith.constant 0 : index
    %c0_252 = arith.constant 0 : index
    %530 = vector.load %arg5[%c22_250, %c0_251, %c0_252] : memref<25x8x16xf32, #tpu.memory_space<vmem>>, vector<1x8x16xf32>
    %531 = vector.shape_cast %530 : vector<1x8x16xf32> to vector<8x16xf32>
    %cst_253 = arith.constant dense<0.000000e+00> : vector<8x128xf32>
    %532 = tpu.matmul %531, %529, %cst_253 {dimension_numbers = #tpu.dot_dimension_numbers<[1], [0], [0], [1], [0, 0, 1, 1], [], []>} : vector<8x16xf32>, vector<16x128xf32>, vector<8x128xf32> -> vector<8x128xf32>
    %533 = arith.addf %526, %532 : vector<8x128xf32>
    %c123_i32_254 = arith.constant 123 : i32
    %534 = tpu.dynamic_rotate %378 by %c123_i32_254 dim 1 : vector<16x128xf32>, i32 -> vector<16x128xf32>
    %535 = vector.broadcast %161 : vector<1x128xf32> to vector<16x128xf32>
    %536 = arith.mulf %534, %535 : vector<16x128xf32>
    %c23_255 = arith.constant 23 : index
    %c0_256 = arith.constant 0 : index
    %c0_257 = arith.constant 0 : index
    %537 = vector.load %arg5[%c23_255, %c0_256, %c0_257] : memref<25x8x16xf32, #tpu.memory_space<vmem>>, vector<1x8x16xf32>
    %538 = vector.shape_cast %537 : vector<1x8x16xf32> to vector<8x16xf32>
    %cst_258 = arith.constant dense<0.000000e+00> : vector<8x128xf32>
    %539 = tpu.matmul %538, %536, %cst_258 {dimension_numbers = #tpu.dot_dimension_numbers<[1], [0], [0], [1], [0, 0, 1, 1], [], []>} : vector<8x16xf32>, vector<16x128xf32>, vector<8x128xf32> -> vector<8x128xf32>
    %540 = arith.addf %533, %539 : vector<8x128xf32>
    %c122_i32_259 = arith.constant 122 : i32
    %541 = tpu.dynamic_rotate %378 by %c122_i32_259 dim 1 : vector<16x128xf32>, i32 -> vector<16x128xf32>
    %542 = vector.broadcast %164 : vector<1x128xf32> to vector<16x128xf32>
    %543 = arith.mulf %541, %542 : vector<16x128xf32>
    %c24_260 = arith.constant 24 : index
    %c0_261 = arith.constant 0 : index
    %c0_262 = arith.constant 0 : index
    %544 = vector.load %arg5[%c24_260, %c0_261, %c0_262] : memref<25x8x16xf32, #tpu.memory_space<vmem>>, vector<1x8x16xf32>
    %545 = vector.shape_cast %544 : vector<1x8x16xf32> to vector<8x16xf32>
    %cst_263 = arith.constant dense<0.000000e+00> : vector<8x128xf32>
    %546 = tpu.matmul %545, %543, %cst_263 {dimension_numbers = #tpu.dot_dimension_numbers<[1], [0], [0], [1], [0, 0, 1, 1], [], []>} : vector<8x16xf32>, vector<16x128xf32>, vector<8x128xf32> -> vector<8x128xf32>
    %547 = arith.addf %540, %546 : vector<8x128xf32>
    %c0_264 = arith.constant 0 : index
    %c0_265 = arith.constant 0 : index
    %548 = vector.load %arg6[%c0_264, %c0_265] : memref<8x1xf32, #tpu.memory_space<vmem>>, vector<8x1xf32>
    %549 = vector.broadcast %548 : vector<8x1xf32> to vector<8x128xf32>
    %550 = arith.addf %547, %549 : vector<8x128xf32>
    %c0_266 = arith.constant 0 : index
    %c0_267 = arith.constant 0 : index
    %c0_268 = arith.constant 0 : index
    %551 = vector.load %arg7[%c0_266, %c0_267, %c0_268] : memref<1x8x128xf32, #tpu.memory_space<vmem>>, vector<1x8x128xf32>
    %552 = vector.shape_cast %551 : vector<1x8x128xf32> to vector<8x128xf32>
    %553 = vector.shape_cast %550 : vector<8x128xf32> to vector<1x8x128xf32>
    tpu.vector_store %arg7[%c0_266, %c0_267, %c0_268], %553 {strides = array<i32>} : memref<1x8x128xf32, #tpu.memory_space<vmem>>, vector<1x8x128xf32>,
    return
  }
  func.func @transform_0(%arg0: i32) -> (i32, i32, i32) {
    %c0_i32 = arith.constant 0 : i32
    %c0_i32_0 = arith.constant 0 : i32
    %c0_i32_1 = arith.constant 0 : i32
    return %arg0, %c0_i32, %c0_i32_0 : i32, i32, i32
  }
  func.func @transform_1(%arg0: i32) -> (i32, i32) {
    %c0_i32 = arith.constant 0 : i32
    %c0_i32_0 = arith.constant 0 : i32
    %c0_i32_1 = arith.constant 0 : i32
    return %c0_i32, %c0_i32_0 : i32, i32
  }
  func.func @transform_2(%arg0: i32) -> (i32, i32, i32) {
    %c0_i32 = arith.constant 0 : i32
    %c0_i32_0 = arith.constant 0 : i32
    %c0_i32_1 = arith.constant 0 : i32
    %c0_i32_2 = arith.constant 0 : i32
    return %c0_i32, %c0_i32_0, %c0_i32_1 : i32, i32, i32
  }
  func.func @transform_3(%arg0: i32) -> (i32, i32) {
    %c0_i32 = arith.constant 0 : i32
    %c0_i32_0 = arith.constant 0 : i32
    %c0_i32_1 = arith.constant 0 : i32
    return %c0_i32, %c0_i32_0 : i32, i32
  }
  func.func @transform_4(%arg0: i32) -> (i32, i32, i32) {
    %c0_i32 = arith.constant 0 : i32
    %c0_i32_0 = arith.constant 0 : i32
    %c0_i32_1 = arith.constant 0 : i32
    %c0_i32_2 = arith.constant 0 : i32
    return %c0_i32, %c0_i32_0, %c0_i32_1 : i32, i32, i32
  }
  func.func @transform_5(%arg0: i32) -> (i32, i32) {
    %c0_i32 = arith.constant 0 : i32
    %c0_i32_0 = arith.constant 0 : i32
    %c0_i32_1 = arith.constant 0 : i32
    return %c0_i32, %c0_i32_0 : i32, i32
  }
  func.func @transform_6(%arg0: i32) -> (i32, i32, i32) {
    %c0_i32 = arith.constant 0 : i32
    %c0_i32_0 = arith.constant 0 : i32
    %c0_i32_1 = arith.constant 0 : i32
    return %arg0, %c0_i32, %c0_i32_0 : i32, i32, i32
  }
}

</mosaic_0001>

<llo_original>
// kernel: tpu_custom_call.1
$region0: #{tpu_custom_call.1}
  #allocation0 [shape = 'u32[]', space=smem, size = 0x4, offset = 0x4, fixed_abs, tag = 'smem constant byte address 0x4 - core index']
  #allocation1 [shape = 'u32[144,128]{1,0:T(1,128)}', space=vmem, size = 0x12000, scoped, tag = 'internal scratch']
  %s0 = inlined_call_operand.vmem [shape: f32[2,8,128], index: 0, kind: input, shape index: {}]
  %s1 = inlined_call_operand.vmem [shape: s32[2,128], index: 1, kind: input, shape index: {}]
  %s2 = inlined_call_operand.vmem [shape: f32[25,16,8], index: 2, kind: input, shape index: {}]
  %s3 = inlined_call_operand.vmem [shape: f32[16,1], index: 3, kind: input, shape index: {}]
  %s4 = inlined_call_operand.vmem [shape: f32[25,8,16], index: 4, kind: input, shape index: {}]
  %s5 = inlined_call_operand.vmem [shape: f32[8,1], index: 5, kind: input, shape index: {}]
  %s6 = inlined_call_operand.hbm [shape: f32[2,8,128], index: 6, kind: output, shape index: {}]
  %s7 = sld [smem:[#allocation0]]
  $region57: #{tpu_custom_call.1} parent=0
    _
  %s9 = ssub.s32 1, %s7
  %s10 = scalar_select 0, %s9, %s7
  $region1: #{tpu_custom_call.1} parent=0
    #allocation2 [shape = 'u8[8192]{0}', space=vmem, size = 0x2000, scoped, tag = 'output window, operand 0']
    #allocation3 [shape = 's32[2]{0}', space=sflag, size = 0x8, scoped, tag = 'scoped memory for tpu_custom_call.1']
    %11 = vsyncpa [#allocation3], 0
    %s12 = scalar_lea.sflag [#allocation3], 1
    %13 = vsyncpa %s12, 0
    loop: start=0, step=1, limit=4
    $region2: #{tpu_custom_call.1} parent=1 // loop_pre_header
      _
    $region3: #{tpu_custom_call.1} parent=1 // loop_header
      %s15 = sphi 0, %s19
      %p16 = scmp.ge.s32.totalorder %s15, 4
      %s25 = sphi 0, %s27
      %s28 = sphi 0, %s25
      %s29 = sphi 0, %s28
      %s45 = sphi 0, %s29
      %s49 = sphi 0, %s49
      %s51 = sphi 0, %s49
      %s52 = sphi 0, %s51
      %s66 = sphi 0, %s52
      %s70 = sphi 0, %s70
      %s72 = sphi 0, %s70
      %s73 = sphi 0, %s72
      %s87 = sphi 0, %s73
      %s91 = sphi 0, %s91
      %s93 = sphi 0, %s91
      %s94 = sphi 0, %s93
      %s108 = sphi 0, %s94
      %s112 = sphi 0, %s112
      %s114 = sphi 0, %s112
      %s115 = sphi 0, %s114
      %s129 = sphi 0, %s115
      %s133 = sphi 0, %s133
      %s135 = sphi 0, %s133
      %s136 = sphi 0, %s135
      %s150 = sphi 0, %s136
      %s156 = sphi 0, %s158
      %s159 = sphi 0, %s156
      %s160 = sphi 0, %s159
      %s176 = sphi 0, %s160
    $region4: #{tpu_custom_call.1} parent=1 // loop_header_branch
      %18 = sbr.rel (%p16) target = $region8
    $region5: #{tpu_custom_call.1} parent=1 // loop_body
      %s20 = ssub.s32 %s15, 1
      %s21 = ssub.s32 %s15, 2
      %s22 = sadd.s32 %s15, 1
      %s23 = ssub.s32 %s15, %s22
      %p24 = scmp.eq.s32.totalorder %s23, 0
      %s26 = sadd.s32 %s25, 1
      %s27 = scalar_select %p24, %s25, %s26
      %p30 = pneg %p24
      %p31 = scmp.eq.s32.totalorder %s15, 1
      %p32 = por %p30, %p31
      %p33 = scmp.ne.s32.totalorder %s25, %s28
      %p34 = scmp.eq.s32.totalorder %s15, 0
      %p35 = por %p33, %p34
      %p36 = scmp.ne.s32.totalorder %s25, %s28
      %p37 = scmp.eq.s32.totalorder %s20, 1
      %p38 = por %p36, %p37
      %p39 = scmp.ne.s32.totalorder %s28, %s29
      %p40 = scmp.eq.s32.totalorder %s20, 0
      %p41 = por %p39, %p40
      %p42 = scmp.ne.s32.totalorder %s28, %s29
      %p43 = scmp.eq.s32.totalorder %s21, 1
      %p44 = por %p42, %p43
      %p46 = scmp.ne.s32.totalorder %s29, %s45
      %p47 = scmp.eq.s32.totalorder %s21, 0
      %p48 = por %p46, %p47
      %s50 = sadd.s32 %s49, 1
      %p53 = scmp.eq.s32.totalorder %s15, 1
      %p54 = scmp.ne.s32.totalorder %s49, %s51
      %p55 = scmp.eq.s32.totalorder %s15, 0
      %p56 = por %p54, %p55
      %p57 = scmp.ne.s32.totalorder %s49, %s51
      %p58 = scmp.eq.s32.totalorder %s20, 1
      %p59 = por %p57, %p58
      %p60 = scmp.ne.s32.totalorder %s51, %s52
      %p61 = scmp.eq.s32.totalorder %s20, 0
      %p62 = por %p60, %p61
      %p63 = scmp.ne.s32.totalorder %s51, %s52
      %p64 = scmp.eq.s32.totalorder %s21, 1
      %p65 = por %p63, %p64
      %p67 = scmp.ne.s32.totalorder %s52, %s66
      %p68 = scmp.eq.s32.totalorder %s21, 0
      %p69 = por %p67, %p68
      %s71 = sadd.s32 %s70, 1
      %p74 = scmp.eq.s32.totalorder %s15, 1
      %p75 = scmp.ne.s32.totalorder %s70, %s72
      %p76 = scmp.eq.s32.totalorder %s15, 0
      %p77 = por %p75, %p76
      %p78 = scmp.ne.s32.totalorder %s70, %s72
      %p79 = scmp.eq.s32.totalorder %s20, 1
      %p80 = por %p78, %p79
      %p81 = scmp.ne.s32.totalorder %s72, %s73
      %p82 = scmp.eq.s32.totalorder %s20, 0
      %p83 = por %p81, %p82
      %p84 = scmp.ne.s32.totalorder %s72, %s73
      %p85 = scmp.eq.s32.totalorder %s21, 1
      %p86 = por %p84, %p85
      %p88 = scmp.ne.s32.totalorder %s73, %s87
      %p89 = scmp.eq.s32.totalorder %s21, 0
      %p90 = por %p88, %p89
      %s92 = sadd.s32 %s91, 1
      %p95 = scmp.eq.s32.totalorder %s15, 1
      %p96 = scmp.ne.s32.totalorder %s91, %s93
      %p97 = scmp.eq.s32.totalorder %s15, 0
      %p98 = por %p96, %p97
      %p99 = scmp.ne.s32.totalorder %s91, %s93
      %p100 = scmp.eq.s32.totalorder %s20, 1
      %p101 = por %p99, %p100
      %p102 = scmp.ne.s32.totalorder %s93, %s94
      %p103 = scmp.eq.s32.totalorder %s20, 0
      %p104 = por %p102, %p103
      %p105 = scmp.ne.s32.totalorder %s93, %s94
      %p106 = scmp.eq.s32.totalorder %s21, 1
      %p107 = por %p105, %p106
      %p109 = scmp.ne.s32.totalorder %s94, %s108
      %p110 = scmp.eq.s32.totalorder %s21, 0
      %p111 = por %p109, %p110
      %s113 = sadd.s32 %s112, 1
      %p116 = scmp.eq.s32.totalorder %s15, 1
      %p117 = scmp.ne.s32.totalorder %s112, %s114
      %p118 = scmp.eq.s32.totalorder %s15, 0
      %p119 = por %p117, %p118
      %p120 = scmp.ne.s32.totalorder %s112, %s114
      %p121 = scmp.eq.s32.totalorder %s20, 1
      %p122 = por %p120, %p121
      %p123 = scmp.ne.s32.totalorder %s114, %s115
      %p124 = scmp.eq.s32.totalorder %s20, 0
      %p125 = por %p123, %p124
      %p126 = scmp.ne.s32.totalorder %s114, %s115
      %p127 = scmp.eq.s32.totalorder %s21, 1
      %p128 = por %p126, %p127
      %p130 = scmp.ne.s32.totalorder %s115, %s129
      %p131 = scmp.eq.s32.totalorder %s21, 0
      %p132 = por %p130, %p131
      %s134 = sadd.s32 %s133, 1
      %p137 = scmp.eq.s32.totalorder %s15, 1
      %p138 = scmp.ne.s32.totalorder %s133, %s135
      %p139 = scmp.eq.s32.totalorder %s15, 0
      %p140 = por %p138, %p139
      %p141 = scmp.ne.s32.totalorder %s133, %s135
      %p142 = scmp.eq.s32.totalorder %s20, 1
      %p143 = por %p141, %p142
      %p144 = scmp.ne.s32.totalorder %s135, %s136
      %p145 = scmp.eq.s32.totalorder %s20, 0
      %p146 = por %p144, %p145
      %p147 = scmp.ne.s32.totalorder %s135, %s136
      %p148 = scmp.eq.s32.totalorder %s21, 1
      %p149 = por %p147, %p148
      %p151 = scmp.ne.s32.totalorder %s136, %s150
      %p152 = scmp.eq.s32.totalorder %s21, 0
      %p153 = por %p151, %p152
      %s154 = ssub.s32 %s15, %s22
      %p155 = scmp.eq.s32.totalorder %s154, 0
      %s157 = sadd.s32 %s156, 1
      %s158 = scalar_select %p155, %s156, %s157
      %p161 = pneg %p155
      %p162 = scmp.eq.s32.totalorder %s15, 1
      %p163 = por %p161, %p162
      %p164 = scmp.ne.s32.totalorder %s156, %s159
      %p165 = scmp.eq.s32.totalorder %s15, 0
      %p166 = por %p164, %p165
      %p167 = scmp.ne.s32.totalorder %s156, %s159
      %p168 = scmp.eq.s32.totalorder %s20, 1
      %p169 = por %p167, %p168
      %p170 = scmp.ne.s32.totalorder %s159, %s160
      %p171 = scmp.eq.s32.totalorder %s20, 0
      %p172 = por %p170, %p171
      %p173 = scmp.ne.s32.totalorder %s159, %s160
      %p174 = scmp.eq.s32.totalorder %s21, 1
      %p175 = por %p173, %p174
      %p177 = scmp.ne.s32.totalorder %s160, %s176
      %p178 = scmp.eq.s32.totalorder %s21, 0
      %p179 = por %p177, %p178
      %p180 = scmp.le.s32.totalorder 1, %s15
      %p181 = scmp.lt.s32.totalorder %s15, 3
      %p182 = pnand %p180, %p181
      %p183 = pneg %p182
      // Predicated region
      $region9: #{tpu_custom_call.1} parent=5 // pred_check
        _
      $region10: #{tpu_custom_call.1} parent=5 // pred_check_branch
        %185 = sbr.rel (%p182) target = $region12
      $region11: #{tpu_custom_call.1} parent=5 // pred_region
        %s186 = ssub.s32 %s15, 1
        // Predicated region
        $region13: #{tpu_custom_call.1} parent=11 // pred_check
          %p187 = pneg %p62
        $region14: #{tpu_custom_call.1} parent=11 // pred_check_branch
          %189 = sbr.rel (%p187) target = $region16
        $region15: #{tpu_custom_call.1} parent=11 // pred_region
          _
        $region16: #{tpu_custom_call.1} parent=11 // pred_fallthru
          _
        // Predicated region
        $region17: #{tpu_custom_call.1} parent=11 // pred_check
          %p190 = pneg %p83
        $region18: #{tpu_custom_call.1} parent=11 // pred_check_branch
          %192 = sbr.rel (%p190) target = $region20
        $region19: #{tpu_custom_call.1} parent=11 // pred_region
          _
        $region20: #{tpu_custom_call.1} parent=11 // pred_fallthru
          _
        // Predicated region
        $region21: #{tpu_custom_call.1} parent=11 // pred_check
          %p193 = pneg %p104
        $region22: #{tpu_custom_call.1} parent=11 // pred_check_branch
          %195 = sbr.rel (%p193) target = $region24
        $region23: #{tpu_custom_call.1} parent=11 // pred_region
          _
        $region24: #{tpu_custom_call.1} parent=11 // pred_fallthru
          _
        // Predicated region
        $region25: #{tpu_custom_call.1} parent=11 // pred_check
          %p196 = pneg %p125
        $region26: #{tpu_custom_call.1} parent=11 // pred_check_branch
          %198 = sbr.rel (%p196) target = $region28
        $region27: #{tpu_custom_call.1} parent=11 // pred_region
          _
        $region28: #{tpu_custom_call.1} parent=11 // pred_fallthru
          _
        // Predicated region
        $region29: #{tpu_custom_call.1} parent=11 // pred_check
          %p199 = pneg %p146
        $region30: #{tpu_custom_call.1} parent=11 // pred_check_branch
          %201 = sbr.rel (%p199) target = $region32
        $region31: #{tpu_custom_call.1} parent=11 // pred_region
          _
        $region32: #{tpu_custom_call.1} parent=11 // pred_fallthru
          _
      $region12: #{tpu_custom_call.1} parent=5 // pred_fallthru
        _
      %p202 = scmp.lt.s32.totalorder %s15, 2
      // Predicated region
      $region33: #{tpu_custom_call.1} parent=5 // pred_check
        %p203 = pneg %p202
      $region34: #{tpu_custom_call.1} parent=5 // pred_check_branch
        %205 = sbr.rel (%p203) target = $region36
      $region35: #{tpu_custom_call.1} parent=5 // pred_region
        // Predicated region
        $region37: #{tpu_custom_call.1} parent=35 // pred_check
          %p206 = pneg %p35
        $region38: #{tpu_custom_call.1} parent=35 // pred_check_branch
          %208 = sbr.rel (%p206) target = $region40
        $region39: #{tpu_custom_call.1} parent=35 // pred_region
          %p209 = scmp.lt.s32.totalorder %s15, 1
          %s210 = scalar_select %p209, %s15, 1
          %s211 = smul.addr %s210, 8
          %s212 = scalar_lea.vmem %s0, %s211
        $region40: #{tpu_custom_call.1} parent=35 // pred_fallthru
          _
      $region36: #{tpu_custom_call.1} parent=5 // pred_fallthru
        _
      %p213 = scmp.le.s32.totalorder 1, %s15
      %p214 = scmp.lt.s32.totalorder %s15, 3
      %p215 = pnand %p213, %p214
      %p216 = pneg %p215
      // Predicated region
      $region41: #{tpu_custom_call.1} parent=5 // pred_check
        _
      $region42: #{tpu_custom_call.1} parent=5 // pred_check_branch
        %218 = sbr.rel (%p215) target = $region44
      $region43: #{tpu_custom_call.1} parent=5 // pred_region
        %s219 = ssub.s32 %s15, 1
        %p220 = scmp.lt.s32.totalorder %s20, 1
        %s221 = scalar_select %p220, %s20, 1
        %s222 = smul.addr %s221, 8
        %s223 = scalar_lea.vmem %s0, %s222
        %p224 = pneg %p41
        %p225 = pneg %p38
        %p226 = pneg %p62
        %p227 = pneg %p59
        %p228 = pneg %p83
        %p229 = pneg %p80
        %p230 = pneg %p104
        %p231 = pneg %p101
        %p232 = pneg %p125
        %p233 = pneg %p122
        %p234 = pneg %p146
        %p235 = pneg %p143
        %p236 = pneg %p172
        %p237 = pneg %p169
        %s238 = sand.u32 %s159, 1
        %s239 = scalar_lea.sflag [#allocation3], %s238
        %s240 = sand.u32 %s159, 1
        %s241 = smul.addr %s240, 8
        %s242 = scalar_lea.vmem [#allocation2], %s241
        %p243 = scmp.lt.s32.totalorder %s20, 1
        %s244 = scalar_select %p243, %s20, 1
        %s245 = smul.addr %s244, 8
        %s246 = scalar_lea.vmem %s0, %s245
        %v247 = vld [vmem:[%s1] sm:$0x3]
        %v248 = vadd.s32 %v247, 4294967294
        %vm249 = vcmp.ge.s32.totalorder %v248, 0
        %vm250 = vcmp.lt.s32.totalorder %v248, 8
        %vm251 = vmand %vm249, %vm250
        %v252 = vadd.s32 %v247, 4294967295
        %vm253 = vcmp.ge.s32.totalorder %v252, 0
        %vm254 = vcmp.lt.s32.totalorder %v252, 8
        %vm255 = vmand %vm253, %vm254
        %vm256 = vcmp.ge.s32.totalorder %v247, 0
        %vm257 = vcmp.lt.s32.totalorder %v247, 8
        %vm258 = vmand %vm256, %vm257
        %v259 = vadd.s32 %v247, 1
        %vm260 = vcmp.ge.s32.totalorder %v259, 0
        %vm261 = vcmp.lt.s32.totalorder %v259, 8
        %vm262 = vmand %vm260, %vm261
        %v263 = vadd.s32 %v247, 2
        %vm264 = vcmp.ge.s32.totalorder %v263, 0
        %vm265 = vcmp.lt.s32.totalorder %v263, 8
        %vm266 = vmand %vm264, %vm265
        %vm267 = vcmp.lt.s32.totalorder %v248, 2
        %vm268 = vmand %vm249, %vm267
        %vm269 = vcmp.lt.s32.totalorder %v252, 2
        %vm270 = vmand %vm253, %vm269
        %vm271 = vcmp.lt.s32.totalorder %v247, 2
        %vm272 = vmand %vm256, %vm271
        %vm273 = vcmp.lt.s32.totalorder %v259, 2
        %vm274 = vmand %vm260, %vm273
        %vm275 = vcmp.lt.s32.totalorder %v263, 2
        %vm276 = vmand %vm264, %vm275
        %v277 = vsel %vm268, 1, 0
        %v278 = vrot.slane %v277, 1
        %vm279 = vcmp.ne.s32.totalorder %v278, 0
        %vm280 = vmand %vm251, %vm279
        %v281 = vsel %vm280, 1, 0
        %v282 = vcvt.s32.f32 %v281
        %v283 = vsel %vm270, 1, 0
        %v284 = vrot.slane %v283, 1
        %vm285 = vcmp.ne.s32.totalorder %v284, 0
        %vm286 = vmand %vm251, %vm285
        %v287 = vsel %vm286, 1, 0
        %v288 = vcvt.s32.f32 %v287
        %v289 = vsel %vm272, 1, 0
        %v290 = vrot.slane %v289, 1
        %vm291 = vcmp.ne.s32.totalorder %v290, 0
        %vm292 = vmand %vm251, %vm291
        %v293 = vsel %vm292, 1, 0
        %v294 = vcvt.s32.f32 %v293
        %v295 = vsel %vm274, 1, 0
        %v296 = vrot.slane %v295, 1
        %vm297 = vcmp.ne.s32.totalorder %v296, 0
        %vm298 = vmand %vm251, %vm297
        %v299 = vsel %vm298, 1, 0
        %v300 = vcvt.s32.f32 %v299
        %v301 = vsel %vm276, 1, 0
        %v302 = vrot.slane %v301, 1
        %vm303 = vcmp.ne.s32.totalorder %v302, 0
        %vm304 = vmand %vm251, %vm303
        %v305 = vsel %vm304, 1, 0
        %v306 = vcvt.s32.f32 %v305
        %vm307 = vmand %vm255, %vm279
        %v308 = vsel %vm307, 1, 0
        %v309 = vcvt.s32.f32 %v308
        %vm310 = vmand %vm255, %vm285
        %v311 = vsel %vm310, 1, 0
        %v312 = vcvt.s32.f32 %v311
        %vm313 = vmand %vm255, %vm291
        %v314 = vsel %vm313, 1, 0
        %v315 = vcvt.s32.f32 %v314
        %vm316 = vmand %vm255, %vm297
        %v317 = vsel %vm316, 1, 0
        %v318 = vcvt.s32.f32 %v317
        %vm319 = vmand %vm255, %vm303
        %v320 = vsel %vm319, 1, 0
        %v321 = vcvt.s32.f32 %v320
        %vm322 = vmand %vm258, %vm279
        %v323 = vsel %vm322, 1, 0
        %v324 = vcvt.s32.f32 %v323
        %vm325 = vmand %vm258, %vm285
        %v326 = vsel %vm325, 1, 0
        %v327 = vcvt.s32.f32 %v326
        %vm328 = vmand %vm258, %vm297
        %v329 = vsel %vm328, 1, 0
        %v330 = vcvt.s32.f32 %v329
        %vm331 = vmand %vm258, %vm303
        %v332 = vsel %vm331, 1, 0
        %v333 = vcvt.s32.f32 %v332
        %vm334 = vmand %vm262, %vm279
        %v335 = vsel %vm334, 1, 0
        %v336 = vcvt.s32.f32 %v335
        %vm337 = vmand %vm262, %vm285
        %v338 = vsel %vm337, 1, 0
        %v339 = vcvt.s32.f32 %v338
        %vm340 = vmand %vm262, %vm291
        %v341 = vsel %vm340, 1, 0
        %v342 = vcvt.s32.f32 %v341
        %vm343 = vmand %vm262, %vm297
        %v344 = vsel %vm343, 1, 0
        %v345 = vcvt.s32.f32 %v344
        %vm346 = vmand %vm262, %vm303
        %v347 = vsel %vm346, 1, 0
        %v348 = vcvt.s32.f32 %v347
        %vm349 = vmand %vm266, %vm279
        %v350 = vsel %vm349, 1, 0
        %v351 = vcvt.s32.f32 %v350
        %vm352 = vmand %vm266, %vm285
        %v353 = vsel %vm352, 1, 0
        %v354 = vcvt.s32.f32 %v353
        %vm355 = vmand %vm266, %vm291
        %v356 = vsel %vm355, 1, 0
        %v357 = vcvt.s32.f32 %v356
        %vm358 = vmand %vm266, %vm297
        %v359 = vsel %vm358, 1, 0
        %v360 = vcvt.s32.f32 %v359
        %vm361 = vmand %vm266, %vm303
        %v362 = vsel %vm361, 1, 0
        %v363 = vcvt.s32.f32 %v362
        %v364 = vld [vmem:[%s246] sm:$0xff]
        %365 = vrot.lane.b32.xlu0 %v364, 6
        %v366 = vpop.permute.xlu0 %365
        %v367 = vlaneseq
        %v368 = vshrl.u32 %v367, 7
        %v369 = vsub.s32 0, %v368
        %v370 = vrot.slane %v282, %v369
        %v371 = vmul.f32 %v366, %v370
        %v372 = vld [vmem:[%s2] sm:$0xff]
        %v373 = vld [vmem:[%s2 + $0x8] sm:$0xff]
        %374 = vrot.lane.b32.xlu0 %v364, 5
        %v375 = vpop.permute.xlu0 %374
        %v376 = vlaneseq
        %v377 = vshrl.u32 %v376, 7
        %v378 = vsub.s32 0, %v377
        %v379 = vrot.slane %v288, %v378
        %v380 = vmul.f32 %v375, %v379
        %s381 = scalar_lea.vmem %s2, 16
        %v382 = vld [vmem:[%s381] sm:$0xff]
        %v383 = vld [vmem:[%s381 + $0x8] sm:$0xff]
        %vm384 = vcmask 64512
        %v386 = vsel %vm384, %v382, 0
        %v389 = vsel %vm384, %v383, 0
        %391 = vmatprep.subr.mxu0 0.0
        %392 = vmatpush1.msra.mxu0 %v380
        %393 = vmatprep.subr.mxu0 0.0
        %394 = vmatpush1.msra.mxu0 0.0
        %395 = vmatprep.subr.mxu0 0.0
        %396 = vmatpush1.msra.mxu0 0.0
        %397 = vmatprep.subr.mxu0 0.0
        %398 = vmatpush1.msra.mxu0 0.0
        %399 = vmatprep.subr.mxu0 0.0
        %400 = vmatpush1.msra.mxu0 0.0
        %401 = vmatprep.subr.mxu0 0.0
        %402 = vmatpush1.msra.mxu0 0.0
        %403 = vmatprep.subr.mxu0 0.0
        %404 = vmatpush1.msra.mxu0 0.0
        %405 = vmatprep.subr.mxu0 0.0
        %406 = vmatpush1.msra.mxu0 0.0
        %407 = vmatprep.subr.mxu0 0.0
        %408 = vmatpush1.msra.mxu0 0.0
        %409 = vmatprep.subr.mxu0 0.0
        %410 = vmatpush1.msra.mxu0 0.0
        %411 = vmatprep.subr.mxu0 0.0
        %412 = vmatpush1.msra.mxu0 0.0
        %413 = vmatprep.subr.mxu0 0.0
        %414 = vmatpush1.msra.mxu0 0.0
        %415 = vmatprep.subr.mxu0 0.0
        %416 = vmatpush1.msra.mxu0 0.0
        %417 = vmatprep.subr.mxu0 0.0
        %418 = vmatpush1.msra.mxu0 0.0
        %419 = vmatprep.subr.mxu0 0.0
        %420 = vmatpush1.msra.mxu0 0.0
        %421 = vmatprep.subr.mxu0 0.0
        %422 = vmatpush1.msra.mxu0 0.0
        %423 = vmatprep.subr.mxu0 0.0
        %424 = vmatpush1.msra.mxu0 0.0
        %425 = vmatprep.subr.mxu0 0.0
        %426 = vmatpush1.msra.mxu0 0.0
        %427 = vmatprep.subr.mxu0 0.0
        %428 = vmatpush1.msra.mxu0 0.0
        %429 = vmatprep.subr.mxu0 0.0
        %430 = vmatpush1.msra.mxu0 0.0
        %431 = vmatprep.subr.mxu0 0.0
        %432 = vmatpush1.msra.mxu0 0.0
        %433 = vmatprep.subr.mxu0 0.0
        %434 = vmatpush1.msra.mxu0 0.0
        %435 = vmatprep.subr.mxu0 0.0
        %436 = vmatpush1.msra.mxu0 0.0
        %437 = vmatprep.subr.mxu0 0.0
        %438 = vmatpush1.msra.mxu0 0.0
        %439 = vmatprep.subr.mxu0 0.0
        %440 = vmatpush1.msra.mxu0 0.0
        %441 = vmatprep.subr.mxu0 0.0
        %442 = vmatpush1.msra.mxu0 0.0
        %443 = vmatprep.subr.mxu0 0.0
        %444 = vmatpush1.msra.mxu0 0.0
        %445 = vmatprep.subr.mxu0 0.0
        %446 = vmatpush1.msra.mxu0 0.0
        %447 = vmatprep.subr.mxu0 0.0
        %448 = vmatpush1.msra.mxu0 0.0
        %449 = vmatprep.subr.mxu0 0.0
        %450 = vmatpush1.msra.mxu0 0.0
        %451 = vmatprep.subr.mxu0 0.0
        %452 = vmatpush1.msra.mxu0 0.0
        %453 = vmatprep.subr.mxu0 0.0
        %454 = vmatpush1.msra.mxu0 0.0
        %455 = vmatprep.mubr.f32.mxu0 0.0
        %456 = vmatmul.mubr.f32.gmra.mrb[0].mxu0 %v386
        %v457 = vpop.f32.mrb[0].mxu0
        %v458 = vadd.f32 0.0, %v457
        %v459 = vpop.f32.mrb[0].mxu0
        %460 = vmatprep.mubr.f32.mxu0 0.0
        %461 = vmatmul.mubr.f32.gmra.mrb[0].mxu0 %v389
        %v462 = vpop.f32.mrb[0].mxu0
        %v463 = vadd.f32 0.0, %v462
        %v464 = vpop.f32.mrb[0].mxu0
        %465 = vdwg.mxu0
        %v467 = vsel %vm384, %v372, 0
        %v470 = vsel %vm384, %v373, 0
        %472 = vmatprep.subr.mxu0 0.0
        %473 = vmatpush1.msra.mxu0 %v371
        %474 = vmatprep.subr.mxu0 0.0
        %475 = vmatpush1.msra.mxu0 0.0
        %476 = vmatprep.subr.mxu0 0.0
        %477 = vmatpush1.msra.mxu0 0.0
        %478 = vmatprep.subr.mxu0 0.0
        %479 = vmatpush1.msra.mxu0 0.0
        %480 = vmatprep.subr.mxu0 0.0
        %481 = vmatpush1.msra.mxu0 0.0
        %482 = vmatprep.subr.mxu0 0.0
        %483 = vmatpush1.msra.mxu0 0.0
        %484 = vmatprep.subr.mxu0 0.0
        %485 = vmatpush1.msra.mxu0 0.0
        %486 = vmatprep.subr.mxu0 0.0
        %487 = vmatpush1.msra.mxu0 0.0
        %488 = vmatprep.subr.mxu0 0.0
        %489 = vmatpush1.msra.mxu0 0.0
        %490 = vmatprep.subr.mxu0 0.0
        %491 = vmatpush1.msra.mxu0 0.0
        %492 = vmatprep.subr.mxu0 0.0
        %493 = vmatpush1.msra.mxu0 0.0
        %494 = vmatprep.subr.mxu0 0.0
        %495 = vmatpush1.msra.mxu0 0.0
        %496 = vmatprep.subr.mxu0 0.0
        %497 = vmatpush1.msra.mxu0 0.0
        %498 = vmatprep.subr.mxu0 0.0
        %499 = vmatpush1.msra.mxu0 0.0
        %500 = vmatprep.subr.mxu0 0.0
        %501 = vmatpush1.msra.mxu0 0.0
        %502 = vmatprep.subr.mxu0 0.0
        %503 = vmatpush1.msra.mxu0 0.0
        %504 = vmatprep.subr.mxu0 0.0
        %505 = vmatpush1.msra.mxu0 0.0
        %506 = vmatprep.subr.mxu0 0.0
        %507 = vmatpush1.msra.mxu0 0.0
        %508 = vmatprep.subr.mxu0 0.0
        %509 = vmatpush1.msra.mxu0 0.0
        %510 = vmatprep.subr.mxu0 0.0
        %511 = vmatpush1.msra.mxu0 0.0
        %512 = vmatprep.subr.mxu0 0.0
        %513 = vmatpush1.msra.mxu0 0.0
        %514 = vmatprep.subr.mxu0 0.0
        %515 = vmatpush1.msra.mxu0 0.0
        %516 = vmatprep.subr.mxu0 0.0
        %517 = vmatpush1.msra.mxu0 0.0
        %518 = vmatprep.subr.mxu0 0.0
        %519 = vmatpush1.msra.mxu0 0.0
        %520 = vmatprep.subr.mxu0 0.0
        %521 = vmatpush1.msra.mxu0 0.0
        %522 = vmatprep.subr.mxu0 0.0
        %523 = vmatpush1.msra.mxu0 0.0
        %524 = vmatprep.subr.mxu0 0.0
        %525 = vmatpush1.msra.mxu0 0.0
        %526 = vmatprep.subr.mxu0 0.0
        %527 = vmatpush1.msra.mxu0 0.0
        %528 = vmatprep.subr.mxu0 0.0
        %529 = vmatpush1.msra.mxu0 0.0
        %530 = vmatprep.subr.mxu0 0.0
        %531 = vmatpush1.msra.mxu0 0.0
        %532 = vmatprep.subr.mxu0 0.0
        %533 = vmatpush1.msra.mxu0 0.0
        %534 = vmatprep.subr.mxu0 0.0
        %535 = vmatpush1.msra.mxu0 0.0
        %536 = vmatprep.mubr.f32.mxu0 0.0
        %537 = vmatmul.mubr.f32.gmra.mrb[0].mxu0 %v467
        %v538 = vpop.f32.mrb[0].mxu0
        %v539 = vadd.f32 %v458, %v538
        %v540 = vpop.f32.mrb[0].mxu0
        %541 = vmatprep.mubr.f32.mxu0 0.0
        %542 = vmatmul.mubr.f32.gmra.mrb[0].mxu0 %v470
        %v543 = vpop.f32.mrb[0].mxu0
        %v544 = vadd.f32 %v463, %v543
        %v545 = vpop.f32.mrb[0].mxu0
        %546 = vdwg.mxu0
        %547 = vrot.lane.b32.xlu0 %v364, 4
        %v548 = vpop.permute.xlu0 %547
        %v549 = vlaneseq
        %v550 = vshrl.u32 %v549, 7
        %v551 = vsub.s32 0, %v550
        %v552 = vrot.slane %v294, %v551
        %v553 = vmul.f32 %v548, %v552
        %s554 = scalar_lea.vmem %s2, 32
        %v555 = vld [vmem:[%s554] sm:$0xff]
        %v556 = vld [vmem:[%s554 + $0x8] sm:$0xff]
        %v558 = vsel %vm384, %v555, 0
        %v561 = vsel %vm384, %v556, 0
        %563 = vmatprep.subr.mxu0 0.0
        %564 = vmatpush1.msra.mxu0 %v553
        %565 = vmatprep.subr.mxu0 0.0
        %566 = vmatpush1.msra.mxu0 0.0
        %567 = vmatprep.subr.mxu0 0.0
        %568 = vmatpush1.msra.mxu0 0.0
        %569 = vmatprep.subr.mxu0 0.0
        %570 = vmatpush1.msra.mxu0 0.0
        %571 = vmatprep.subr.mxu0 0.0
        %572 = vmatpush1.msra.mxu0 0.0
        %573 = vmatprep.subr.mxu0 0.0
        %574 = vmatpush1.msra.mxu0 0.0
        %575 = vmatprep.subr.mxu0 0.0
        %576 = vmatpush1.msra.mxu0 0.0
        %577 = vmatprep.subr.mxu0 0.0
        %578 = vmatpush1.msra.mxu0 0.0
        %579 = vmatprep.subr.mxu0 0.0
        %580 = vmatpush1.msra.mxu0 0.0
        %581 = vmatprep.subr.mxu0 0.0
        %582 = vmatpush1.msra.mxu0 0.0
        %583 = vmatprep.subr.mxu0 0.0
        %584 = vmatpush1.msra.mxu0 0.0
        %585 = vmatprep.subr.mxu0 0.0
        %586 = vmatpush1.msra.mxu0 0.0
        %587 = vmatprep.subr.mxu0 0.0
        %588 = vmatpush1.msra.mxu0 0.0
        %589 = vmatprep.subr.mxu0 0.0
        %590 = vmatpush1.msra.mxu0 0.0
        %591 = vmatprep.subr.mxu0 0.0
        %592 = vmatpush1.msra.mxu0 0.0
        %593 = vmatprep.subr.mxu0 0.0
        %594 = vmatpush1.msra.mxu0 0.0
        %595 = vmatprep.subr.mxu0 0.0
        %596 = vmatpush1.msra.mxu0 0.0
        %597 = vmatprep.subr.mxu0 0.0
        %598 = vmatpush1.msra.mxu0 0.0
        %599 = vmatprep.subr.mxu0 0.0
        %600 = vmatpush1.msra.mxu0 0.0
        %601 = vmatprep.subr.mxu0 0.0
        %602 = vmatpush1.msra.mxu0 0.0
        %603 = vmatprep.subr.mxu0 0.0
        %604 = vmatpush1.msra.mxu0 0.0
        %605 = vmatprep.subr.mxu0 0.0
        %606 = vmatpush1.msra.mxu0 0.0
        %607 = vmatprep.subr.mxu0 0.0
        %608 = vmatpush1.msra.mxu0 0.0
        %609 = vmatprep.subr.mxu0 0.0
        %610 = vmatpush1.msra.mxu0 0.0
        %611 = vmatprep.subr.mxu0 0.0
        %612 = vmatpush1.msra.mxu0 0.0
        %613 = vmatprep.subr.mxu0 0.0
        %614 = vmatpush1.msra.mxu0 0.0
        %615 = vmatprep.subr.mxu0 0.0
        %616 = vmatpush1.msra.mxu0 0.0
        %617 = vmatprep.subr.mxu0 0.0
        %618 = vmatpush1.msra.mxu0 0.0
        %619 = vmatprep.subr.mxu0 0.0
        %620 = vmatpush1.msra.mxu0 0.0
        %621 = vmatprep.subr.mxu0 0.0
        %622 = vmatpush1.msra.mxu0 0.0
        %623 = vmatprep.subr.mxu0 0.0
        %624 = vmatpush1.msra.mxu0 0.0
        %625 = vmatprep.subr.mxu0 0.0
        %626 = vmatpush1.msra.mxu0 0.0
        %627 = vmatprep.mubr.f32.mxu0 0.0
        %628 = vmatmul.mubr.f32.gmra.mrb[0].mxu0 %v558
        %v629 = vpop.f32.mrb[0].mxu0
        %v630 = vadd.f32 0.0, %v629
        %v631 = vpop.f32.mrb[0].mxu0
        %632 = vmatprep.mubr.f32.mxu0 0.0
        %633 = vmatmul.mubr.f32.gmra.mrb[0].mxu0 %v561
        %v634 = vpop.f32.mrb[0].mxu0
        %v635 = vadd.f32 0.0, %v634
        %v636 = vpop.f32.mrb[0].mxu0
        %637 = vdwg.mxu0
        %v638 = vadd.f32 %v539, %v630
        %v639 = vadd.f32 %v544, %v635
        %640 = vrot.lane.b32.xlu0 %v364, 3
        %v641 = vpop.permute.xlu0 %640
        %v642 = vlaneseq
        %v643 = vshrl.u32 %v642, 7
        %v644 = vsub.s32 0, %v643
        %v645 = vrot.slane %v300, %v644
        %v646 = vmul.f32 %v641, %v645
        %s647 = scalar_lea.vmem %s2, 48
        %v648 = vld [vmem:[%s647] sm:$0xff]
        %v649 = vld [vmem:[%s647 + $0x8] sm:$0xff]
        %v651 = vsel %vm384, %v648, 0
        %v654 = vsel %vm384, %v649, 0
        %656 = vmatprep.subr.mxu0 0.0
        %657 = vmatpush1.msra.mxu0 %v646
        %658 = vmatprep.subr.mxu0 0.0
        %659 = vmatpush1.msra.mxu0 0.0
        %660 = vmatprep.subr.mxu0 0.0
        %661 = vmatpush1.msra.mxu0 0.0
        %662 = vmatprep.subr.mxu0 0.0
        %663 = vmatpush1.msra.mxu0 0.0
        %664 = vmatprep.subr.mxu0 0.0
        %665 = vmatpush1.msra.mxu0 0.0
        %666 = vmatprep.subr.mxu0 0.0
        %667 = vmatpush1.msra.mxu0 0.0
        %668 = vmatprep.subr.mxu0 0.0
        %669 = vmatpush1.msra.mxu0 0.0
        %670 = vmatprep.subr.mxu0 0.0
        %671 = vmatpush1.msra.mxu0 0.0
        %672 = vmatprep.subr.mxu0 0.0
        %673 = vmatpush1.msra.mxu0 0.0
        %674 = vmatprep.subr.mxu0 0.0
        %675 = vmatpush1.msra.mxu0 0.0
        %676 = vmatprep.subr.mxu0 0.0
        %677 = vmatpush1.msra.mxu0 0.0
        %678 = vmatprep.subr.mxu0 0.0
        %679 = vmatpush1.msra.mxu0 0.0
        %680 = vmatprep.subr.mxu0 0.0
        %681 = vmatpush1.msra.mxu0 0.0
        %682 = vmatprep.subr.mxu0 0.0
        %683 = vmatpush1.msra.mxu0 0.0
        %684 = vmatprep.subr.mxu0 0.0
        %685 = vmatpush1.msra.mxu0 0.0
        %686 = vmatprep.subr.mxu0 0.0
        %687 = vmatpush1.msra.mxu0 0.0
        %688 = vmatprep.subr.mxu0 0.0
        %689 = vmatpush1.msra.mxu0 0.0
        %690 = vmatprep.subr.mxu0 0.0
        %691 = vmatpush1.msra.mxu0 0.0
        %692 = vmatprep.subr.mxu0 0.0
        %693 = vmatpush1.msra.mxu0 0.0
        %694 = vmatprep.subr.mxu0 0.0
        %695 = vmatpush1.msra.mxu0 0.0
        %696 = vmatprep.subr.mxu0 0.0
        %697 = vmatpush1.msra.mxu0 0.0
        %698 = vmatprep.subr.mxu0 0.0
        %699 = vmatpush1.msra.mxu0 0.0
        %700 = vmatprep.subr.mxu0 0.0
        %701 = vmatpush1.msra.mxu0 0.0
        %702 = vmatprep.subr.mxu0 0.0
        %703 = vmatpush1.msra.mxu0 0.0
        %704 = vmatprep.subr.mxu0 0.0
        %705 = vmatpush1.msra.mxu0 0.0
        %706 = vmatprep.subr.mxu0 0.0
        %707 = vmatpush1.msra.mxu0 0.0
        %708 = vmatprep.subr.mxu0 0.0
        %709 = vmatpush1.msra.mxu0 0.0
        %710 = vmatprep.subr.mxu0 0.0
        %711 = vmatpush1.msra.mxu0 0.0
        %712 = vmatprep.subr.mxu0 0.0
        %713 = vmatpush1.msra.mxu0 0.0
        %714 = vmatprep.subr.mxu0 0.0
        %715 = vmatpush1.msra.mxu0 0.0
        %716 = vmatprep.subr.mxu0 0.0
        %717 = vmatpush1.msra.mxu0 0.0
        %718 = vmatprep.subr.mxu0 0.0
        %719 = vmatpush1.msra.mxu0 0.0
        %720 = vmatprep.mubr.f32.mxu0 0.0
        %721 = vmatmul.mubr.f32.gmra.mrb[0].mxu0 %v651
        %v722 = vpop.f32.mrb[0].mxu0
        %v723 = vadd.f32 0.0, %v722
        %v724 = vpop.f32.mrb[0].mxu0
        %725 = vmatprep.mubr.f32.mxu0 0.0
        %726 = vmatmul.mubr.f32.gmra.mrb[0].mxu0 %v654
        %v727 = vpop.f32.mrb[0].mxu0
        %v728 = vadd.f32 0.0, %v727
        %v729 = vpop.f32.mrb[0].mxu0
        %730 = vdwg.mxu0
        %v731 = vadd.f32 %v638, %v723
        %v732 = vadd.f32 %v639, %v728
        %733 = vrot.lane.b32.xlu0 %v364, 2
        %v734 = vpop.permute.xlu0 %733
        %v735 = vlaneseq
        %v736 = vshrl.u32 %v735, 7
        %v737 = vsub.s32 0, %v736
        %v738 = vrot.slane %v306, %v737
        %v739 = vmul.f32 %v734, %v738
        %s740 = scalar_lea.vmem %s2, 64
        %v741 = vld [vmem:[%s740] sm:$0xff]
        %v742 = vld [vmem:[%s740 + $0x8] sm:$0xff]
        %v744 = vsel %vm384, %v741, 0
        %v747 = vsel %vm384, %v742, 0
        %749 = vmatprep.subr.mxu0 0.0
        %750 = vmatpush1.msra.mxu0 %v739
        %751 = vmatprep.subr.mxu0 0.0
        %752 = vmatpush1.msra.mxu0 0.0
        %753 = vmatprep.subr.mxu0 0.0
        %754 = vmatpush1.msra.mxu0 0.0
        %755 = vmatprep.subr.mxu0 0.0
        %756 = vmatpush1.msra.mxu0 0.0
        %757 = vmatprep.subr.mxu0 0.0
        %758 = vmatpush1.msra.mxu0 0.0
        %759 = vmatprep.subr.mxu0 0.0
        %760 = vmatpush1.msra.mxu0 0.0
        %761 = vmatprep.subr.mxu0 0.0
        %762 = vmatpush1.msra.mxu0 0.0
        %763 = vmatprep.subr.mxu0 0.0
        %764 = vmatpush1.msra.mxu0 0.0
        %765 = vmatprep.subr.mxu0 0.0
        %766 = vmatpush1.msra.mxu0 0.0
        %767 = vmatprep.subr.mxu0 0.0
        %768 = vmatpush1.msra.mxu0 0.0
        %769 = vmatprep.subr.mxu0 0.0
        %770 = vmatpush1.msra.mxu0 0.0
        %771 = vmatprep.subr.mxu0 0.0
        %772 = vmatpush1.msra.mxu0 0.0
        %773 = vmatprep.subr.mxu0 0.0
        %774 = vmatpush1.msra.mxu0 0.0
        %775 = vmatprep.subr.mxu0 0.0
        %776 = vmatpush1.msra.mxu0 0.0
        %777 = vmatprep.subr.mxu0 0.0
        %778 = vmatpush1.msra.mxu0 0.0
        %779 = vmatprep.subr.mxu0 0.0
        %780 = vmatpush1.msra.mxu0 0.0
        %781 = vmatprep.subr.mxu0 0.0
        %782 = vmatpush1.msra.mxu0 0.0
        %783 = vmatprep.subr.mxu0 0.0
        %784 = vmatpush1.msra.mxu0 0.0
        %785 = vmatprep.subr.mxu0 0.0
        %786 = vmatpush1.msra.mxu0 0.0
        %787 = vmatprep.subr.mxu0 0.0
        %788 = vmatpush1.msra.mxu0 0.0
        %789 = vmatprep.subr.mxu0 0.0
        %790 = vmatpush1.msra.mxu0 0.0
        %791 = vmatprep.subr.mxu0 0.0
        %792 = vmatpush1.msra.mxu0 0.0
        %793 = vmatprep.subr.mxu0 0.0
        %794 = vmatpush1.msra.mxu0 0.0
        %795 = vmatprep.subr.mxu0 0.0
        %796 = vmatpush1.msra.mxu0 0.0
        %797 = vmatprep.subr.mxu0 0.0
        %798 = vmatpush1.msra.mxu0 0.0
        %799 = vmatprep.subr.mxu0 0.0
        %800 = vmatpush1.msra.mxu0 0.0
        %801 = vmatprep.subr.mxu0 0.0
        %802 = vmatpush1.msra.mxu0 0.0
        %803 = vmatprep.subr.mxu0 0.0
        %804 = vmatpush1.msra.mxu0 0.0
        %805 = vmatprep.subr.mxu0 0.0
        %806 = vmatpush1.msra.mxu0 0.0
        %807 = vmatprep.subr.mxu0 0.0
        %808 = vmatpush1.msra.mxu0 0.0
        %809 = vmatprep.subr.mxu0 0.0
        %810 = vmatpush1.msra.mxu0 0.0
        %811 = vmatprep.subr.mxu0 0.0
        %812 = vmatpush1.msra.mxu0 0.0
        %813 = vmatprep.mubr.f32.mxu0 0.0
        %814 = vmatmul.mubr.f32.gmra.mrb[0].mxu0 %v744
        %v815 = vpop.f32.mrb[0].mxu0
        %v816 = vadd.f32 0.0, %v815
        %v817 = vpop.f32.mrb[0].mxu0
        %818 = vmatprep.mubr.f32.mxu0 0.0
        %819 = vmatmul.mubr.f32.gmra.mrb[0].mxu0 %v747
        %v820 = vpop.f32.mrb[0].mxu0
        %v821 = vadd.f32 0.0, %v820
        %v822 = vpop.f32.mrb[0].mxu0
        %823 = vdwg.mxu0
        %v824 = vadd.f32 %v731, %v816
        %v825 = vadd.f32 %v732, %v821
        %v826 = vlaneseq
        %v827 = vshrl.u32 %v826, 7
        %v828 = vsub.s32 0, %v827
        %v829 = vrot.slane %v309, %v828
        %v830 = vmul.f32 %v548, %v829
        %s831 = scalar_lea.vmem %s2, 80
        %v832 = vld [vmem:[%s831] sm:$0xff]
        %v833 = vld [vmem:[%s831 + $0x8] sm:$0xff]
        %v835 = vsel %vm384, %v832, 0
        %v838 = vsel %vm384, %v833, 0
        %840 = vmatprep.subr.mxu0 0.0
        %841 = vmatpush1.msra.mxu0 %v830
        %842 = vmatprep.subr.mxu0 0.0
        %843 = vmatpush1.msra.mxu0 0.0
        %844 = vmatprep.subr.mxu0 0.0
        %845 = vmatpush1.msra.mxu0 0.0
        %846 = vmatprep.subr.mxu0 0.0
        %847 = vmatpush1.msra.mxu0 0.0
        %848 = vmatprep.subr.mxu0 0.0
        %849 = vmatpush1.msra.mxu0 0.0
        %850 = vmatprep.subr.mxu0 0.0
        %851 = vmatpush1.msra.mxu0 0.0
        %852 = vmatprep.subr.mxu0 0.0
        %853 = vmatpush1.msra.mxu0 0.0
        %854 = vmatprep.subr.mxu0 0.0
        %855 = vmatpush1.msra.mxu0 0.0
        %856 = vmatprep.subr.mxu0 0.0
        %857 = vmatpush1.msra.mxu0 0.0
        %858 = vmatprep.subr.mxu0 0.0
        %859 = vmatpush1.msra.mxu0 0.0
        %860 = vmatprep.subr.mxu0 0.0
        %861 = vmatpush1.msra.mxu0 0.0
        %862 = vmatprep.subr.mxu0 0.0
        %863 = vmatpush1.msra.mxu0 0.0
        %864 = vmatprep.subr.mxu0 0.0
        %865 = vmatpush1.msra.mxu0 0.0
        %866 = vmatprep.subr.mxu0 0.0
        %867 = vmatpush1.msra.mxu0 0.0
        %868 = vmatprep.subr.mxu0 0.0
        %869 = vmatpush1.msra.mxu0 0.0
        %870 = vmatprep.subr.mxu0 0.0
        %871 = vmatpush1.msra.mxu0 0.0
        %872 = vmatprep.subr.mxu0 0.0
        %873 = vmatpush1.msra.mxu0 0.0
        %874 = vmatprep.subr.mxu0 0.0
        %875 = vmatpush1.msra.mxu0 0.0
        %876 = vmatprep.subr.mxu0 0.0
        %877 = vmatpush1.msra.mxu0 0.0
        %878 = vmatprep.subr.mxu0 0.0
        %879 = vmatpush1.msra.mxu0 0.0
        %880 = vmatprep.subr.mxu0 0.0
        %881 = vmatpush1.msra.mxu0 0.0
        %882 = vmatprep.subr.mxu0 0.0
        %883 = vmatpush1.msra.mxu0 0.0
        %884 = vmatprep.subr.mxu0 0.0
        %885 = vmatpush1.msra.mxu0 0.0
        %886 = vmatprep.subr.mxu0 0.0
        %887 = vmatpush1.msra.mxu0 0.0
        %888 = vmatprep.subr.mxu0 0.0
        %889 = vmatpush1.msra.mxu0 0.0
        %890 = vmatprep.subr.mxu0 0.0
        %891 = vmatpush1.msra.mxu0 0.0
        %892 = vmatprep.subr.mxu0 0.0
        %893 = vmatpush1.msra.mxu0 0.0
        %894 = vmatprep.subr.mxu0 0.0
        %895 = vmatpush1.msra.mxu0 0.0
        %896 = vmatprep.subr.mxu0 0.0
        %897 = vmatpush1.msra.mxu0 0.0
        %898 = vmatprep.subr.mxu0 0.0
        %899 = vmatpush1.msra.mxu0 0.0
        %900 = vmatprep.subr.mxu0 0.0
        %901 = vmatpush1.msra.mxu0 0.0
        %902 = vmatprep.subr.mxu0 0.0
        %903 = vmatpush1.msra.mxu0 0.0
        %904 = vmatprep.mubr.f32.mxu0 0.0
        %905 = vmatmul.mubr.f32.gmra.mrb[0].mxu0 %v835
        %v906 = vpop.f32.mrb[0].mxu0
        %v907 = vadd.f32 0.0, %v906
        %v908 = vpop.f32.mrb[0].mxu0
        %909 = vmatprep.mubr.f32.mxu0 0.0
        %910 = vmatmul.mubr.f32.gmra.mrb[0].mxu0 %v838
        %v911 = vpop.f32.mrb[0].mxu0
        %v912 = vadd.f32 0.0, %v911
        %v913 = vpop.f32.mrb[0].mxu0
        %914 = vdwg.mxu0
        %v915 = vadd.f32 %v824, %v907
        %v916 = vadd.f32 %v825, %v912
        %v917 = vlaneseq
        %v918 = vshrl.u32 %v917, 7
        %v919 = vsub.s32 0, %v918
        %v920 = vrot.slane %v312, %v919
        %v921 = vmul.f32 %v641, %v920
        %s922 = scalar_lea.vmem %s2, 96
        %v923 = vld [vmem:[%s922] sm:$0xff]
        %v924 = vld [vmem:[%s922 + $0x8] sm:$0xff]
        %v926 = vsel %vm384, %v923, 0
        %v929 = vsel %vm384, %v924, 0
        %931 = vmatprep.subr.mxu0 0.0
        %932 = vmatpush1.msra.mxu0 %v921
        %933 = vmatprep.subr.mxu0 0.0
        %934 = vmatpush1.msra.mxu0 0.0
        %935 = vmatprep.subr.mxu0 0.0
        %936 = vmatpush1.msra.mxu0 0.0
        %937 = vmatprep.subr.mxu0 0.0
        %938 = vmatpush1.msra.mxu0 0.0
        %939 = vmatprep.subr.mxu0 0.0
        %940 = vmatpush1.msra.mxu0 0.0
        %941 = vmatprep.subr.mxu0 0.0
        %942 = vmatpush1.msra.mxu0 0.0
        %943 = vmatprep.subr.mxu0 0.0
        %944 = vmatpush1.msra.mxu0 0.0
        %945 = vmatprep.subr.mxu0 0.0
        %946 = vmatpush1.msra.mxu0 0.0
        %947 = vmatprep.subr.mxu0 0.0
        %948 = vmatpush1.msra.mxu0 0.0
        %949 = vmatprep.subr.mxu0 0.0
        %950 = vmatpush1.msra.mxu0 0.0
        %951 = vmatprep.subr.mxu0 0.0
        %952 = vmatpush1.msra.mxu0 0.0
        %953 = vmatprep.subr.mxu0 0.0
        %954 = vmatpush1.msra.mxu0 0.0
        %955 = vmatprep.subr.mxu0 0.0
        %956 = vmatpush1.msra.mxu0 0.0
        %957 = vmatprep.subr.mxu0 0.0
        %958 = vmatpush1.msra.mxu0 0.0
        %959 = vmatprep.subr.mxu0 0.0
        %960 = vmatpush1.msra.mxu0 0.0
        %961 = vmatprep.subr.mxu0 0.0
        %962 = vmatpush1.msra.mxu0 0.0
        %963 = vmatprep.subr.mxu0 0.0
        %964 = vmatpush1.msra.mxu0 0.0
        %965 = vmatprep.subr.mxu0 0.0
        %966 = vmatpush1.msra.mxu0 0.0
        %967 = vmatprep.subr.mxu0 0.0
        %968 = vmatpush1.msra.mxu0 0.0
        %969 = vmatprep.subr.mxu0 0.0
        %970 = vmatpush1.msra.mxu0 0.0
        %971 = vmatprep.subr.mxu0 0.0
        %972 = vmatpush1.msra.mxu0 0.0
        %973 = vmatprep.subr.mxu0 0.0
        %974 = vmatpush1.msra.mxu0 0.0
        %975 = vmatprep.subr.mxu0 0.0
        %976 = vmatpush1.msra.mxu0 0.0
        %977 = vmatprep.subr.mxu0 0.0
        %978 = vmatpush1.msra.mxu0 0.0
        %979 = vmatprep.subr.mxu0 0.0
        %980 = vmatpush1.msra.mxu0 0.0
        %981 = vmatprep.subr.mxu0 0.0
        %982 = vmatpush1.msra.mxu0 0.0
        %983 = vmatprep.subr.mxu0 0.0
        %984 = vmatpush1.msra.mxu0 0.0
        %985 = vmatprep.subr.mxu0 0.0
        %986 = vmatpush1.msra.mxu0 0.0
        %987 = vmatprep.subr.mxu0 0.0
        %988 = vmatpush1.msra.mxu0 0.0
        %989 = vmatprep.subr.mxu0 0.0
        %990 = vmatpush1.msra.mxu0 0.0
        %991 = vmatprep.subr.mxu0 0.0
        %992 = vmatpush1.msra.mxu0 0.0
        %993 = vmatprep.subr.mxu0 0.0
        %994 = vmatpush1.msra.mxu0 0.0
        %995 = vmatprep.mubr.f32.mxu0 0.0
        %996 = vmatmul.mubr.f32.gmra.mrb[0].mxu0 %v926
        %v997 = vpop.f32.mrb[0].mxu0
        %v998 = vadd.f32 0.0, %v997
        %v999 = vpop.f32.mrb[0].mxu0
        %1000 = vmatprep.mubr.f32.mxu0 0.0
        %1001 = vmatmul.mubr.f32.gmra.mrb[0].mxu0 %v929
        %v1002 = vpop.f32.mrb[0].mxu0
        %v1003 = vadd.f32 0.0, %v1002
        %v1004 = vpop.f32.mrb[0].mxu0
        %1005 = vdwg.mxu0
        %v1006 = vadd.f32 %v915, %v998
        %v1007 = vadd.f32 %v916, %v1003
        %v1008 = vlaneseq
        %v1009 = vshrl.u32 %v1008, 7
        %v1010 = vsub.s32 0, %v1009
        %v1011 = vrot.slane %v315, %v1010
        %v1012 = vmul.f32 %v734, %v1011
        %s1013 = scalar_lea.vmem %s2, 112
        %v1014 = vld [vmem:[%s1013] sm:$0xff]
        %v1015 = vld [vmem:[%s1013 + $0x8] sm:$0xff]
        %v1017 = vsel %vm384, %v1014, 0
        %v1020 = vsel %vm384, %v1015, 0
        %1022 = vmatprep.subr.mxu0 0.0
        %1023 = vmatpush1.msra.mxu0 %v1012
        %1024 = vmatprep.subr.mxu0 0.0
        %1025 = vmatpush1.msra.mxu0 0.0
        %1026 = vmatprep.subr.mxu0 0.0
        %1027 = vmatpush1.msra.mxu0 0.0
        %1028 = vmatprep.subr.mxu0 0.0
        %1029 = vmatpush1.msra.mxu0 0.0
        %1030 = vmatprep.subr.mxu0 0.0
        %1031 = vmatpush1.msra.mxu0 0.0
        %1032 = vmatprep.subr.mxu0 0.0
        %1033 = vmatpush1.msra.mxu0 0.0
        %1034 = vmatprep.subr.mxu0 0.0
        %1035 = vmatpush1.msra.mxu0 0.0
        %1036 = vmatprep.subr.mxu0 0.0
        %1037 = vmatpush1.msra.mxu0 0.0
        %1038 = vmatprep.subr.mxu0 0.0
        %1039 = vmatpush1.msra.mxu0 0.0
        %1040 = vmatprep.subr.mxu0 0.0
        %1041 = vmatpush1.msra.mxu0 0.0
        %1042 = vmatprep.subr.mxu0 0.0
        %1043 = vmatpush1.msra.mxu0 0.0
        %1044 = vmatprep.subr.mxu0 0.0
        %1045 = vmatpush1.msra.mxu0 0.0
        %1046 = vmatprep.subr.mxu0 0.0
        %1047 = vmatpush1.msra.mxu0 0.0
        %1048 = vmatprep.subr.mxu0 0.0
        %1049 = vmatpush1.msra.mxu0 0.0
        %1050 = vmatprep.subr.mxu0 0.0
        %1051 = vmatpush1.msra.mxu0 0.0
        %1052 = vmatprep.subr.mxu0 0.0
        %1053 = vmatpush1.msra.mxu0 0.0
        %1054 = vmatprep.subr.mxu0 0.0
        %1055 = vmatpush1.msra.mxu0 0.0
        %1056 = vmatprep.subr.mxu0 0.0
        %1057 = vmatpush1.msra.mxu0 0.0
        %1058 = vmatprep.subr.mxu0 0.0
        %1059 = vmatpush1.msra.mxu0 0.0
        %1060 = vmatprep.subr.mxu0 0.0
        %1061 = vmatpush1.msra.mxu0 0.0
        %1062 = vmatprep.subr.mxu0 0.0
        %1063 = vmatpush1.msra.mxu0 0.0
        %1064 = vmatprep.subr.mxu0 0.0
        %1065 = vmatpush1.msra.mxu0 0.0
        %1066 = vmatprep.subr.mxu0 0.0
        %1067 = vmatpush1.msra.mxu0 0.0
        %1068 = vmatprep.subr.mxu0 0.0
        %1069 = vmatpush1.msra.mxu0 0.0
        %1070 = vmatprep.subr.mxu0 0.0
        %1071 = vmatpush1.msra.mxu0 0.0
        %1072 = vmatprep.subr.mxu0 0.0
        %1073 = vmatpush1.msra.mxu0 0.0
        %1074 = vmatprep.subr.mxu0 0.0
        %1075 = vmatpush1.msra.mxu0 0.0
        %1076 = vmatprep.subr.mxu0 0.0
        %1077 = vmatpush1.msra.mxu0 0.0
        %1078 = vmatprep.subr.mxu0 0.0
        %1079 = vmatpush1.msra.mxu0 0.0
        %1080 = vmatprep.subr.mxu0 0.0
        %1081 = vmatpush1.msra.mxu0 0.0
        %1082 = vmatprep.subr.mxu0 0.0
        %1083 = vmatpush1.msra.mxu0 0.0
        %1084 = vmatprep.subr.mxu0 0.0
        %1085 = vmatpush1.msra.mxu0 0.0
        %1086 = vmatprep.mubr.f32.mxu0 0.0
        %1087 = vmatmul.mubr.f32.gmra.mrb[0].mxu0 %v1017
        %v1088 = vpop.f32.mrb[0].mxu0
        %v1089 = vadd.f32 0.0, %v1088
        %v1090 = vpop.f32.mrb[0].mxu0
        %1091 = vmatprep.mubr.f32.mxu0 0.0
        %1092 = vmatmul.mubr.f32.gmra.mrb[0].mxu0 %v1020
        %v1093 = vpop.f32.mrb[0].mxu0
        %v1094 = vadd.f32 0.0, %v1093
        %v1095 = vpop.f32.mrb[0].mxu0
        %1096 = vdwg.mxu0
        %v1097 = vadd.f32 %v1006, %v1089
        %v1098 = vadd.f32 %v1007, %v1094
        %1099 = vrot.lane.b32.xlu0 %v364, 1
        %v1100 = vpop.permute.xlu0 %1099
        %v1101 = vlaneseq
        %v1102 = vshrl.u32 %v1101, 7
        %v1103 = vsub.s32 0, %v1102
        %v1104 = vrot.slane %v318, %v1103
        %v1105 = vmul.f32 %v1100, %v1104
        %s1106 = scalar_lea.vmem %s2, 128
        %v1107 = vld [vmem:[%s1106] sm:$0xff]
        %v1108 = vld [vmem:[%s1106 + $0x8] sm:$0xff]
        %v1110 = vsel %vm384, %v1107, 0
        %v1113 = vsel %vm384, %v1108, 0
        %1115 = vmatprep.subr.mxu0 0.0
        %1116 = vmatpush1.msra.mxu0 %v1105
        %1117 = vmatprep.subr.mxu0 0.0
        %1118 = vmatpush1.msra.mxu0 0.0
        %1119 = vmatprep.subr.mxu0 0.0
        %1120 = vmatpush1.msra.mxu0 0.0
        %1121 = vmatprep.subr.mxu0 0.0
        %1122 = vmatpush1.msra.mxu0 0.0
        %1123 = vmatprep.subr.mxu0 0.0
        %1124 = vmatpush1.msra.mxu0 0.0
        %1125 = vmatprep.subr.mxu0 0.0
        %1126 = vmatpush1.msra.mxu0 0.0
        %1127 = vmatprep.subr.mxu0 0.0
        %1128 = vmatpush1.msra.mxu0 0.0
        %1129 = vmatprep.subr.mxu0 0.0
        %1130 = vmatpush1.msra.mxu0 0.0
        %1131 = vmatprep.subr.mxu0 0.0
        %1132 = vmatpush1.msra.mxu0 0.0
        %1133 = vmatprep.subr.mxu0 0.0
        %1134 = vmatpush1.msra.mxu0 0.0
        %1135 = vmatprep.subr.mxu0 0.0
        %1136 = vmatpush1.msra.mxu0 0.0
        %1137 = vmatprep.subr.mxu0 0.0
        %1138 = vmatpush1.msra.mxu0 0.0
        %1139 = vmatprep.subr.mxu0 0.0
        %1140 = vmatpush1.msra.mxu0 0.0
        %1141 = vmatprep.subr.mxu0 0.0
        %1142 = vmatpush1.msra.mxu0 0.0
        %1143 = vmatprep.subr.mxu0 0.0
        %1144 = vmatpush1.msra.mxu0 0.0
        %1145 = vmatprep.subr.mxu0 0.0
        %1146 = vmatpush1.msra.mxu0 0.0
        %1147 = vmatprep.subr.mxu0 0.0
        %1148 = vmatpush1.msra.mxu0 0.0
        %1149 = vmatprep.subr.mxu0 0.0
        %1150 = vmatpush1.msra.mxu0 0.0
        %1151 = vmatprep.subr.mxu0 0.0
        %1152 = vmatpush1.msra.mxu0 0.0
        %1153 = vmatprep.subr.mxu0 0.0
        %1154 = vmatpush1.msra.mxu0 0.0
        %1155 = vmatprep.subr.mxu0 0.0
        %1156 = vmatpush1.msra.mxu0 0.0
        %1157 = vmatprep.subr.mxu0 0.0
        %1158 = vmatpush1.msra.mxu0 0.0
        %1159 = vmatprep.subr.mxu0 0.0
        %1160 = vmatpush1.msra.mxu0 0.0
        %1161 = vmatprep.subr.mxu0 0.0
        %1162 = vmatpush1.msra.mxu0 0.0
        %1163 = vmatprep.subr.mxu0 0.0
        %1164 = vmatpush1.msra.mxu0 0.0
        %1165 = vmatprep.subr.mxu0 0.0
        %1166 = vmatpush1.msra.mxu0 0.0
        %1167 = vmatprep.subr.mxu0 0.0
        %1168 = vmatpush1.msra.mxu0 0.0
        %1169 = vmatprep.subr.mxu0 0.0
        %1170 = vmatpush1.msra.mxu0 0.0
        %1171 = vmatprep.subr.mxu0 0.0
        %1172 = vmatpush1.msra.mxu0 0.0
        %1173 = vmatprep.subr.mxu0 0.0
        %1174 = vmatpush1.msra.mxu0 0.0
        %1175 = vmatprep.subr.mxu0 0.0
        %1176 = vmatpush1.msra.mxu0 0.0
        %1177 = vmatprep.subr.mxu0 0.0
        %1178 = vmatpush1.msra.mxu0 0.0
        %1179 = vmatprep.mubr.f32.mxu0 0.0
        %1180 = vmatmul.mubr.f32.gmra.mrb[0].mxu0 %v1110
        %v1181 = vpop.f32.mrb[0].mxu0
        %v1182 = vadd.f32 0.0, %v1181
        %v1183 = vpop.f32.mrb[0].mxu0
        %1184 = vmatprep.mubr.f32.mxu0 0.0
        %1185 = vmatmul.mubr.f32.gmra.mrb[0].mxu0 %v1113
        %v1186 = vpop.f32.mrb[0].mxu0
        %v1187 = vadd.f32 0.0, %v1186
        %v1188 = vpop.f32.mrb[0].mxu0
        %1189 = vdwg.mxu0
        %v1190 = vadd.f32 %v1097, %v1182
        %v1191 = vadd.f32 %v1098, %v1187
        %v1192 = vlaneseq
        %v1193 = vshrl.u32 %v1192, 7
        %v1194 = vsub.s32 0, %v1193
        %v1195 = vrot.slane %v321, %v1194
        %v1196 = vmul.f32 %v364, %v1195
        %s1197 = scalar_lea.vmem %s2, 144
        %v1198 = vld [vmem:[%s1197] sm:$0xff]
        %v1199 = vld [vmem:[%s1197 + $0x8] sm:$0xff]
        %v1201 = vsel %vm384, %v1198, 0
        %v1204 = vsel %vm384, %v1199, 0
        %1206 = vmatprep.subr.mxu0 0.0
        %1207 = vmatpush1.msra.mxu0 %v1196
        %1208 = vmatprep.subr.mxu0 0.0
        %1209 = vmatpush1.msra.mxu0 0.0
        %1210 = vmatprep.subr.mxu0 0.0
        %1211 = vmatpush1.msra.mxu0 0.0
        %1212 = vmatprep.subr.mxu0 0.0
        %1213 = vmatpush1.msra.mxu0 0.0
        %1214 = vmatprep.subr.mxu0 0.0
        %1215 = vmatpush1.msra.mxu0 0.0
        %1216 = vmatprep.subr.mxu0 0.0
        %1217 = vmatpush1.msra.mxu0 0.0
        %1218 = vmatprep.subr.mxu0 0.0
        %1219 = vmatpush1.msra.mxu0 0.0
        %1220 = vmatprep.subr.mxu0 0.0
        %1221 = vmatpush1.msra.mxu0 0.0
        %1222 = vmatprep.subr.mxu0 0.0
        %1223 = vmatpush1.msra.mxu0 0.0
        %1224 = vmatprep.subr.mxu0 0.0
        %1225 = vmatpush1.msra.mxu0 0.0
        %1226 = vmatprep.subr.mxu0 0.0
        %1227 = vmatpush1.msra.mxu0 0.0
        %1228 = vmatprep.subr.mxu0 0.0
        %1229 = vmatpush1.msra.mxu0 0.0
        %1230 = vmatprep.subr.mxu0 0.0
        %1231 = vmatpush1.msra.mxu0 0.0
        %1232 = vmatprep.subr.mxu0 0.0
        %1233 = vmatpush1.msra.mxu0 0.0
        %1234 = vmatprep.subr.mxu0 0.0
        %1235 = vmatpush1.msra.mxu0 0.0
        %1236 = vmatprep.subr.mxu0 0.0
        %1237 = vmatpush1.msra.mxu0 0.0
        %1238 = vmatprep.subr.mxu0 0.0
        %1239 = vmatpush1.msra.mxu0 0.0
        %1240 = vmatprep.subr.mxu0 0.0
        %1241 = vmatpush1.msra.mxu0 0.0
        %1242 = vmatprep.subr.mxu0 0.0
        %1243 = vmatpush1.msra.mxu0 0.0
        %1244 = vmatprep.subr.mxu0 0.0
        %1245 = vmatpush1.msra.mxu0 0.0
        %1246 = vmatprep.subr.mxu0 0.0
        %1247 = vmatpush1.msra.mxu0 0.0
        %1248 = vmatprep.subr.mxu0 0.0
        %1249 = vmatpush1.msra.mxu0 0.0
        %1250 = vmatprep.subr.mxu0 0.0
        %1251 = vmatpush1.msra.mxu0 0.0
        %1252 = vmatprep.subr.mxu0 0.0
        %1253 = vmatpush1.msra.mxu0 0.0
        %1254 = vmatprep.subr.mxu0 0.0
        %1255 = vmatpush1.msra.mxu0 0.0
        %1256 = vmatprep.subr.mxu0 0.0
        %1257 = vmatpush1.msra.mxu0 0.0
        %1258 = vmatprep.subr.mxu0 0.0
        %1259 = vmatpush1.msra.mxu0 0.0
        %1260 = vmatprep.subr.mxu0 0.0
        %1261 = vmatpush1.msra.mxu0 0.0
        %1262 = vmatprep.subr.mxu0 0.0
        %1263 = vmatpush1.msra.mxu0 0.0
        %1264 = vmatprep.subr.mxu0 0.0
        %1265 = vmatpush1.msra.mxu0 0.0
        %1266 = vmatprep.subr.mxu0 0.0
        %1267 = vmatpush1.msra.mxu0 0.0
        %1268 = vmatprep.subr.mxu0 0.0
        %1269 = vmatpush1.msra.mxu0 0.0
        %1270 = vmatprep.mubr.f32.mxu0 0.0
        %1271 = vmatmul.mubr.f32.gmra.mrb[0].mxu0 %v1201
        %v1272 = vpop.f32.mrb[0].mxu0
        %v1273 = vadd.f32 0.0, %v1272
        %v1274 = vpop.f32.mrb[0].mxu0
        %1275 = vmatprep.mubr.f32.mxu0 0.0
        %1276 = vmatmul.mubr.f32.gmra.mrb[0].mxu0 %v1204
        %v1277 = vpop.f32.mrb[0].mxu0
        %v1278 = vadd.f32 0.0, %v1277
        %v1279 = vpop.f32.mrb[0].mxu0
        %1280 = vdwg.mxu0
        %v1281 = vadd.f32 %v1190, %v1273
        %v1282 = vadd.f32 %v1191, %v1278
        %v1283 = vlaneseq
        %v1284 = vshrl.u32 %v1283, 7
        %v1285 = vsub.s32 0, %v1284
        %v1286 = vrot.slane %v324, %v1285
        %v1287 = vmul.f32 %v734, %v1286
        %s1288 = scalar_lea.vmem %s2, 160
        %v1289 = vld [vmem:[%s1288] sm:$0xff]
        %v1290 = vld [vmem:[%s1288 + $0x8] sm:$0xff]
        %v1292 = vsel %vm384, %v1289, 0
        %v1295 = vsel %vm384, %v1290, 0
        %1297 = vmatprep.subr.mxu0 0.0
        %1298 = vmatpush1.msra.mxu0 %v1287
        %1299 = vmatprep.subr.mxu0 0.0
        %1300 = vmatpush1.msra.mxu0 0.0
        %1301 = vmatprep.subr.mxu0 0.0
        %1302 = vmatpush1.msra.mxu0 0.0
        %1303 = vmatprep.subr.mxu0 0.0
        %1304 = vmatpush1.msra.mxu0 0.0
        %1305 = vmatprep.subr.mxu0 0.0
        %1306 = vmatpush1.msra.mxu0 0.0
        %1307 = vmatprep.subr.mxu0 0.0
        %1308 = vmatpush1.msra.mxu0 0.0
        %1309 = vmatprep.subr.mxu0 0.0
        %1310 = vmatpush1.msra.mxu0 0.0
        %1311 = vmatprep.subr.mxu0 0.0
        %1312 = vmatpush1.msra.mxu0 0.0
        %1313 = vmatprep.subr.mxu0 0.0
        %1314 = vmatpush1.msra.mxu0 0.0
        %1315 = vmatprep.subr.mxu0 0.0
        %1316 = vmatpush1.msra.mxu0 0.0
        %1317 = vmatprep.subr.mxu0 0.0
        %1318 = vmatpush1.msra.mxu0 0.0
        %1319 = vmatprep.subr.mxu0 0.0
        %1320 = vmatpush1.msra.mxu0 0.0
        %1321 = vmatprep.subr.mxu0 0.0
        %1322 = vmatpush1.msra.mxu0 0.0
        %1323 = vmatprep.subr.mxu0 0.0
        %1324 = vmatpush1.msra.mxu0 0.0
        %1325 = vmatprep.subr.mxu0 0.0
        %1326 = vmatpush1.msra.mxu0 0.0
        %1327 = vmatprep.subr.mxu0 0.0
        %1328 = vmatpush1.msra.mxu0 0.0
        %1329 = vmatprep.subr.mxu0 0.0
        %1330 = vmatpush1.msra.mxu0 0.0
        %1331 = vmatprep.subr.mxu0 0.0
        %1332 = vmatpush1.msra.mxu0 0.0
        %1333 = vmatprep.subr.mxu0 0.0
        %1334 = vmatpush1.msra.mxu0 0.0
        %1335 = vmatprep.subr.mxu0 0.0
        %1336 = vmatpush1.msra.mxu0 0.0
        %1337 = vmatprep.subr.mxu0 0.0
        %1338 = vmatpush1.msra.mxu0 0.0
        %1339 = vmatprep.subr.mxu0 0.0
        %1340 = vmatpush1.msra.mxu0 0.0
        %1341 = vmatprep.subr.mxu0 0.0
        %1342 = vmatpush1.msra.mxu0 0.0
        %1343 = vmatprep.subr.mxu0 0.0
        %1344 = vmatpush1.msra.mxu0 0.0
        %1345 = vmatprep.subr.mxu0 0.0
        %1346 = vmatpush1.msra.mxu0 0.0
        %1347 = vmatprep.subr.mxu0 0.0
        %1348 = vmatpush1.msra.mxu0 0.0
        %1349 = vmatprep.subr.mxu0 0.0
        %1350 = vmatpush1.msra.mxu0 0.0
        %1351 = vmatprep.subr.mxu0 0.0
        %1352 = vmatpush1.msra.mxu0 0.0
        %1353 = vmatprep.subr.mxu0 0.0
        %1354 = vmatpush1.msra.mxu0 0.0
        %1355 = vmatprep.subr.mxu0 0.0
        %1356 = vmatpush1.msra.mxu0 0.0
        %1357 = vmatprep.subr.mxu0 0.0
        %1358 = vmatpush1.msra.mxu0 0.0
        %1359 = vmatprep.subr.mxu0 0.0
        %1360 = vmatpush1.msra.mxu0 0.0
        %1361 = vmatprep.mubr.f32.mxu0 0.0
        %1362 = vmatmul.mubr.f32.gmra.mrb[0].mxu0 %v1292
        %v1363 = vpop.f32.mrb[0].mxu0
        %v1364 = vadd.f32 0.0, %v1363
        %v1365 = vpop.f32.mrb[0].mxu0
        %1366 = vmatprep.mubr.f32.mxu0 0.0
        %1367 = vmatmul.mubr.f32.gmra.mrb[0].mxu0 %v1295
        %v1368 = vpop.f32.mrb[0].mxu0
        %v1369 = vadd.f32 0.0, %v1368
        %v1370 = vpop.f32.mrb[0].mxu0
        %1371 = vdwg.mxu0
        %v1372 = vadd.f32 %v1281, %v1364
        %v1373 = vadd.f32 %v1282, %v1369
        %v1374 = vlaneseq
        %v1375 = vshrl.u32 %v1374, 7
        %v1376 = vsub.s32 0, %v1375
        %v1377 = vrot.slane %v327, %v1376
        %v1378 = vmul.f32 %v1100, %v1377
        %s1379 = scalar_lea.vmem %s2, 176
        %v1380 = vld [vmem:[%s1379] sm:$0xff]
        %v1381 = vld [vmem:[%s1379 + $0x8] sm:$0xff]
        %v1383 = vsel %vm384, %v1380, 0
        %v1386 = vsel %vm384, %v1381, 0
        %1388 = vmatprep.subr.mxu0 0.0
        %1389 = vmatpush1.msra.mxu0 %v1378
        %1390 = vmatprep.subr.mxu0 0.0
        %1391 = vmatpush1.msra.mxu0 0.0
        %1392 = vmatprep.subr.mxu0 0.0
        %1393 = vmatpush1.msra.mxu0 0.0
        %1394 = vmatprep.subr.mxu0 0.0
        %1395 = vmatpush1.msra.mxu0 0.0
        %1396 = vmatprep.subr.mxu0 0.0
        %1397 = vmatpush1.msra.mxu0 0.0
        %1398 = vmatprep.subr.mxu0 0.0
        %1399 = vmatpush1.msra.mxu0 0.0
        %1400 = vmatprep.subr.mxu0 0.0
        %1401 = vmatpush1.msra.mxu0 0.0
        %1402 = vmatprep.subr.mxu0 0.0
        %1403 = vmatpush1.msra.mxu0 0.0
        %1404 = vmatprep.subr.mxu0 0.0
        %1405 = vmatpush1.msra.mxu0 0.0
        %1406 = vmatprep.subr.mxu0 0.0
        %1407 = vmatpush1.msra.mxu0 0.0
        %1408 = vmatprep.subr.mxu0 0.0
        %1409 = vmatpush1.msra.mxu0 0.0
        %1410 = vmatprep.subr.mxu0 0.0
        %1411 = vmatpush1.msra.mxu0 0.0
        %1412 = vmatprep.subr.mxu0 0.0
        %1413 = vmatpush1.msra.mxu0 0.0
        %1414 = vmatprep.subr.mxu0 0.0
        %1415 = vmatpush1.msra.mxu0 0.0
        %1416 = vmatprep.subr.mxu0 0.0
        %1417 = vmatpush1.msra.mxu0 0.0
        %1418 = vmatprep.subr.mxu0 0.0
        %1419 = vmatpush1.msra.mxu0 0.0
        %1420 = vmatprep.subr.mxu0 0.0
        %1421 = vmatpush1.msra.mxu0 0.0
        %1422 = vmatprep.subr.mxu0 0.0
        %1423 = vmatpush1.msra.mxu0 0.0
        %1424 = vmatprep.subr.mxu0 0.0
        %1425 = vmatpush1.msra.mxu0 0.0
        %1426 = vmatprep.subr.mxu0 0.0
        %1427 = vmatpush1.msra.mxu0 0.0
        %1428 = vmatprep.subr.mxu0 0.0
        %1429 = vmatpush1.msra.mxu0 0.0
        %1430 = vmatprep.subr.mxu0 0.0
        %1431 = vmatpush1.msra.mxu0 0.0
        %1432 = vmatprep.subr.mxu0 0.0
        %1433 = vmatpush1.msra.mxu0 0.0
        %1434 = vmatprep.subr.mxu0 0.0
        %1435 = vmatpush1.msra.mxu0 0.0
        %1436 = vmatprep.subr.mxu0 0.0
        %1437 = vmatpush1.msra.mxu0 0.0
        %1438 = vmatprep.subr.mxu0 0.0
        %1439 = vmatpush1.msra.mxu0 0.0
        %1440 = vmatprep.subr.mxu0 0.0
        %1441 = vmatpush1.msra.mxu0 0.0
        %1442 = vmatprep.subr.mxu0 0.0
        %1443 = vmatpush1.msra.mxu0 0.0
        %1444 = vmatprep.subr.mxu0 0.0
        %1445 = vmatpush1.msra.mxu0 0.0
        %1446 = vmatprep.subr.mxu0 0.0
        %1447 = vmatpush1.msra.mxu0 0.0
        %1448 = vmatprep.subr.mxu0 0.0
        %1449 = vmatpush1.msra.mxu0 0.0
        %1450 = vmatprep.subr.mxu0 0.0
        %1451 = vmatpush1.msra.mxu0 0.0
        %1452 = vmatprep.mubr.f32.mxu0 0.0
        %1453 = vmatmul.mubr.f32.gmra.mrb[0].mxu0 %v1383
        %v1454 = vpop.f32.mrb[0].mxu0
        %v1455 = vadd.f32 0.0, %v1454
        %v1456 = vpop.f32.mrb[0].mxu0
        %1457 = vmatprep.mubr.f32.mxu0 0.0
        %1458 = vmatmul.mubr.f32.gmra.mrb[0].mxu0 %v1386
        %v1459 = vpop.f32.mrb[0].mxu0
        %v1460 = vadd.f32 0.0, %v1459
        %v1461 = vpop.f32.mrb[0].mxu0
        %1462 = vdwg.mxu0
        %v1463 = vadd.f32 %v1372, %v1455
        %v1464 = vadd.f32 %v1373, %v1460
        %s1465 = scalar_lea.vmem %s2, 192
        %v1466 = vld [vmem:[%s1465] sm:$0xff]
        %v1467 = vld [vmem:[%s1465 + $0x8] sm:$0xff]
        %v1469 = vsel %vm384, %v1466, 0
        %v1472 = vsel %vm384, %v1467, 0
        %1474 = vmatprep.subr.mxu0 0.0
        %1475 = vmatpush1.msra.mxu0 %v364
        %1476 = vmatprep.subr.mxu0 0.0
        %1477 = vmatpush1.msra.mxu0 0.0
        %1478 = vmatprep.subr.mxu0 0.0
        %1479 = vmatpush1.msra.mxu0 0.0
        %1480 = vmatprep.subr.mxu0 0.0
        %1481 = vmatpush1.msra.mxu0 0.0
        %1482 = vmatprep.subr.mxu0 0.0
        %1483 = vmatpush1.msra.mxu0 0.0
        %1484 = vmatprep.subr.mxu0 0.0
        %1485 = vmatpush1.msra.mxu0 0.0
        %1486 = vmatprep.subr.mxu0 0.0
        %1487 = vmatpush1.msra.mxu0 0.0
        %1488 = vmatprep.subr.mxu0 0.0
        %1489 = vmatpush1.msra.mxu0 0.0
        %1490 = vmatprep.subr.mxu0 0.0
        %1491 = vmatpush1.msra.mxu0 0.0
        %1492 = vmatprep.subr.mxu0 0.0
        %1493 = vmatpush1.msra.mxu0 0.0
        %1494 = vmatprep.subr.mxu0 0.0
        %1495 = vmatpush1.msra.mxu0 0.0
        %1496 = vmatprep.subr.mxu0 0.0
        %1497 = vmatpush1.msra.mxu0 0.0
        %1498 = vmatprep.subr.mxu0 0.0
        %1499 = vmatpush1.msra.mxu0 0.0
        %1500 = vmatprep.subr.mxu0 0.0
        %1501 = vmatpush1.msra.mxu0 0.0
        %1502 = vmatprep.subr.mxu0 0.0
        %1503 = vmatpush1.msra.mxu0 0.0
        %1504 = vmatprep.subr.mxu0 0.0
        %1505 = vmatpush1.msra.mxu0 0.0
        %1506 = vmatprep.subr.mxu0 0.0
        %1507 = vmatpush1.msra.mxu0 0.0
        %1508 = vmatprep.subr.mxu0 0.0
        %1509 = vmatpush1.msra.mxu0 0.0
        %1510 = vmatprep.subr.mxu0 0.0
        %1511 = vmatpush1.msra.mxu0 0.0
        %1512 = vmatprep.subr.mxu0 0.0
        %1513 = vmatpush1.msra.mxu0 0.0
        %1514 = vmatprep.subr.mxu0 0.0
        %1515 = vmatpush1.msra.mxu0 0.0
        %1516 = vmatprep.subr.mxu0 0.0
        %1517 = vmatpush1.msra.mxu0 0.0
        %1518 = vmatprep.subr.mxu0 0.0
        %1519 = vmatpush1.msra.mxu0 0.0
        %1520 = vmatprep.subr.mxu0 0.0
        %1521 = vmatpush1.msra.mxu0 0.0
        %1522 = vmatprep.subr.mxu0 0.0
        %1523 = vmatpush1.msra.mxu0 0.0
        %1524 = vmatprep.subr.mxu0 0.0
        %1525 = vmatpush1.msra.mxu0 0.0
        %1526 = vmatprep.subr.mxu0 0.0
        %1527 = vmatpush1.msra.mxu0 0.0
        %1528 = vmatprep.subr.mxu0 0.0
        %1529 = vmatpush1.msra.mxu0 0.0
        %1530 = vmatprep.subr.mxu0 0.0
        %1531 = vmatpush1.msra.mxu0 0.0
        %1532 = vmatprep.subr.mxu0 0.0
        %1533 = vmatpush1.msra.mxu0 0.0
        %1534 = vmatprep.subr.mxu0 0.0
        %1535 = vmatpush1.msra.mxu0 0.0
        %1536 = vmatprep.subr.mxu0 0.0
        %1537 = vmatpush1.msra.mxu0 0.0
        %1538 = vmatprep.mubr.f32.mxu0 0.0
        %1539 = vmatmul.mubr.f32.gmra.mrb[0].mxu0 %v1469
        %v1540 = vpop.f32.mrb[0].mxu0
        %v1541 = vadd.f32 0.0, %v1540
        %v1542 = vpop.f32.mrb[0].mxu0
        %1543 = vmatprep.mubr.f32.mxu0 0.0
        %1544 = vmatmul.mubr.f32.gmra.mrb[0].mxu0 %v1472
        %v1545 = vpop.f32.mrb[0].mxu0
        %v1546 = vadd.f32 0.0, %v1545
        %v1547 = vpop.f32.mrb[0].mxu0
        %1548 = vdwg.mxu0
        %v1549 = vadd.f32 %v1463, %v1541
        %v1550 = vadd.f32 %v1464, %v1546
        %1551 = vrot.lane.b32.xlu0 %v364, 127
        %v1552 = vpop.permute.xlu0 %1551
        %v1553 = vlaneseq
        %v1554 = vshrl.u32 %v1553, 7
        %v1555 = vsub.s32 0, %v1554
        %v1556 = vrot.slane %v330, %v1555
        %v1557 = vmul.f32 %v1552, %v1556
        %s1558 = scalar_lea.vmem %s2, 208
        %v1559 = vld [vmem:[%s1558] sm:$0xff]
        %v1560 = vld [vmem:[%s1558 + $0x8] sm:$0xff]
        %v1562 = vsel %vm384, %v1559, 0
        %v1565 = vsel %vm384, %v1560, 0
        %1567 = vmatprep.subr.mxu0 0.0
        %1568 = vmatpush1.msra.mxu0 %v1557
        %1569 = vmatprep.subr.mxu0 0.0
        %1570 = vmatpush1.msra.mxu0 0.0
        %1571 = vmatprep.subr.mxu0 0.0
        %1572 = vmatpush1.msra.mxu0 0.0
        %1573 = vmatprep.subr.mxu0 0.0
        %1574 = vmatpush1.msra.mxu0 0.0
        %1575 = vmatprep.subr.mxu0 0.0
        %1576 = vmatpush1.msra.mxu0 0.0
        %1577 = vmatprep.subr.mxu0 0.0
        %1578 = vmatpush1.msra.mxu0 0.0
        %1579 = vmatprep.subr.mxu0 0.0
        %1580 = vmatpush1.msra.mxu0 0.0
        %1581 = vmatprep.subr.mxu0 0.0
        %1582 = vmatpush1.msra.mxu0 0.0
        %1583 = vmatprep.subr.mxu0 0.0
        %1584 = vmatpush1.msra.mxu0 0.0
        %1585 = vmatprep.subr.mxu0 0.0
        %1586 = vmatpush1.msra.mxu0 0.0
        %1587 = vmatprep.subr.mxu0 0.0
        %1588 = vmatpush1.msra.mxu0 0.0
        %1589 = vmatprep.subr.mxu0 0.0
        %1590 = vmatpush1.msra.mxu0 0.0
        %1591 = vmatprep.subr.mxu0 0.0
        %1592 = vmatpush1.msra.mxu0 0.0
        %1593 = vmatprep.subr.mxu0 0.0
        %1594 = vmatpush1.msra.mxu0 0.0
        %1595 = vmatprep.subr.mxu0 0.0
        %1596 = vmatpush1.msra.mxu0 0.0
        %1597 = vmatprep.subr.mxu0 0.0
        %1598 = vmatpush1.msra.mxu0 0.0
        %1599 = vmatprep.subr.mxu0 0.0
        %1600 = vmatpush1.msra.mxu0 0.0
        %1601 = vmatprep.subr.mxu0 0.0
        %1602 = vmatpush1.msra.mxu0 0.0
        %1603 = vmatprep.subr.mxu0 0.0
        %1604 = vmatpush1.msra.mxu0 0.0
        %1605 = vmatprep.subr.mxu0 0.0
        %1606 = vmatpush1.msra.mxu0 0.0
        %1607 = vmatprep.subr.mxu0 0.0
        %1608 = vmatpush1.msra.mxu0 0.0
        %1609 = vmatprep.subr.mxu0 0.0
        %1610 = vmatpush1.msra.mxu0 0.0
        %1611 = vmatprep.subr.mxu0 0.0
        %1612 = vmatpush1.msra.mxu0 0.0
        %1613 = vmatprep.subr.mxu0 0.0
        %1614 = vmatpush1.msra.mxu0 0.0
        %1615 = vmatprep.subr.mxu0 0.0
        %1616 = vmatpush1.msra.mxu0 0.0
        %1617 = vmatprep.subr.mxu0 0.0
        %1618 = vmatpush1.msra.mxu0 0.0
        %1619 = vmatprep.subr.mxu0 0.0
        %1620 = vmatpush1.msra.mxu0 0.0
        %1621 = vmatprep.subr.mxu0 0.0
        %1622 = vmatpush1.msra.mxu0 0.0
        %1623 = vmatprep.subr.mxu0 0.0
        %1624 = vmatpush1.msra.mxu0 0.0
        %1625 = vmatprep.subr.mxu0 0.0
        %1626 = vmatpush1.msra.mxu0 0.0
        %1627 = vmatprep.subr.mxu0 0.0
        %1628 = vmatpush1.msra.mxu0 0.0
        %1629 = vmatprep.subr.mxu0 0.0
        %1630 = vmatpush1.msra.mxu0 0.0
        %1631 = vmatprep.mubr.f32.mxu0 0.0
        %1632 = vmatmul.mubr.f32.gmra.mrb[0].mxu0 %v1562
        %v1633 = vpop.f32.mrb[0].mxu0
        %v1634 = vadd.f32 0.0, %v1633
        %v1635 = vpop.f32.mrb[0].mxu0
        %1636 = vmatprep.mubr.f32.mxu0 0.0
        %1637 = vmatmul.mubr.f32.gmra.mrb[0].mxu0 %v1565
        %v1638 = vpop.f32.mrb[0].mxu0
        %v1639 = vadd.f32 0.0, %v1638
        %v1640 = vpop.f32.mrb[0].mxu0
        %1641 = vdwg.mxu0
        %v1642 = vadd.f32 %v1549, %v1634
        %v1643 = vadd.f32 %v1550, %v1639
        %1644 = vrot.lane.b32.xlu0 %v364, 126
        %v1645 = vpop.permute.xlu0 %1644
        %v1646 = vlaneseq
        %v1647 = vshrl.u32 %v1646, 7
        %v1648 = vsub.s32 0, %v1647
        %v1649 = vrot.slane %v333, %v1648
        %v1650 = vmul.f32 %v1645, %v1649
        %s1651 = scalar_lea.vmem %s2, 224
        %v1652 = vld [vmem:[%s1651] sm:$0xff]
        %v1653 = vld [vmem:[%s1651 + $0x8] sm:$0xff]
        %v1655 = vsel %vm384, %v1652, 0
        %v1658 = vsel %vm384, %v1653, 0
        %1660 = vmatprep.subr.mxu0 0.0
        %1661 = vmatpush1.msra.mxu0 %v1650
        %1662 = vmatprep.subr.mxu0 0.0
        %1663 = vmatpush1.msra.mxu0 0.0
        %1664 = vmatprep.subr.mxu0 0.0
        %1665 = vmatpush1.msra.mxu0 0.0
        %1666 = vmatprep.subr.mxu0 0.0
        %1667 = vmatpush1.msra.mxu0 0.0
        %1668 = vmatprep.subr.mxu0 0.0
        %1669 = vmatpush1.msra.mxu0 0.0
        %1670 = vmatprep.subr.mxu0 0.0
        %1671 = vmatpush1.msra.mxu0 0.0
        %1672 = vmatprep.subr.mxu0 0.0
        %1673 = vmatpush1.msra.mxu0 0.0
        %1674 = vmatprep.subr.mxu0 0.0
        %1675 = vmatpush1.msra.mxu0 0.0
        %1676 = vmatprep.subr.mxu0 0.0
        %1677 = vmatpush1.msra.mxu0 0.0
        %1678 = vmatprep.subr.mxu0 0.0
        %1679 = vmatpush1.msra.mxu0 0.0
        %1680 = vmatprep.subr.mxu0 0.0
        %1681 = vmatpush1.msra.mxu0 0.0
        %1682 = vmatprep.subr.mxu0 0.0
        %1683 = vmatpush1.msra.mxu0 0.0
        %1684 = vmatprep.subr.mxu0 0.0
        %1685 = vmatpush1.msra.mxu0 0.0
        %1686 = vmatprep.subr.mxu0 0.0
        %1687 = vmatpush1.msra.mxu0 0.0
        %1688 = vmatprep.subr.mxu0 0.0
        %1689 = vmatpush1.msra.mxu0 0.0
        %1690 = vmatprep.subr.mxu0 0.0
        %1691 = vmatpush1.msra.mxu0 0.0
        %1692 = vmatprep.subr.mxu0 0.0
        %1693 = vmatpush1.msra.mxu0 0.0
        %1694 = vmatprep.subr.mxu0 0.0
        %1695 = vmatpush1.msra.mxu0 0.0
        %1696 = vmatprep.subr.mxu0 0.0
        %1697 = vmatpush1.msra.mxu0 0.0
        %1698 = vmatprep.subr.mxu0 0.0
        %1699 = vmatpush1.msra.mxu0 0.0
        %1700 = vmatprep.subr.mxu0 0.0
        %1701 = vmatpush1.msra.mxu0 0.0
        %1702 = vmatprep.subr.mxu0 0.0
        %1703 = vmatpush1.msra.mxu0 0.0
        %1704 = vmatprep.subr.mxu0 0.0
        %1705 = vmatpush1.msra.mxu0 0.0
        %1706 = vmatprep.subr.mxu0 0.0
        %1707 = vmatpush1.msra.mxu0 0.0
        %1708 = vmatprep.subr.mxu0 0.0
        %1709 = vmatpush1.msra.mxu0 0.0
        %1710 = vmatprep.subr.mxu0 0.0
        %1711 = vmatpush1.msra.mxu0 0.0
        %1712 = vmatprep.subr.mxu0 0.0
        %1713 = vmatpush1.msra.mxu0 0.0
        %1714 = vmatprep.subr.mxu0 0.0
        %1715 = vmatpush1.msra.mxu0 0.0
        %1716 = vmatprep.subr.mxu0 0.0
        %1717 = vmatpush1.msra.mxu0 0.0
        %1718 = vmatprep.subr.mxu0 0.0
        %1719 = vmatpush1.msra.mxu0 0.0
        %1720 = vmatprep.subr.mxu0 0.0
        %1721 = vmatpush1.msra.mxu0 0.0
        %1722 = vmatprep.subr.mxu0 0.0
        %1723 = vmatpush1.msra.mxu0 0.0
        %1724 = vmatprep.mubr.f32.mxu0 0.0
        %1725 = vmatmul.mubr.f32.gmra.mrb[0].mxu0 %v1655
        %v1726 = vpop.f32.mrb[0].mxu0
        %v1727 = vadd.f32 0.0, %v1726
        %v1728 = vpop.f32.mrb[0].mxu0
        %1729 = vmatprep.mubr.f32.mxu0 0.0
        %1730 = vmatmul.mubr.f32.gmra.mrb[0].mxu0 %v1658
        %v1731 = vpop.f32.mrb[0].mxu0
        %v1732 = vadd.f32 0.0, %v1731
        %v1733 = vpop.f32.mrb[0].mxu0
        %1734 = vdwg.mxu0
        %v1735 = vadd.f32 %v1642, %v1727
        %v1736 = vadd.f32 %v1643, %v1732
        %v1737 = vlaneseq
        %v1738 = vshrl.u32 %v1737, 7
        %v1739 = vsub.s32 0, %v1738
        %v1740 = vrot.slane %v336, %v1739
        %v1741 = vmul.f32 %v364, %v1740
        %s1742 = scalar_lea.vmem %s2, 240
        %v1743 = vld [vmem:[%s1742] sm:$0xff]
        %v1744 = vld [vmem:[%s1742 + $0x8] sm:$0xff]
        %v1746 = vsel %vm384, %v1743, 0
        %v1749 = vsel %vm384, %v1744, 0
        %1751 = vmatprep.subr.mxu0 0.0
        %1752 = vmatpush1.msra.mxu0 %v1741
        %1753 = vmatprep.subr.mxu0 0.0
        %1754 = vmatpush1.msra.mxu0 0.0
        %1755 = vmatprep.subr.mxu0 0.0
        %1756 = vmatpush1.msra.mxu0 0.0
        %1757 = vmatprep.subr.mxu0 0.0
        %1758 = vmatpush1.msra.mxu0 0.0
        %1759 = vmatprep.subr.mxu0 0.0
        %1760 = vmatpush1.msra.mxu0 0.0
        %1761 = vmatprep.subr.mxu0 0.0
        %1762 = vmatpush1.msra.mxu0 0.0
        %1763 = vmatprep.subr.mxu0 0.0
        %1764 = vmatpush1.msra.mxu0 0.0
        %1765 = vmatprep.subr.mxu0 0.0
        %1766 = vmatpush1.msra.mxu0 0.0
        %1767 = vmatprep.subr.mxu0 0.0
        %1768 = vmatpush1.msra.mxu0 0.0
        %1769 = vmatprep.subr.mxu0 0.0
        %1770 = vmatpush1.msra.mxu0 0.0
        %1771 = vmatprep.subr.mxu0 0.0
        %1772 = vmatpush1.msra.mxu0 0.0
        %1773 = vmatprep.subr.mxu0 0.0
        %1774 = vmatpush1.msra.mxu0 0.0
        %1775 = vmatprep.subr.mxu0 0.0
        %1776 = vmatpush1.msra.mxu0 0.0
        %1777 = vmatprep.subr.mxu0 0.0
        %1778 = vmatpush1.msra.mxu0 0.0
        %1779 = vmatprep.subr.mxu0 0.0
        %1780 = vmatpush1.msra.mxu0 0.0
        %1781 = vmatprep.subr.mxu0 0.0
        %1782 = vmatpush1.msra.mxu0 0.0
        %1783 = vmatprep.subr.mxu0 0.0
        %1784 = vmatpush1.msra.mxu0 0.0
        %1785 = vmatprep.subr.mxu0 0.0
        %1786 = vmatpush1.msra.mxu0 0.0
        %1787 = vmatprep.subr.mxu0 0.0
        %1788 = vmatpush1.msra.mxu0 0.0
        %1789 = vmatprep.subr.mxu0 0.0
        %1790 = vmatpush1.msra.mxu0 0.0
        %1791 = vmatprep.subr.mxu0 0.0
        %1792 = vmatpush1.msra.mxu0 0.0
        %1793 = vmatprep.subr.mxu0 0.0
        %1794 = vmatpush1.msra.mxu0 0.0
        %1795 = vmatprep.subr.mxu0 0.0
        %1796 = vmatpush1.msra.mxu0 0.0
        %1797 = vmatprep.subr.mxu0 0.0
        %1798 = vmatpush1.msra.mxu0 0.0
        %1799 = vmatprep.subr.mxu0 0.0
        %1800 = vmatpush1.msra.mxu0 0.0
        %1801 = vmatprep.subr.mxu0 0.0
        %1802 = vmatpush1.msra.mxu0 0.0
        %1803 = vmatprep.subr.mxu0 0.0
        %1804 = vmatpush1.msra.mxu0 0.0
        %1805 = vmatprep.subr.mxu0 0.0
        %1806 = vmatpush1.msra.mxu0 0.0
        %1807 = vmatprep.subr.mxu0 0.0
        %1808 = vmatpush1.msra.mxu0 0.0
        %1809 = vmatprep.subr.mxu0 0.0
        %1810 = vmatpush1.msra.mxu0 0.0
        %1811 = vmatprep.subr.mxu0 0.0
        %1812 = vmatpush1.msra.mxu0 0.0
        %1813 = vmatprep.subr.mxu0 0.0
        %1814 = vmatpush1.msra.mxu0 0.0
        %1815 = vmatprep.mubr.f32.mxu0 0.0
        %1816 = vmatmul.mubr.f32.gmra.mrb[0].mxu0 %v1746
        %v1817 = vpop.f32.mrb[0].mxu0
        %v1818 = vadd.f32 0.0, %v1817
        %v1819 = vpop.f32.mrb[0].mxu0
        %1820 = vmatprep.mubr.f32.mxu0 0.0
        %1821 = vmatmul.mubr.f32.gmra.mrb[0].mxu0 %v1749
        %v1822 = vpop.f32.mrb[0].mxu0
        %v1823 = vadd.f32 0.0, %v1822
        %v1824 = vpop.f32.mrb[0].mxu0
        %1825 = vdwg.mxu0
        %v1826 = vadd.f32 %v1735, %v1818
        %v1827 = vadd.f32 %v1736, %v1823
        %v1828 = vlaneseq
        %v1829 = vshrl.u32 %v1828, 7
        %v1830 = vsub.s32 0, %v1829
        %v1831 = vrot.slane %v339, %v1830
        %v1832 = vmul.f32 %v1552, %v1831
        %s1833 = scalar_lea.vmem %s2, 256
        %v1834 = vld [vmem:[%s1833] sm:$0xff]
        %v1835 = vld [vmem:[%s1833 + $0x8] sm:$0xff]
        %v1837 = vsel %vm384, %v1834, 0
        %v1840 = vsel %vm384, %v1835, 0
        %1842 = vmatprep.subr.mxu0 0.0
        %1843 = vmatpush1.msra.mxu0 %v1832
        %1844 = vmatprep.subr.mxu0 0.0
        %1845 = vmatpush1.msra.mxu0 0.0
        %1846 = vmatprep.subr.mxu0 0.0
        %1847 = vmatpush1.msra.mxu0 0.0
        %1848 = vmatprep.subr.mxu0 0.0
        %1849 = vmatpush1.msra.mxu0 0.0
        %1850 = vmatprep.subr.mxu0 0.0
        %1851 = vmatpush1.msra.mxu0 0.0
        %1852 = vmatprep.subr.mxu0 0.0
        %1853 = vmatpush1.msra.mxu0 0.0
        %1854 = vmatprep.subr.mxu0 0.0
        %1855 = vmatpush1.msra.mxu0 0.0
        %1856 = vmatprep.subr.mxu0 0.0
        %1857 = vmatpush1.msra.mxu0 0.0
        %1858 = vmatprep.subr.mxu0 0.0
        %1859 = vmatpush1.msra.mxu0 0.0
        %1860 = vmatprep.subr.mxu0 0.0
        %1861 = vmatpush1.msra.mxu0 0.0
        %1862 = vmatprep.subr.mxu0 0.0
        %1863 = vmatpush1.msra.mxu0 0.0
        %1864 = vmatprep.subr.mxu0 0.0
        %1865 = vmatpush1.msra.mxu0 0.0
        %1866 = vmatprep.subr.mxu0 0.0
        %1867 = vmatpush1.msra.mxu0 0.0
        %1868 = vmatprep.subr.mxu0 0.0
        %1869 = vmatpush1.msra.mxu0 0.0
        %1870 = vmatprep.subr.mxu0 0.0
        %1871 = vmatpush1.msra.mxu0 0.0
        %1872 = vmatprep.subr.mxu0 0.0
        %1873 = vmatpush1.msra.mxu0 0.0
        %1874 = vmatprep.subr.mxu0 0.0
        %1875 = vmatpush1.msra.mxu0 0.0
        %1876 = vmatprep.subr.mxu0 0.0
        %1877 = vmatpush1.msra.mxu0 0.0
        %1878 = vmatprep.subr.mxu0 0.0
        %1879 = vmatpush1.msra.mxu0 0.0
        %1880 = vmatprep.subr.mxu0 0.0
        %1881 = vmatpush1.msra.mxu0 0.0
        %1882 = vmatprep.subr.mxu0 0.0
        %1883 = vmatpush1.msra.mxu0 0.0
        %1884 = vmatprep.subr.mxu0 0.0
        %1885 = vmatpush1.msra.mxu0 0.0
        %1886 = vmatprep.subr.mxu0 0.0
        %1887 = vmatpush1.msra.mxu0 0.0
        %1888 = vmatprep.subr.mxu0 0.0
        %1889 = vmatpush1.msra.mxu0 0.0
        %1890 = vmatprep.subr.mxu0 0.0
        %1891 = vmatpush1.msra.mxu0 0.0
        %1892 = vmatprep.subr.mxu0 0.0
        %1893 = vmatpush1.msra.mxu0 0.0
        %1894 = vmatprep.subr.mxu0 0.0
        %1895 = vmatpush1.msra.mxu0 0.0
        %1896 = vmatprep.subr.mxu0 0.0
        %1897 = vmatpush1.msra.mxu0 0.0
        %1898 = vmatprep.subr.mxu0 0.0
        %1899 = vmatpush1.msra.mxu0 0.0
        %1900 = vmatprep.subr.mxu0 0.0
        %1901 = vmatpush1.msra.mxu0 0.0
        %1902 = vmatprep.subr.mxu0 0.0
        %1903 = vmatpush1.msra.mxu0 0.0
        %1904 = vmatprep.subr.mxu0 0.0
        %1905 = vmatpush1.msra.mxu0 0.0
        %1906 = vmatprep.mubr.f32.mxu0 0.0
        %1907 = vmatmul.mubr.f32.gmra.mrb[0].mxu0 %v1837
        %v1908 = vpop.f32.mrb[0].mxu0
        %v1909 = vadd.f32 0.0, %v1908
        %v1910 = vpop.f32.mrb[0].mxu0
        %1911 = vmatprep.mubr.f32.mxu0 0.0
        %1912 = vmatmul.mubr.f32.gmra.mrb[0].mxu0 %v1840
        %v1913 = vpop.f32.mrb[0].mxu0
        %v1914 = vadd.f32 0.0, %v1913
        %v1915 = vpop.f32.mrb[0].mxu0
        %1916 = vdwg.mxu0
        %v1917 = vadd.f32 %v1826, %v1909
        %v1918 = vadd.f32 %v1827, %v1914
        %v1919 = vlaneseq
        %v1920 = vshrl.u32 %v1919, 7
        %v1921 = vsub.s32 0, %v1920
        %v1922 = vrot.slane %v342, %v1921
        %v1923 = vmul.f32 %v1645, %v1922
        %s1924 = scalar_lea.vmem %s2, 272
        %v1925 = vld [vmem:[%s1924] sm:$0xff]
        %v1926 = vld [vmem:[%s1924 + $0x8] sm:$0xff]
        %v1928 = vsel %vm384, %v1925, 0
        %v1931 = vsel %vm384, %v1926, 0
        %1933 = vmatprep.subr.mxu0 0.0
        %1934 = vmatpush1.msra.mxu0 %v1923
        %1935 = vmatprep.subr.mxu0 0.0
        %1936 = vmatpush1.msra.mxu0 0.0
        %1937 = vmatprep.subr.mxu0 0.0
        %1938 = vmatpush1.msra.mxu0 0.0
        %1939 = vmatprep.subr.mxu0 0.0
        %1940 = vmatpush1.msra.mxu0 0.0
        %1941 = vmatprep.subr.mxu0 0.0
        %1942 = vmatpush1.msra.mxu0 0.0
        %1943 = vmatprep.subr.mxu0 0.0
        %1944 = vmatpush1.msra.mxu0 0.0
        %1945 = vmatprep.subr.mxu0 0.0
        %1946 = vmatpush1.msra.mxu0 0.0
        %1947 = vmatprep.subr.mxu0 0.0
        %1948 = vmatpush1.msra.mxu0 0.0
        %1949 = vmatprep.subr.mxu0 0.0
        %1950 = vmatpush1.msra.mxu0 0.0
        %1951 = vmatprep.subr.mxu0 0.0
        %1952 = vmatpush1.msra.mxu0 0.0
        %1953 = vmatprep.subr.mxu0 0.0
        %1954 = vmatpush1.msra.mxu0 0.0
        %1955 = vmatprep.subr.mxu0 0.0
        %1956 = vmatpush1.msra.mxu0 0.0
        %1957 = vmatprep.subr.mxu0 0.0
        %1958 = vmatpush1.msra.mxu0 0.0
        %1959 = vmatprep.subr.mxu0 0.0
        %1960 = vmatpush1.msra.mxu0 0.0
        %1961 = vmatprep.subr.mxu0 0.0
        %1962 = vmatpush1.msra.mxu0 0.0
        %1963 = vmatprep.subr.mxu0 0.0
        %1964 = vmatpush1.msra.mxu0 0.0
        %1965 = vmatprep.subr.mxu0 0.0
        %1966 = vmatpush1.msra.mxu0 0.0
        %1967 = vmatprep.subr.mxu0 0.0
        %1968 = vmatpush1.msra.mxu0 0.0
        %1969 = vmatprep.subr.mxu0 0.0
        %1970 = vmatpush1.msra.mxu0 0.0
        %1971 = vmatprep.subr.mxu0 0.0
        %1972 = vmatpush1.msra.mxu0 0.0
        %1973 = vmatprep.subr.mxu0 0.0
        %1974 = vmatpush1.msra.mxu0 0.0
        %1975 = vmatprep.subr.mxu0 0.0
        %1976 = vmatpush1.msra.mxu0 0.0
        %1977 = vmatprep.subr.mxu0 0.0
        %1978 = vmatpush1.msra.mxu0 0.0
        %1979 = vmatprep.subr.mxu0 0.0
        %1980 = vmatpush1.msra.mxu0 0.0
        %1981 = vmatprep.subr.mxu0 0.0
        %1982 = vmatpush1.msra.mxu0 0.0
        %1983 = vmatprep.subr.mxu0 0.0
        %1984 = vmatpush1.msra.mxu0 0.0
        %1985 = vmatprep.subr.mxu0 0.0
        %1986 = vmatpush1.msra.mxu0 0.0
        %1987 = vmatprep.subr.mxu0 0.0
        %1988 = vmatpush1.msra.mxu0 0.0
        %1989 = vmatprep.subr.mxu0 0.0
        %1990 = vmatpush1.msra.mxu0 0.0
        %1991 = vmatprep.subr.mxu0 0.0
        %1992 = vmatpush1.msra.mxu0 0.0
        %1993 = vmatprep.subr.mxu0 0.0
        %1994 = vmatpush1.msra.mxu0 0.0
        %1995 = vmatprep.subr.mxu0 0.0
        %1996 = vmatpush1.msra.mxu0 0.0
        %1997 = vmatprep.mubr.f32.mxu0 0.0
        %1998 = vmatmul.mubr.f32.gmra.mrb[0].mxu0 %v1928
        %v1999 = vpop.f32.mrb[0].mxu0
        %v2000 = vadd.f32 0.0, %v1999
        %v2001 = vpop.f32.mrb[0].mxu0
        %2002 = vmatprep.mubr.f32.mxu0 0.0
        %2003 = vmatmul.mubr.f32.gmra.mrb[0].mxu0 %v1931
        %v2004 = vpop.f32.mrb[0].mxu0
        %v2005 = vadd.f32 0.0, %v2004
        %v2006 = vpop.f32.mrb[0].mxu0
        %2007 = vdwg.mxu0
        %v2008 = vadd.f32 %v1917, %v2000
        %v2009 = vadd.f32 %v1918, %v2005
        %2010 = vrot.lane.b32.xlu0 %v364, 125
        %v2011 = vpop.permute.xlu0 %2010
        %v2012 = vlaneseq
        %v2013 = vshrl.u32 %v2012, 7
        %v2014 = vsub.s32 0, %v2013
        %v2015 = vrot.slane %v345, %v2014
        %v2016 = vmul.f32 %v2011, %v2015
        %s2017 = scalar_lea.vmem %s2, 288
        %v2018 = vld [vmem:[%s2017] sm:$0xff]
        %v2019 = vld [vmem:[%s2017 + $0x8] sm:$0xff]
        %v2021 = vsel %vm384, %v2018, 0
        %v2024 = vsel %vm384, %v2019, 0
        %2026 = vmatprep.subr.mxu0 0.0
        %2027 = vmatpush1.msra.mxu0 %v2016
        %2028 = vmatprep.subr.mxu0 0.0
        %2029 = vmatpush1.msra.mxu0 0.0
        %2030 = vmatprep.subr.mxu0 0.0
        %2031 = vmatpush1.msra.mxu0 0.0
        %2032 = vmatprep.subr.mxu0 0.0
        %2033 = vmatpush1.msra.mxu0 0.0
        %2034 = vmatprep.subr.mxu0 0.0
        %2035 = vmatpush1.msra.mxu0 0.0
        %2036 = vmatprep.subr.mxu0 0.0
        %2037 = vmatpush1.msra.mxu0 0.0
        %2038 = vmatprep.subr.mxu0 0.0
        %2039 = vmatpush1.msra.mxu0 0.0
        %2040 = vmatprep.subr.mxu0 0.0
        %2041 = vmatpush1.msra.mxu0 0.0
        %2042 = vmatprep.subr.mxu0 0.0
        %2043 = vmatpush1.msra.mxu0 0.0
        %2044 = vmatprep.subr.mxu0 0.0
        %2045 = vmatpush1.msra.mxu0 0.0
        %2046 = vmatprep.subr.mxu0 0.0
        %2047 = vmatpush1.msra.mxu0 0.0
        %2048 = vmatprep.subr.mxu0 0.0
        %2049 = vmatpush1.msra.mxu0 0.0
        %2050 = vmatprep.subr.mxu0 0.0
        %2051 = vmatpush1.msra.mxu0 0.0
        %2052 = vmatprep.subr.mxu0 0.0
        %2053 = vmatpush1.msra.mxu0 0.0
        %2054 = vmatprep.subr.mxu0 0.0
        %2055 = vmatpush1.msra.mxu0 0.0
        %2056 = vmatprep.subr.mxu0 0.0
        %2057 = vmatpush1.msra.mxu0 0.0
        %2058 = vmatprep.subr.mxu0 0.0
        %2059 = vmatpush1.msra.mxu0 0.0
        %2060 = vmatprep.subr.mxu0 0.0
        %2061 = vmatpush1.msra.mxu0 0.0
        %2062 = vmatprep.subr.mxu0 0.0
        %2063 = vmatpush1.msra.mxu0 0.0
        %2064 = vmatprep.subr.mxu0 0.0
        %2065 = vmatpush1.msra.mxu0 0.0
        %2066 = vmatprep.subr.mxu0 0.0
        %2067 = vmatpush1.msra.mxu0 0.0
        %2068 = vmatprep.subr.mxu0 0.0
        %2069 = vmatpush1.msra.mxu0 0.0
        %2070 = vmatprep.subr.mxu0 0.0
        %2071 = vmatpush1.msra.mxu0 0.0
        %2072 = vmatprep.subr.mxu0 0.0
        %2073 = vmatpush1.msra.mxu0 0.0
        %2074 = vmatprep.subr.mxu0 0.0
        %2075 = vmatpush1.msra.mxu0 0.0
        %2076 = vmatprep.subr.mxu0 0.0
        %2077 = vmatpush1.msra.mxu0 0.0
        %2078 = vmatprep.subr.mxu0 0.0
        %2079 = vmatpush1.msra.mxu0 0.0
        %2080 = vmatprep.subr.mxu0 0.0
        %2081 = vmatpush1.msra.mxu0 0.0
        %2082 = vmatprep.subr.mxu0 0.0
        %2083 = vmatpush1.msra.mxu0 0.0
        %2084 = vmatprep.subr.mxu0 0.0
        %2085 = vmatpush1.msra.mxu0 0.0
        %2086 = vmatprep.subr.mxu0 0.0
        %2087 = vmatpush1.msra.mxu0 0.0
        %2088 = vmatprep.subr.mxu0 0.0
        %2089 = vmatpush1.msra.mxu0 0.0
        %2090 = vmatprep.mubr.f32.mxu0 0.0
        %2091 = vmatmul.mubr.f32.gmra.mrb[0].mxu0 %v2021
        %v2092 = vpop.f32.mrb[0].mxu0
        %v2093 = vadd.f32 0.0, %v2092
        %v2094 = vpop.f32.mrb[0].mxu0
        %2095 = vmatprep.mubr.f32.mxu0 0.0
        %2096 = vmatmul.mubr.f32.gmra.mrb[0].mxu0 %v2024
        %v2097 = vpop.f32.mrb[0].mxu0
        %v2098 = vadd.f32 0.0, %v2097
        %v2099 = vpop.f32.mrb[0].mxu0
        %2100 = vdwg.mxu0
        %v2101 = vadd.f32 %v2008, %v2093
        %v2102 = vadd.f32 %v2009, %v2098
        %2103 = vrot.lane.b32.xlu0 %v364, 124
        %v2104 = vpop.permute.xlu0 %2103
        %v2105 = vlaneseq
        %v2106 = vshrl.u32 %v2105, 7
        %v2107 = vsub.s32 0, %v2106
        %v2108 = vrot.slane %v348, %v2107
        %v2109 = vmul.f32 %v2104, %v2108
        %s2110 = scalar_lea.vmem %s2, 304
        %v2111 = vld [vmem:[%s2110] sm:$0xff]
        %v2112 = vld [vmem:[%s2110 + $0x8] sm:$0xff]
        %v2114 = vsel %vm384, %v2111, 0
        %v2117 = vsel %vm384, %v2112, 0
        %2119 = vmatprep.subr.mxu0 0.0
        %2120 = vmatpush1.msra.mxu0 %v2109
        %2121 = vmatprep.subr.mxu0 0.0
        %2122 = vmatpush1.msra.mxu0 0.0
        %2123 = vmatprep.subr.mxu0 0.0
        %2124 = vmatpush1.msra.mxu0 0.0
        %2125 = vmatprep.subr.mxu0 0.0
        %2126 = vmatpush1.msra.mxu0 0.0
        %2127 = vmatprep.subr.mxu0 0.0
        %2128 = vmatpush1.msra.mxu0 0.0
        %2129 = vmatprep.subr.mxu0 0.0
        %2130 = vmatpush1.msra.mxu0 0.0
        %2131 = vmatprep.subr.mxu0 0.0
        %2132 = vmatpush1.msra.mxu0 0.0
        %2133 = vmatprep.subr.mxu0 0.0
        %2134 = vmatpush1.msra.mxu0 0.0
        %2135 = vmatprep.subr.mxu0 0.0
        %2136 = vmatpush1.msra.mxu0 0.0
        %2137 = vmatprep.subr.mxu0 0.0
        %2138 = vmatpush1.msra.mxu0 0.0
        %2139 = vmatprep.subr.mxu0 0.0
        %2140 = vmatpush1.msra.mxu0 0.0
        %2141 = vmatprep.subr.mxu0 0.0
        %2142 = vmatpush1.msra.mxu0 0.0
        %2143 = vmatprep.subr.mxu0 0.0
        %2144 = vmatpush1.msra.mxu0 0.0
        %2145 = vmatprep.subr.mxu0 0.0
        %2146 = vmatpush1.msra.mxu0 0.0
        %2147 = vmatprep.subr.mxu0 0.0
        %2148 = vmatpush1.msra.mxu0 0.0
        %2149 = vmatprep.subr.mxu0 0.0
        %2150 = vmatpush1.msra.mxu0 0.0
        %2151 = vmatprep.subr.mxu0 0.0
        %2152 = vmatpush1.msra.mxu0 0.0
        %2153 = vmatprep.subr.mxu0 0.0
        %2154 = vmatpush1.msra.mxu0 0.0
        %2155 = vmatprep.subr.mxu0 0.0
        %2156 = vmatpush1.msra.mxu0 0.0
        %2157 = vmatprep.subr.mxu0 0.0
        %2158 = vmatpush1.msra.mxu0 0.0
        %2159 = vmatprep.subr.mxu0 0.0
        %2160 = vmatpush1.msra.mxu0 0.0
        %2161 = vmatprep.subr.mxu0 0.0
        %2162 = vmatpush1.msra.mxu0 0.0
        %2163 = vmatprep.subr.mxu0 0.0
        %2164 = vmatpush1.msra.mxu0 0.0
        %2165 = vmatprep.subr.mxu0 0.0
        %2166 = vmatpush1.msra.mxu0 0.0
        %2167 = vmatprep.subr.mxu0 0.0
        %2168 = vmatpush1.msra.mxu0 0.0
        %2169 = vmatprep.subr.mxu0 0.0
        %2170 = vmatpush1.msra.mxu0 0.0
        %2171 = vmatprep.subr.mxu0 0.0
        %2172 = vmatpush1.msra.mxu0 0.0
        %2173 = vmatprep.subr.mxu0 0.0
        %2174 = vmatpush1.msra.mxu0 0.0
        %2175 = vmatprep.subr.mxu0 0.0
        %2176 = vmatpush1.msra.mxu0 0.0
        %2177 = vmatprep.subr.mxu0 0.0
        %2178 = vmatpush1.msra.mxu0 0.0
        %2179 = vmatprep.subr.mxu0 0.0
        %2180 = vmatpush1.msra.mxu0 0.0
        %2181 = vmatprep.subr.mxu0 0.0
        %2182 = vmatpush1.msra.mxu0 0.0
        %2183 = vmatprep.mubr.f32.mxu0 0.0
        %2184 = vmatmul.mubr.f32.gmra.mrb[0].mxu0 %v2114
        %v2185 = vpop.f32.mrb[0].mxu0
        %v2186 = vadd.f32 0.0, %v2185
        %v2187 = vpop.f32.mrb[0].mxu0
        %2188 = vmatprep.mubr.f32.mxu0 0.0
        %2189 = vmatmul.mubr.f32.gmra.mrb[0].mxu0 %v2117
        %v2190 = vpop.f32.mrb[0].mxu0
        %v2191 = vadd.f32 0.0, %v2190
        %v2192 = vpop.f32.mrb[0].mxu0
        %2193 = vdwg.mxu0
        %v2194 = vadd.f32 %v2101, %v2186
        %v2195 = vadd.f32 %v2102, %v2191
        %v2196 = vlaneseq
        %v2197 = vshrl.u32 %v2196, 7
        %v2198 = vsub.s32 0, %v2197
        %v2199 = vrot.slane %v351, %v2198
        %v2200 = vmul.f32 %v1645, %v2199
        %s2201 = scalar_lea.vmem %s2, 320
        %v2202 = vld [vmem:[%s2201] sm:$0xff]
        %v2203 = vld [vmem:[%s2201 + $0x8] sm:$0xff]
        %v2205 = vsel %vm384, %v2202, 0
        %v2208 = vsel %vm384, %v2203, 0
        %2210 = vmatprep.subr.mxu0 0.0
        %2211 = vmatpush1.msra.mxu0 %v2200
        %2212 = vmatprep.subr.mxu0 0.0
        %2213 = vmatpush1.msra.mxu0 0.0
        %2214 = vmatprep.subr.mxu0 0.0
        %2215 = vmatpush1.msra.mxu0 0.0
        %2216 = vmatprep.subr.mxu0 0.0
        %2217 = vmatpush1.msra.mxu0 0.0
        %2218 = vmatprep.subr.mxu0 0.0
        %2219 = vmatpush1.msra.mxu0 0.0
        %2220 = vmatprep.subr.mxu0 0.0
        %2221 = vmatpush1.msra.mxu0 0.0
        %2222 = vmatprep.subr.mxu0 0.0
        %2223 = vmatpush1.msra.mxu0 0.0
        %2224 = vmatprep.subr.mxu0 0.0
        %2225 = vmatpush1.msra.mxu0 0.0
        %2226 = vmatprep.subr.mxu0 0.0
        %2227 = vmatpush1.msra.mxu0 0.0
        %2228 = vmatprep.subr.mxu0 0.0
        %2229 = vmatpush1.msra.mxu0 0.0
        %2230 = vmatprep.subr.mxu0 0.0
        %2231 = vmatpush1.msra.mxu0 0.0
        %2232 = vmatprep.subr.mxu0 0.0
        %2233 = vmatpush1.msra.mxu0 0.0
        %2234 = vmatprep.subr.mxu0 0.0
        %2235 = vmatpush1.msra.mxu0 0.0
        %2236 = vmatprep.subr.mxu0 0.0
        %2237 = vmatpush1.msra.mxu0 0.0
        %2238 = vmatprep.subr.mxu0 0.0
        %2239 = vmatpush1.msra.mxu0 0.0
        %2240 = vmatprep.subr.mxu0 0.0
        %2241 = vmatpush1.msra.mxu0 0.0
        %2242 = vmatprep.subr.mxu0 0.0
        %2243 = vmatpush1.msra.mxu0 0.0
        %2244 = vmatprep.subr.mxu0 0.0
        %2245 = vmatpush1.msra.mxu0 0.0
        %2246 = vmatprep.subr.mxu0 0.0
        %2247 = vmatpush1.msra.mxu0 0.0
        %2248 = vmatprep.subr.mxu0 0.0
        %2249 = vmatpush1.msra.mxu0 0.0
        %2250 = vmatprep.subr.mxu0 0.0
        %2251 = vmatpush1.msra.mxu0 0.0
        %2252 = vmatprep.subr.mxu0 0.0
        %2253 = vmatpush1.msra.mxu0 0.0
        %2254 = vmatprep.subr.mxu0 0.0
        %2255 = vmatpush1.msra.mxu0 0.0
        %2256 = vmatprep.subr.mxu0 0.0
        %2257 = vmatpush1.msra.mxu0 0.0
        %2258 = vmatprep.subr.mxu0 0.0
        %2259 = vmatpush1.msra.mxu0 0.0
        %2260 = vmatprep.subr.mxu0 0.0
        %2261 = vmatpush1.msra.mxu0 0.0
        %2262 = vmatprep.subr.mxu0 0.0
        %2263 = vmatpush1.msra.mxu0 0.0
        %2264 = vmatprep.subr.mxu0 0.0
        %2265 = vmatpush1.msra.mxu0 0.0
        %2266 = vmatprep.subr.mxu0 0.0
        %2267 = vmatpush1.msra.mxu0 0.0
        %2268 = vmatprep.subr.mxu0 0.0
        %2269 = vmatpush1.msra.mxu0 0.0
        %2270 = vmatprep.subr.mxu0 0.0
        %2271 = vmatpush1.msra.mxu0 0.0
        %2272 = vmatprep.subr.mxu0 0.0
        %2273 = vmatpush1.msra.mxu0 0.0
        %2274 = vmatprep.mubr.f32.mxu0 0.0
        %2275 = vmatmul.mubr.f32.gmra.mrb[0].mxu0 %v2205
        %v2276 = vpop.f32.mrb[0].mxu0
        %v2277 = vadd.f32 0.0, %v2276
        %v2278 = vpop.f32.mrb[0].mxu0
        %2279 = vmatprep.mubr.f32.mxu0 0.0
        %2280 = vmatmul.mubr.f32.gmra.mrb[0].mxu0 %v2208
        %v2281 = vpop.f32.mrb[0].mxu0
        %v2282 = vadd.f32 0.0, %v2281
        %v2283 = vpop.f32.mrb[0].mxu0
        %2284 = vdwg.mxu0
        %v2285 = vadd.f32 %v2194, %v2277
        %v2286 = vadd.f32 %v2195, %v2282
        %v2287 = vlaneseq
        %v2288 = vshrl.u32 %v2287, 7
        %v2289 = vsub.s32 0, %v2288
        %v2290 = vrot.slane %v354, %v2289
        %v2291 = vmul.f32 %v2011, %v2290
        %s2292 = scalar_lea.vmem %s2, 336
        %v2293 = vld [vmem:[%s2292] sm:$0xff]
        %v2294 = vld [vmem:[%s2292 + $0x8] sm:$0xff]
        %v2296 = vsel %vm384, %v2293, 0
        %v2299 = vsel %vm384, %v2294, 0
        %2301 = vmatprep.subr.mxu0 0.0
        %2302 = vmatpush1.msra.mxu0 %v2291
        %2303 = vmatprep.subr.mxu0 0.0
        %2304 = vmatpush1.msra.mxu0 0.0
        %2305 = vmatprep.subr.mxu0 0.0
        %2306 = vmatpush1.msra.mxu0 0.0
        %2307 = vmatprep.subr.mxu0 0.0
        %2308 = vmatpush1.msra.mxu0 0.0
        %2309 = vmatprep.subr.mxu0 0.0
        %2310 = vmatpush1.msra.mxu0 0.0
        %2311 = vmatprep.subr.mxu0 0.0
        %2312 = vmatpush1.msra.mxu0 0.0
        %2313 = vmatprep.subr.mxu0 0.0
        %2314 = vmatpush1.msra.mxu0 0.0
        %2315 = vmatprep.subr.mxu0 0.0
        %2316 = vmatpush1.msra.mxu0 0.0
        %2317 = vmatprep.subr.mxu0 0.0
        %2318 = vmatpush1.msra.mxu0 0.0
        %2319 = vmatprep.subr.mxu0 0.0
        %2320 = vmatpush1.msra.mxu0 0.0
        %2321 = vmatprep.subr.mxu0 0.0
        %2322 = vmatpush1.msra.mxu0 0.0
        %2323 = vmatprep.subr.mxu0 0.0
        %2324 = vmatpush1.msra.mxu0 0.0
        %2325 = vmatprep.subr.mxu0 0.0
        %2326 = vmatpush1.msra.mxu0 0.0
        %2327 = vmatprep.subr.mxu0 0.0
        %2328 = vmatpush1.msra.mxu0 0.0
        %2329 = vmatprep.subr.mxu0 0.0
        %2330 = vmatpush1.msra.mxu0 0.0
        %2331 = vmatprep.subr.mxu0 0.0
        %2332 = vmatpush1.msra.mxu0 0.0
        %2333 = vmatprep.subr.mxu0 0.0
        %2334 = vmatpush1.msra.mxu0 0.0
        %2335 = vmatprep.subr.mxu0 0.0
        %2336 = vmatpush1.msra.mxu0 0.0
        %2337 = vmatprep.subr.mxu0 0.0
        %2338 = vmatpush1.msra.mxu0 0.0
        %2339 = vmatprep.subr.mxu0 0.0
        %2340 = vmatpush1.msra.mxu0 0.0
        %2341 = vmatprep.subr.mxu0 0.0
        %2342 = vmatpush1.msra.mxu0 0.0
        %2343 = vmatprep.subr.mxu0 0.0
        %2344 = vmatpush1.msra.mxu0 0.0
        %2345 = vmatprep.subr.mxu0 0.0
        %2346 = vmatpush1.msra.mxu0 0.0
        %2347 = vmatprep.subr.mxu0 0.0
        %2348 = vmatpush1.msra.mxu0 0.0
        %2349 = vmatprep.subr.mxu0 0.0
        %2350 = vmatpush1.msra.mxu0 0.0
        %2351 = vmatprep.subr.mxu0 0.0
        %2352 = vmatpush1.msra.mxu0 0.0
        %2353 = vmatprep.subr.mxu0 0.0
        %2354 = vmatpush1.msra.mxu0 0.0
        %2355 = vmatprep.subr.mxu0 0.0
        %2356 = vmatpush1.msra.mxu0 0.0
        %2357 = vmatprep.subr.mxu0 0.0
        %2358 = vmatpush1.msra.mxu0 0.0
        %2359 = vmatprep.subr.mxu0 0.0
        %2360 = vmatpush1.msra.mxu0 0.0
        %2361 = vmatprep.subr.mxu0 0.0
        %2362 = vmatpush1.msra.mxu0 0.0
        %2363 = vmatprep.subr.mxu0 0.0
        %2364 = vmatpush1.msra.mxu0 0.0
        %2365 = vmatprep.mubr.f32.mxu0 0.0
        %2366 = vmatmul.mubr.f32.gmra.mrb[0].mxu0 %v2296
        %v2367 = vpop.f32.mrb[0].mxu0
        %v2368 = vadd.f32 0.0, %v2367
        %v2369 = vpop.f32.mrb[0].mxu0
        %2370 = vmatprep.mubr.f32.mxu0 0.0
        %2371 = vmatmul.mubr.f32.gmra.mrb[0].mxu0 %v2299
        %v2372 = vpop.f32.mrb[0].mxu0
        %v2373 = vadd.f32 0.0, %v2372
        %v2374 = vpop.f32.mrb[0].mxu0
        %2375 = vdwg.mxu0
        %v2376 = vadd.f32 %v2285, %v2368
        %v2377 = vadd.f32 %v2286, %v2373
        %v2378 = vlaneseq
        %v2379 = vshrl.u32 %v2378, 7
        %v2380 = vsub.s32 0, %v2379
        %v2381 = vrot.slane %v357, %v2380
        %v2382 = vmul.f32 %v2104, %v2381
        %s2383 = scalar_lea.vmem %s2, 352
        %v2384 = vld [vmem:[%s2383] sm:$0xff]
        %v2385 = vld [vmem:[%s2383 + $0x8] sm:$0xff]
        %v2387 = vsel %vm384, %v2384, 0
        %v2390 = vsel %vm384, %v2385, 0
        %2392 = vmatprep.subr.mxu0 0.0
        %2393 = vmatpush1.msra.mxu0 %v2382
        %2394 = vmatprep.subr.mxu0 0.0
        %2395 = vmatpush1.msra.mxu0 0.0
        %2396 = vmatprep.subr.mxu0 0.0
        %2397 = vmatpush1.msra.mxu0 0.0
        %2398 = vmatprep.subr.mxu0 0.0
        %2399 = vmatpush1.msra.mxu0 0.0
        %2400 = vmatprep.subr.mxu0 0.0
        %2401 = vmatpush1.msra.mxu0 0.0
        %2402 = vmatprep.subr.mxu0 0.0
        %2403 = vmatpush1.msra.mxu0 0.0
        %2404 = vmatprep.subr.mxu0 0.0
        %2405 = vmatpush1.msra.mxu0 0.0
        %2406 = vmatprep.subr.mxu0 0.0
        %2407 = vmatpush1.msra.mxu0 0.0
        %2408 = vmatprep.subr.mxu0 0.0
        %2409 = vmatpush1.msra.mxu0 0.0
        %2410 = vmatprep.subr.mxu0 0.0
        %2411 = vmatpush1.msra.mxu0 0.0
        %2412 = vmatprep.subr.mxu0 0.0
        %2413 = vmatpush1.msra.mxu0 0.0
        %2414 = vmatprep.subr.mxu0 0.0
        %2415 = vmatpush1.msra.mxu0 0.0
        %2416 = vmatprep.subr.mxu0 0.0
        %2417 = vmatpush1.msra.mxu0 0.0
        %2418 = vmatprep.subr.mxu0 0.0
        %2419 = vmatpush1.msra.mxu0 0.0
        %2420 = vmatprep.subr.mxu0 0.0
        %2421 = vmatpush1.msra.mxu0 0.0
        %2422 = vmatprep.subr.mxu0 0.0
        %2423 = vmatpush1.msra.mxu0 0.0
        %2424 = vmatprep.subr.mxu0 0.0
        %2425 = vmatpush1.msra.mxu0 0.0
        %2426 = vmatprep.subr.mxu0 0.0
        %2427 = vmatpush1.msra.mxu0 0.0
        %2428 = vmatprep.subr.mxu0 0.0
        %2429 = vmatpush1.msra.mxu0 0.0
        %2430 = vmatprep.subr.mxu0 0.0
        %2431 = vmatpush1.msra.mxu0 0.0
        %2432 = vmatprep.subr.mxu0 0.0
        %2433 = vmatpush1.msra.mxu0 0.0
        %2434 = vmatprep.subr.mxu0 0.0
        %2435 = vmatpush1.msra.mxu0 0.0
        %2436 = vmatprep.subr.mxu0 0.0
        %2437 = vmatpush1.msra.mxu0 0.0
        %2438 = vmatprep.subr.mxu0 0.0
        %2439 = vmatpush1.msra.mxu0 0.0
        %2440 = vmatprep.subr.mxu0 0.0
        %2441 = vmatpush1.msra.mxu0 0.0
        %2442 = vmatprep.subr.mxu0 0.0
        %2443 = vmatpush1.msra.mxu0 0.0
        %2444 = vmatprep.subr.mxu0 0.0
        %2445 = vmatpush1.msra.mxu0 0.0
        %2446 = vmatprep.subr.mxu0 0.0
        %2447 = vmatpush1.msra.mxu0 0.0
        %2448 = vmatprep.subr.mxu0 0.0
        %2449 = vmatpush1.msra.mxu0 0.0
        %2450 = vmatprep.subr.mxu0 0.0
        %2451 = vmatpush1.msra.mxu0 0.0
        %2452 = vmatprep.subr.mxu0 0.0
        %2453 = vmatpush1.msra.mxu0 0.0
        %2454 = vmatprep.subr.mxu0 0.0
        %2455 = vmatpush1.msra.mxu0 0.0
        %2456 = vmatprep.mubr.f32.mxu0 0.0
        %2457 = vmatmul.mubr.f32.gmra.mrb[0].mxu0 %v2387
        %v2458 = vpop.f32.mrb[0].mxu0
        %v2459 = vadd.f32 0.0, %v2458
        %v2460 = vpop.f32.mrb[0].mxu0
        %2461 = vmatprep.mubr.f32.mxu0 0.0
        %2462 = vmatmul.mubr.f32.gmra.mrb[0].mxu0 %v2390
        %v2463 = vpop.f32.mrb[0].mxu0
        %v2464 = vadd.f32 0.0, %v2463
        %v2465 = vpop.f32.mrb[0].mxu0
        %2466 = vdwg.mxu0
        %v2467 = vadd.f32 %v2376, %v2459
        %v2468 = vadd.f32 %v2377, %v2464
        %2469 = vrot.lane.b32.xlu0 %v364, 123
        %v2470 = vpop.permute.xlu0 %2469
        %v2471 = vlaneseq
        %v2472 = vshrl.u32 %v2471, 7
        %v2473 = vsub.s32 0, %v2472
        %v2474 = vrot.slane %v360, %v2473
        %v2475 = vmul.f32 %v2470, %v2474
        %s2476 = scalar_lea.vmem %s2, 368
        %v2477 = vld [vmem:[%s2476] sm:$0xff]
        %v2478 = vld [vmem:[%s2476 + $0x8] sm:$0xff]
        %v2480 = vsel %vm384, %v2477, 0
        %v2483 = vsel %vm384, %v2478, 0
        %2485 = vmatprep.subr.mxu0 0.0
        %2486 = vmatpush1.msra.mxu0 %v2475
        %2487 = vmatprep.subr.mxu0 0.0
        %2488 = vmatpush1.msra.mxu0 0.0
        %2489 = vmatprep.subr.mxu0 0.0
        %2490 = vmatpush1.msra.mxu0 0.0
        %2491 = vmatprep.subr.mxu0 0.0
        %2492 = vmatpush1.msra.mxu0 0.0
        %2493 = vmatprep.subr.mxu0 0.0
        %2494 = vmatpush1.msra.mxu0 0.0
        %2495 = vmatprep.subr.mxu0 0.0
        %2496 = vmatpush1.msra.mxu0 0.0
        %2497 = vmatprep.subr.mxu0 0.0
        %2498 = vmatpush1.msra.mxu0 0.0
        %2499 = vmatprep.subr.mxu0 0.0
        %2500 = vmatpush1.msra.mxu0 0.0
        %2501 = vmatprep.subr.mxu0 0.0
        %2502 = vmatpush1.msra.mxu0 0.0
        %2503 = vmatprep.subr.mxu0 0.0
        %2504 = vmatpush1.msra.mxu0 0.0
        %2505 = vmatprep.subr.mxu0 0.0
        %2506 = vmatpush1.msra.mxu0 0.0
        %2507 = vmatprep.subr.mxu0 0.0
        %2508 = vmatpush1.msra.mxu0 0.0
        %2509 = vmatprep.subr.mxu0 0.0
        %2510 = vmatpush1.msra.mxu0 0.0
        %2511 = vmatprep.subr.mxu0 0.0
        %2512 = vmatpush1.msra.mxu0 0.0
        %2513 = vmatprep.subr.mxu0 0.0
        %2514 = vmatpush1.msra.mxu0 0.0
        %2515 = vmatprep.subr.mxu0 0.0
        %2516 = vmatpush1.msra.mxu0 0.0
        %2517 = vmatprep.subr.mxu0 0.0
        %2518 = vmatpush1.msra.mxu0 0.0
        %2519 = vmatprep.subr.mxu0 0.0
        %2520 = vmatpush1.msra.mxu0 0.0
        %2521 = vmatprep.subr.mxu0 0.0
        %2522 = vmatpush1.msra.mxu0 0.0
        %2523 = vmatprep.subr.mxu0 0.0
        %2524 = vmatpush1.msra.mxu0 0.0
        %2525 = vmatprep.subr.mxu0 0.0
        %2526 = vmatpush1.msra.mxu0 0.0
        %2527 = vmatprep.subr.mxu0 0.0
        %2528 = vmatpush1.msra.mxu0 0.0
        %2529 = vmatprep.subr.mxu0 0.0
        %2530 = vmatpush1.msra.mxu0 0.0
        %2531 = vmatprep.subr.mxu0 0.0
        %2532 = vmatpush1.msra.mxu0 0.0
        %2533 = vmatprep.subr.mxu0 0.0
        %2534 = vmatpush1.msra.mxu0 0.0
        %2535 = vmatprep.subr.mxu0 0.0
        %2536 = vmatpush1.msra.mxu0 0.0
        %2537 = vmatprep.subr.mxu0 0.0
        %2538 = vmatpush1.msra.mxu0 0.0
        %2539 = vmatprep.subr.mxu0 0.0
        %2540 = vmatpush1.msra.mxu0 0.0
        %2541 = vmatprep.subr.mxu0 0.0
        %2542 = vmatpush1.msra.mxu0 0.0
        %2543 = vmatprep.subr.mxu0 0.0
        %2544 = vmatpush1.msra.mxu0 0.0
        %2545 = vmatprep.subr.mxu0 0.0
        %2546 = vmatpush1.msra.mxu0 0.0
        %2547 = vmatprep.subr.mxu0 0.0
        %2548 = vmatpush1.msra.mxu0 0.0
        %2549 = vmatprep.mubr.f32.mxu0 0.0
        %2550 = vmatmul.mubr.f32.gmra.mrb[0].mxu0 %v2480
        %v2551 = vpop.f32.mrb[0].mxu0
        %v2552 = vadd.f32 0.0, %v2551
        %v2553 = vpop.f32.mrb[0].mxu0
        %2554 = vmatprep.mubr.f32.mxu0 0.0
        %2555 = vmatmul.mubr.f32.gmra.mrb[0].mxu0 %v2483
        %v2556 = vpop.f32.mrb[0].mxu0
        %v2557 = vadd.f32 0.0, %v2556
        %v2558 = vpop.f32.mrb[0].mxu0
        %2559 = vdwg.mxu0
        %v2560 = vadd.f32 %v2467, %v2552
        %v2561 = vadd.f32 %v2468, %v2557
        %2562 = vrot.lane.b32.xlu0 %v364, 122
        %v2563 = vpop.permute.xlu0 %2562
        %v2564 = vlaneseq
        %v2565 = vshrl.u32 %v2564, 7
        %v2566 = vsub.s32 0, %v2565
        %v2567 = vrot.slane %v363, %v2566
        %v2568 = vmul.f32 %v2563, %v2567
        %s2569 = scalar_lea.vmem %s2, 384
        %v2570 = vld [vmem:[%s2569] sm:$0xff]
        %v2571 = vld [vmem:[%s2569 + $0x8] sm:$0xff]
        %v2573 = vsel %vm384, %v2570, 0
        %v2576 = vsel %vm384, %v2571, 0
        %2578 = vmatprep.subr.mxu0 0.0
        %2579 = vmatpush1.msra.mxu0 %v2568
        %2580 = vmatprep.subr.mxu0 0.0
        %2581 = vmatpush1.msra.mxu0 0.0
        %2582 = vmatprep.subr.mxu0 0.0
        %2583 = vmatpush1.msra.mxu0 0.0
        %2584 = vmatprep.subr.mxu0 0.0
        %2585 = vmatpush1.msra.mxu0 0.0
        %2586 = vmatprep.subr.mxu0 0.0
        %2587 = vmatpush1.msra.mxu0 0.0
        %2588 = vmatprep.subr.mxu0 0.0
        %2589 = vmatpush1.msra.mxu0 0.0
        %2590 = vmatprep.subr.mxu0 0.0
        %2591 = vmatpush1.msra.mxu0 0.0
        %2592 = vmatprep.subr.mxu0 0.0
        %2593 = vmatpush1.msra.mxu0 0.0
        %2594 = vmatprep.subr.mxu0 0.0
        %2595 = vmatpush1.msra.mxu0 0.0
        %2596 = vmatprep.subr.mxu0 0.0
        %2597 = vmatpush1.msra.mxu0 0.0
        %2598 = vmatprep.subr.mxu0 0.0
        %2599 = vmatpush1.msra.mxu0 0.0
        %2600 = vmatprep.subr.mxu0 0.0
        %2601 = vmatpush1.msra.mxu0 0.0
        %2602 = vmatprep.subr.mxu0 0.0
        %2603 = vmatpush1.msra.mxu0 0.0
        %2604 = vmatprep.subr.mxu0 0.0
        %2605 = vmatpush1.msra.mxu0 0.0
        %2606 = vmatprep.subr.mxu0 0.0
        %2607 = vmatpush1.msra.mxu0 0.0
        %2608 = vmatprep.subr.mxu0 0.0
        %2609 = vmatpush1.msra.mxu0 0.0
        %2610 = vmatprep.subr.mxu0 0.0
        %2611 = vmatpush1.msra.mxu0 0.0
        %2612 = vmatprep.subr.mxu0 0.0
        %2613 = vmatpush1.msra.mxu0 0.0
        %2614 = vmatprep.subr.mxu0 0.0
        %2615 = vmatpush1.msra.mxu0 0.0
        %2616 = vmatprep.subr.mxu0 0.0
        %2617 = vmatpush1.msra.mxu0 0.0
        %2618 = vmatprep.subr.mxu0 0.0
        %2619 = vmatpush1.msra.mxu0 0.0
        %2620 = vmatprep.subr.mxu0 0.0
        %2621 = vmatpush1.msra.mxu0 0.0
        %2622 = vmatprep.subr.mxu0 0.0
        %2623 = vmatpush1.msra.mxu0 0.0
        %2624 = vmatprep.subr.mxu0 0.0
        %2625 = vmatpush1.msra.mxu0 0.0
        %2626 = vmatprep.subr.mxu0 0.0
        %2627 = vmatpush1.msra.mxu0 0.0
        %2628 = vmatprep.subr.mxu0 0.0
        %2629 = vmatpush1.msra.mxu0 0.0
        %2630 = vmatprep.subr.mxu0 0.0
        %2631 = vmatpush1.msra.mxu0 0.0
        %2632 = vmatprep.subr.mxu0 0.0
        %2633 = vmatpush1.msra.mxu0 0.0
        %2634 = vmatprep.subr.mxu0 0.0
        %2635 = vmatpush1.msra.mxu0 0.0
        %2636 = vmatprep.subr.mxu0 0.0
        %2637 = vmatpush1.msra.mxu0 0.0
        %2638 = vmatprep.subr.mxu0 0.0
        %2639 = vmatpush1.msra.mxu0 0.0
        %2640 = vmatprep.subr.mxu0 0.0
        %2641 = vmatpush1.msra.mxu0 0.0
        %2642 = vmatprep.mubr.f32.mxu0 0.0
        %2643 = vmatmul.mubr.f32.gmra.mrb[0].mxu0 %v2573
        %v2644 = vpop.f32.mrb[0].mxu0
        %v2645 = vadd.f32 0.0, %v2644
        %v2646 = vpop.f32.mrb[0].mxu0
        %2647 = vmatprep.mubr.f32.mxu0 0.0
        %2648 = vmatmul.mubr.f32.gmra.mrb[0].mxu0 %v2576
        %v2649 = vpop.f32.mrb[0].mxu0
        %v2650 = vadd.f32 0.0, %v2649
        %v2651 = vpop.f32.mrb[0].mxu0
        %2652 = vdwg.mxu0
        %v2653 = vadd.f32 %v2560, %v2645
        %v2654 = vadd.f32 %v2561, %v2650
        %v2655 = vld [vmem:[%s3] sm:$0xff]
        %v2656 = vld [vmem:[%s3 + $0x8] sm:$0xff]
        %2658 = vset.pattern.permute.xlu0 0
        %2659 = vperm.xlu0 %2658, %v2655
        %v2660 = vpop.permute.xlu0 %2659
        %2663 = vset.pattern.permute.xlu0 0
        %2664 = vperm.xlu0 %2663, %v2656
        %v2665 = vpop.permute.xlu0 %2664
        %v2667 = vadd.f32 %v2653, %v2660
        %v2668 = vadd.f32 %v2654, %v2665
        %v2669 = vmul.f32 %v2667, 0.5
        %v2670 = vmul.f32 %v2668, 0.5
        %v2671 = vmul.f32 %v2667, 0.70710677
        %v2672 = vmul.f32 %v2668, 0.70710677
        %v2673 = vand.u32 2147483647, %v2671
        %v2674 = vand.u32 2147483647, %v2672
        %v2675 = vmul.f32 %v2673, 0.3275911
        %v2676 = vmul.f32 %v2674, 0.3275911
        %v2677 = vadd.f32 %v2675, 1.0
        %v2678 = vadd.f32 %v2676, 1.0
        %v2679 = vrcp.pop %v2677
        %v2680 = vmul.f32 1.0, %v2679
        %v2681 = vrcp.pop %v2678
        %v2682 = vmul.f32 1.0, %v2681
        %v2683 = vmul.f32 %v2680, 1.0614054
        %v2684 = vmul.f32 %v2682, 1.0614054
        %v2685 = vadd.f32 %v2683, -1.4531521
        %v2686 = vadd.f32 %v2684, -1.4531521
        %v2687 = vmul.f32 %v2680, %v2685
        %v2688 = vmul.f32 %v2682, %v2686
        %v2689 = vadd.f32 %v2687, 1.4214138
        %v2690 = vadd.f32 %v2688, 1.4214138
        %v2691 = vmul.f32 %v2680, %v2689
        %v2692 = vmul.f32 %v2682, %v2690
        %v2693 = vadd.f32 %v2691, -0.28449672
        %v2694 = vadd.f32 %v2692, -0.28449672
        %v2695 = vmul.f32 %v2680, %v2693
        %v2696 = vmul.f32 %v2682, %v2694
        %v2697 = vadd.f32 %v2695, 0.2548296
        %v2698 = vadd.f32 %v2696, 0.2548296
        %v2699 = vmul.f32 %v2680, %v2697
        %v2700 = vmul.f32 %v2682, %v2698
        %v2701 = vsub.f32 0.0, %v2673
        %v2702 = vsub.f32 0.0, %v2674
        %v2703 = vmul.f32 %v2701, %v2673
        %v2704 = vmul.f32 %v2702, %v2674
        %v2705 = vmul.f32 %v2703, 1.442695
        %v2706 = vpow.pop %v2705
        %v2707 = vmul.f32 %v2704, 1.442695
        %v2708 = vpow.pop %v2707
        %v2709 = vmul.f32 %v2699, %v2706
        %v2710 = vmul.f32 %v2700, %v2708
        %v2711 = vsub.f32 1.0, %v2709
        %v2712 = vsub.f32 1.0, %v2710
        %vm2713 = vcmp.lt.f32.partialorder %v2671, 0.0
        %vm2714 = vcmp.lt.f32.partialorder %v2672, 0.0
        %v2715 = vsub.f32 0.0, %v2711
        %v2716 = vsub.f32 0.0, %v2712
        %v2717 = vsel %vm2713, %v2715, %v2711
        %v2718 = vsel %vm2714, %v2716, %v2712
        %v2719 = vadd.f32 %v2717, 1.0
        %v2720 = vadd.f32 %v2718, 1.0
        %v2721 = vmul.f32 %v2669, %v2719
        %v2722 = vmul.f32 %v2670, %v2720
        %2723 = vrot.lane.b32.xlu0 %v2721, 6
        %v2724 = vpop.permute.xlu0 %2723
        %2725 = vrot.lane.b32.xlu0 %v2722, 6
        %v2726 = vpop.permute.xlu0 %2725
        %v2727 = vmul.f32 %v2724, %v370
        %v2728 = vmul.f32 %v2726, %v370
        %v2729 = vld [vmem:[%s4] sm:$0xff]
        %2730 = vrot.lane.b32.xlu0 %v2721, 5
        %v2731 = vpop.permute.xlu0 %2730
        %2732 = vrot.lane.b32.xlu0 %v2722, 5
        %v2733 = vpop.permute.xlu0 %2732
        %v2734 = vmul.f32 %v2731, %v379
        %v2735 = vmul.f32 %v2733, %v379
        %s2736 = scalar_lea.vmem %s4, 8
        %v2737 = vld [vmem:[%s2736] sm:$0xff]
        %vm2738 = vcmask 130048
        %v2740 = vsel %vm2738, %v2737, 0
        %2742 = vmatprep.subr.mxu0 0.0
        %2743 = vmatpush1.msra.mxu0 %v2734
        %2744 = vmatprep.subr.mxu0 0.0
        %2745 = vmatpush1.msra.mxu0 %v2735
        %2746 = vmatprep.subr.mxu0 0.0
        %2747 = vmatpush1.msra.mxu0 0.0
        %2748 = vmatprep.subr.mxu0 0.0
        %2749 = vmatpush1.msra.mxu0 0.0
        %2750 = vmatprep.subr.mxu0 0.0
        %2751 = vmatpush1.msra.mxu0 0.0
        %2752 = vmatprep.subr.mxu0 0.0
        %2753 = vmatpush1.msra.mxu0 0.0
        %2754 = vmatprep.subr.mxu0 0.0
        %2755 = vmatpush1.msra.mxu0 0.0
        %2756 = vmatprep.subr.mxu0 0.0
        %2757 = vmatpush1.msra.mxu0 0.0
        %2758 = vmatprep.subr.mxu0 0.0
        %2759 = vmatpush1.msra.mxu0 0.0
        %2760 = vmatprep.subr.mxu0 0.0
        %2761 = vmatpush1.msra.mxu0 0.0
        %2762 = vmatprep.subr.mxu0 0.0
        %2763 = vmatpush1.msra.mxu0 0.0
        %2764 = vmatprep.subr.mxu0 0.0
        %2765 = vmatpush1.msra.mxu0 0.0
        %2766 = vmatprep.subr.mxu0 0.0
        %2767 = vmatpush1.msra.mxu0 0.0
        %2768 = vmatprep.subr.mxu0 0.0
        %2769 = vmatpush1.msra.mxu0 0.0
        %2770 = vmatprep.subr.mxu0 0.0
        %2771 = vmatpush1.msra.mxu0 0.0
        %2772 = vmatprep.subr.mxu0 0.0
        %2773 = vmatpush1.msra.mxu0 0.0
        %2774 = vmatprep.subr.mxu0 0.0
        %2775 = vmatpush1.msra.mxu0 0.0
        %2776 = vmatprep.subr.mxu0 0.0
        %2777 = vmatpush1.msra.mxu0 0.0
        %2778 = vmatprep.subr.mxu0 0.0
        %2779 = vmatpush1.msra.mxu0 0.0
        %2780 = vmatprep.subr.mxu0 0.0
        %2781 = vmatpush1.msra.mxu0 0.0
        %2782 = vmatprep.subr.mxu0 0.0
        %2783 = vmatpush1.msra.mxu0 0.0
        %2784 = vmatprep.subr.mxu0 0.0
        %2785 = vmatpush1.msra.mxu0 0.0
        %2786 = vmatprep.subr.mxu0 0.0
        %2787 = vmatpush1.msra.mxu0 0.0
        %2788 = vmatprep.subr.mxu0 0.0
        %2789 = vmatpush1.msra.mxu0 0.0
        %2790 = vmatprep.subr.mxu0 0.0
        %2791 = vmatpush1.msra.mxu0 0.0
        %2792 = vmatprep.subr.mxu0 0.0
        %2793 = vmatpush1.msra.mxu0 0.0
        %2794 = vmatprep.subr.mxu0 0.0
        %2795 = vmatpush1.msra.mxu0 0.0
        %2796 = vmatprep.subr.mxu0 0.0
        %2797 = vmatpush1.msra.mxu0 0.0
        %2798 = vmatprep.subr.mxu0 0.0
        %2799 = vmatpush1.msra.mxu0 0.0
        %2800 = vmatprep.subr.mxu0 0.0
        %2801 = vmatpush1.msra.mxu0 0.0
        %2802 = vmatprep.subr.mxu0 0.0
        %2803 = vmatpush1.msra.mxu0 0.0
        %2804 = vmatprep.subr.mxu0 0.0
        %2805 = vmatpush1.msra.mxu0 0.0
        %2806 = vmatprep.mubr.f32.mxu0 0.0
        %2807 = vmatmul.mubr.f32.gmra.mrb[0].mxu0 %v2740
        %v2808 = vpop.f32.mrb[0].mxu0
        %v2809 = vadd.f32 0.0, %v2808
        %v2810 = vpop.f32.mrb[0].mxu0
        %2811 = vdwg.mxu0
        %v2813 = vsel %vm2738, %v2729, 0
        %2815 = vmatprep.subr.mxu0 0.0
        %2816 = vmatpush1.msra.mxu0 %v2727
        %2817 = vmatprep.subr.mxu0 0.0
        %2818 = vmatpush1.msra.mxu0 %v2728
        %2819 = vmatprep.subr.mxu0 0.0
        %2820 = vmatpush1.msra.mxu0 0.0
        %2821 = vmatprep.subr.mxu0 0.0
        %2822 = vmatpush1.msra.mxu0 0.0
        %2823 = vmatprep.subr.mxu0 0.0
        %2824 = vmatpush1.msra.mxu0 0.0
        %2825 = vmatprep.subr.mxu0 0.0
        %2826 = vmatpush1.msra.mxu0 0.0
        %2827 = vmatprep.subr.mxu0 0.0
        %2828 = vmatpush1.msra.mxu0 0.0
        %2829 = vmatprep.subr.mxu0 0.0
        %2830 = vmatpush1.msra.mxu0 0.0
        %2831 = vmatprep.subr.mxu0 0.0
        %2832 = vmatpush1.msra.mxu0 0.0
        %2833 = vmatprep.subr.mxu0 0.0
        %2834 = vmatpush1.msra.mxu0 0.0
        %2835 = vmatprep.subr.mxu0 0.0
        %2836 = vmatpush1.msra.mxu0 0.0
        %2837 = vmatprep.subr.mxu0 0.0
        %2838 = vmatpush1.msra.mxu0 0.0
        %2839 = vmatprep.subr.mxu0 0.0
        %2840 = vmatpush1.msra.mxu0 0.0
        %2841 = vmatprep.subr.mxu0 0.0
        %2842 = vmatpush1.msra.mxu0 0.0
        %2843 = vmatprep.subr.mxu0 0.0
        %2844 = vmatpush1.msra.mxu0 0.0
        %2845 = vmatprep.subr.mxu0 0.0
        %2846 = vmatpush1.msra.mxu0 0.0
        %2847 = vmatprep.subr.mxu0 0.0
        %2848 = vmatpush1.msra.mxu0 0.0
        %2849 = vmatprep.subr.mxu0 0.0
        %2850 = vmatpush1.msra.mxu0 0.0
        %2851 = vmatprep.subr.mxu0 0.0
        %2852 = vmatpush1.msra.mxu0 0.0
        %2853 = vmatprep.subr.mxu0 0.0
        %2854 = vmatpush1.msra.mxu0 0.0
        %2855 = vmatprep.subr.mxu0 0.0
        %2856 = vmatpush1.msra.mxu0 0.0
        %2857 = vmatprep.subr.mxu0 0.0
        %2858 = vmatpush1.msra.mxu0 0.0
        %2859 = vmatprep.subr.mxu0 0.0
        %2860 = vmatpush1.msra.mxu0 0.0
        %2861 = vmatprep.subr.mxu0 0.0
        %2862 = vmatpush1.msra.mxu0 0.0
        %2863 = vmatprep.subr.mxu0 0.0
        %2864 = vmatpush1.msra.mxu0 0.0
        %2865 = vmatprep.subr.mxu0 0.0
        %2866 = vmatpush1.msra.mxu0 0.0
        %2867 = vmatprep.subr.mxu0 0.0
        %2868 = vmatpush1.msra.mxu0 0.0
        %2869 = vmatprep.subr.mxu0 0.0
        %2870 = vmatpush1.msra.mxu0 0.0
        %2871 = vmatprep.subr.mxu0 0.0
        %2872 = vmatpush1.msra.mxu0 0.0
        %2873 = vmatprep.subr.mxu0 0.0
        %2874 = vmatpush1.msra.mxu0 0.0
        %2875 = vmatprep.subr.mxu0 0.0
        %2876 = vmatpush1.msra.mxu0 0.0
        %2877 = vmatprep.subr.mxu0 0.0
        %2878 = vmatpush1.msra.mxu0 0.0
        %2879 = vmatprep.mubr.f32.mxu0 0.0
        %2880 = vmatmul.mubr.f32.gmra.mrb[0].mxu0 %v2813
        %v2881 = vpop.f32.mrb[0].mxu0
        %v2882 = vadd.f32 %v2809, %v2881
        %v2883 = vpop.f32.mrb[0].mxu0
        %2884 = vdwg.mxu0
        %2885 = vrot.lane.b32.xlu0 %v2721, 4
        %v2886 = vpop.permute.xlu0 %2885
        %2887 = vrot.lane.b32.xlu0 %v2722, 4
        %v2888 = vpop.permute.xlu0 %2887
        %v2889 = vmul.f32 %v2886, %v552
        %v2890 = vmul.f32 %v2888, %v552
        %s2891 = scalar_lea.vmem %s4, 16
        %v2892 = vld [vmem:[%s2891] sm:$0xff]
        %v2894 = vsel %vm2738, %v2892, 0
        %2896 = vmatprep.subr.mxu0 0.0
        %2897 = vmatpush1.msra.mxu0 %v2889
        %2898 = vmatprep.subr.mxu0 0.0
        %2899 = vmatpush1.msra.mxu0 %v2890
        %2900 = vmatprep.subr.mxu0 0.0
        %2901 = vmatpush1.msra.mxu0 0.0
        %2902 = vmatprep.subr.mxu0 0.0
        %2903 = vmatpush1.msra.mxu0 0.0
        %2904 = vmatprep.subr.mxu0 0.0
        %2905 = vmatpush1.msra.mxu0 0.0
        %2906 = vmatprep.subr.mxu0 0.0
        %2907 = vmatpush1.msra.mxu0 0.0
        %2908 = vmatprep.subr.mxu0 0.0
        %2909 = vmatpush1.msra.mxu0 0.0
        %2910 = vmatprep.subr.mxu0 0.0
        %2911 = vmatpush1.msra.mxu0 0.0
        %2912 = vmatprep.subr.mxu0 0.0
        %2913 = vmatpush1.msra.mxu0 0.0
        %2914 = vmatprep.subr.mxu0 0.0
        %2915 = vmatpush1.msra.mxu0 0.0
        %2916 = vmatprep.subr.mxu0 0.0
        %2917 = vmatpush1.msra.mxu0 0.0
        %2918 = vmatprep.subr.mxu0 0.0
        %2919 = vmatpush1.msra.mxu0 0.0
        %2920 = vmatprep.subr.mxu0 0.0
        %2921 = vmatpush1.msra.mxu0 0.0
        %2922 = vmatprep.subr.mxu0 0.0
        %2923 = vmatpush1.msra.mxu0 0.0
        %2924 = vmatprep.subr.mxu0 0.0
        %2925 = vmatpush1.msra.mxu0 0.0
        %2926 = vmatprep.subr.mxu0 0.0
        %2927 = vmatpush1.msra.mxu0 0.0
        %2928 = vmatprep.subr.mxu0 0.0
        %2929 = vmatpush1.msra.mxu0 0.0
        %2930 = vmatprep.subr.mxu0 0.0
        %2931 = vmatpush1.msra.mxu0 0.0
        %2932 = vmatprep.subr.mxu0 0.0
        %2933 = vmatpush1.msra.mxu0 0.0
        %2934 = vmatprep.subr.mxu0 0.0
        %2935 = vmatpush1.msra.mxu0 0.0
        %2936 = vmatprep.subr.mxu0 0.0
        %2937 = vmatpush1.msra.mxu0 0.0
        %2938 = vmatprep.subr.mxu0 0.0
        %2939 = vmatpush1.msra.mxu0 0.0
        %2940 = vmatprep.subr.mxu0 0.0
        %2941 = vmatpush1.msra.mxu0 0.0
        %2942 = vmatprep.subr.mxu0 0.0
        %2943 = vmatpush1.msra.mxu0 0.0
        %2944 = vmatprep.subr.mxu0 0.0
        %2945 = vmatpush1.msra.mxu0 0.0
        %2946 = vmatprep.subr.mxu0 0.0
        %2947 = vmatpush1.msra.mxu0 0.0
        %2948 = vmatprep.subr.mxu0 0.0
        %2949 = vmatpush1.msra.mxu0 0.0
        %2950 = vmatprep.subr.mxu0 0.0
        %2951 = vmatpush1.msra.mxu0 0.0
        %2952 = vmatprep.subr.mxu0 0.0
        %2953 = vmatpush1.msra.mxu0 0.0
        %2954 = vmatprep.subr.mxu0 0.0
        %2955 = vmatpush1.msra.mxu0 0.0
        %2956 = vmatprep.subr.mxu0 0.0
        %2957 = vmatpush1.msra.mxu0 0.0
        %2958 = vmatprep.subr.mxu0 0.0
        %2959 = vmatpush1.msra.mxu0 0.0
        %2960 = vmatprep.mubr.f32.mxu0 0.0
        %2961 = vmatmul.mubr.f32.gmra.mrb[0].mxu0 %v2894
        %v2962 = vpop.f32.mrb[0].mxu0
        %v2963 = vadd.f32 0.0, %v2962
        %v2964 = vpop.f32.mrb[0].mxu0
        %2965 = vdwg.mxu0
        %v2966 = vadd.f32 %v2882, %v2963
        %2967 = vrot.lane.b32.xlu0 %v2721, 3
        %v2968 = vpop.permute.xlu0 %2967
        %2969 = vrot.lane.b32.xlu0 %v2722, 3
        %v2970 = vpop.permute.xlu0 %2969
        %v2971 = vmul.f32 %v2968, %v645
        %v2972 = vmul.f32 %v2970, %v645
        %s2973 = scalar_lea.vmem %s4, 24
        %v2974 = vld [vmem:[%s2973] sm:$0xff]
        %v2976 = vsel %vm2738, %v2974, 0
        %2978 = vmatprep.subr.mxu0 0.0
        %2979 = vmatpush1.msra.mxu0 %v2971
        %2980 = vmatprep.subr.mxu0 0.0
        %2981 = vmatpush1.msra.mxu0 %v2972
        %2982 = vmatprep.subr.mxu0 0.0
        %2983 = vmatpush1.msra.mxu0 0.0
        %2984 = vmatprep.subr.mxu0 0.0
        %2985 = vmatpush1.msra.mxu0 0.0
        %2986 = vmatprep.subr.mxu0 0.0
        %2987 = vmatpush1.msra.mxu0 0.0
        %2988 = vmatprep.subr.mxu0 0.0
        %2989 = vmatpush1.msra.mxu0 0.0
        %2990 = vmatprep.subr.mxu0 0.0
        %2991 = vmatpush1.msra.mxu0 0.0
        %2992 = vmatprep.subr.mxu0 0.0
        %2993 = vmatpush1.msra.mxu0 0.0
        %2994 = vmatprep.subr.mxu0 0.0
        %2995 = vmatpush1.msra.mxu0 0.0
        %2996 = vmatprep.subr.mxu0 0.0
        %2997 = vmatpush1.msra.mxu0 0.0
        %2998 = vmatprep.subr.mxu0 0.0
        %2999 = vmatpush1.msra.mxu0 0.0
        %3000 = vmatprep.subr.mxu0 0.0
        %3001 = vmatpush1.msra.mxu0 0.0
        %3002 = vmatprep.subr.mxu0 0.0
        %3003 = vmatpush1.msra.mxu0 0.0
        %3004 = vmatprep.subr.mxu0 0.0
        %3005 = vmatpush1.msra.mxu0 0.0
        %3006 = vmatprep.subr.mxu0 0.0
        %3007 = vmatpush1.msra.mxu0 0.0
        %3008 = vmatprep.subr.mxu0 0.0
        %3009 = vmatpush1.msra.mxu0 0.0
        %3010 = vmatprep.subr.mxu0 0.0
        %3011 = vmatpush1.msra.mxu0 0.0
        %3012 = vmatprep.subr.mxu0 0.0
        %3013 = vmatpush1.msra.mxu0 0.0
        %3014 = vmatprep.subr.mxu0 0.0
        %3015 = vmatpush1.msra.mxu0 0.0
        %3016 = vmatprep.subr.mxu0 0.0
        %3017 = vmatpush1.msra.mxu0 0.0
        %3018 = vmatprep.subr.mxu0 0.0
        %3019 = vmatpush1.msra.mxu0 0.0
        %3020 = vmatprep.subr.mxu0 0.0
        %3021 = vmatpush1.msra.mxu0 0.0
        %3022 = vmatprep.subr.mxu0 0.0
        %3023 = vmatpush1.msra.mxu0 0.0
        %3024 = vmatprep.subr.mxu0 0.0
        %3025 = vmatpush1.msra.mxu0 0.0
        %3026 = vmatprep.subr.mxu0 0.0
        %3027 = vmatpush1.msra.mxu0 0.0
        %3028 = vmatprep.subr.mxu0 0.0
        %3029 = vmatpush1.msra.mxu0 0.0
        %3030 = vmatprep.subr.mxu0 0.0
        %3031 = vmatpush1.msra.mxu0 0.0
        %3032 = vmatprep.subr.mxu0 0.0
        %3033 = vmatpush1.msra.mxu0 0.0
        %3034 = vmatprep.subr.mxu0 0.0
        %3035 = vmatpush1.msra.mxu0 0.0
        %3036 = vmatprep.subr.mxu0 0.0
        %3037 = vmatpush1.msra.mxu0 0.0
        %3038 = vmatprep.subr.mxu0 0.0
        %3039 = vmatpush1.msra.mxu0 0.0
        %3040 = vmatprep.subr.mxu0 0.0
        %3041 = vmatpush1.msra.mxu0 0.0
        %3042 = vmatprep.mubr.f32.mxu0 0.0
        %3043 = vmatmul.mubr.f32.gmra.mrb[0].mxu0 %v2976
        %v3044 = vpop.f32.mrb[0].mxu0
        %v3045 = vadd.f32 0.0, %v3044
        %v3046 = vpop.f32.mrb[0].mxu0
        %3047 = vdwg.mxu0
        %v3048 = vadd.f32 %v2966, %v3045
        %3049 = vrot.lane.b32.xlu0 %v2721, 2
        %v3050 = vpop.permute.xlu0 %3049
        %3051 = vrot.lane.b32.xlu0 %v2722, 2
        %v3052 = vpop.permute.xlu0 %3051
        %v3053 = vmul.f32 %v3050, %v738
        %v3054 = vmul.f32 %v3052, %v738
        %s3055 = scalar_lea.vmem %s4, 32
        %v3056 = vld [vmem:[%s3055] sm:$0xff]
        %v3058 = vsel %vm2738, %v3056, 0
        %3060 = vmatprep.subr.mxu0 0.0
        %3061 = vmatpush1.msra.mxu0 %v3053
        %3062 = vmatprep.subr.mxu0 0.0
        %3063 = vmatpush1.msra.mxu0 %v3054
        %3064 = vmatprep.subr.mxu0 0.0
        %3065 = vmatpush1.msra.mxu0 0.0
        %3066 = vmatprep.subr.mxu0 0.0
        %3067 = vmatpush1.msra.mxu0 0.0
        %3068 = vmatprep.subr.mxu0 0.0
        %3069 = vmatpush1.msra.mxu0 0.0
        %3070 = vmatprep.subr.mxu0 0.0
        %3071 = vmatpush1.msra.mxu0 0.0
        %3072 = vmatprep.subr.mxu0 0.0
        %3073 = vmatpush1.msra.mxu0 0.0
        %3074 = vmatprep.subr.mxu0 0.0
        %3075 = vmatpush1.msra.mxu0 0.0
        %3076 = vmatprep.subr.mxu0 0.0
        %3077 = vmatpush1.msra.mxu0 0.0
        %3078 = vmatprep.subr.mxu0 0.0
        %3079 = vmatpush1.msra.mxu0 0.0
        %3080 = vmatprep.subr.mxu0 0.0
        %3081 = vmatpush1.msra.mxu0 0.0
        %3082 = vmatprep.subr.mxu0 0.0
        %3083 = vmatpush1.msra.mxu0 0.0
        %3084 = vmatprep.subr.mxu0 0.0
        %3085 = vmatpush1.msra.mxu0 0.0
        %3086 = vmatprep.subr.mxu0 0.0
        %3087 = vmatpush1.msra.mxu0 0.0
        %3088 = vmatprep.subr.mxu0 0.0
        %3089 = vmatpush1.msra.mxu0 0.0
        %3090 = vmatprep.subr.mxu0 0.0
        %3091 = vmatpush1.msra.mxu0 0.0
        %3092 = vmatprep.subr.mxu0 0.0
        %3093 = vmatpush1.msra.mxu0 0.0
        %3094 = vmatprep.subr.mxu0 0.0
        %3095 = vmatpush1.msra.mxu0 0.0
        %3096 = vmatprep.subr.mxu0 0.0
        %3097 = vmatpush1.msra.mxu0 0.0
        %3098 = vmatprep.subr.mxu0 0.0
        %3099 = vmatpush1.msra.mxu0 0.0
        %3100 = vmatprep.subr.mxu0 0.0
        %3101 = vmatpush1.msra.mxu0 0.0
        %3102 = vmatprep.subr.mxu0 0.0
        %3103 = vmatpush1.msra.mxu0 0.0
        %3104 = vmatprep.subr.mxu0 0.0
        %3105 = vmatpush1.msra.mxu0 0.0
        %3106 = vmatprep.subr.mxu0 0.0
        %3107 = vmatpush1.msra.mxu0 0.0
        %3108 = vmatprep.subr.mxu0 0.0
        %3109 = vmatpush1.msra.mxu0 0.0
        %3110 = vmatprep.subr.mxu0 0.0
        %3111 = vmatpush1.msra.mxu0 0.0
        %3112 = vmatprep.subr.mxu0 0.0
        %3113 = vmatpush1.msra.mxu0 0.0
        %3114 = vmatprep.subr.mxu0 0.0
        %3115 = vmatpush1.msra.mxu0 0.0
        %3116 = vmatprep.subr.mxu0 0.0
        %3117 = vmatpush1.msra.mxu0 0.0
        %3118 = vmatprep.subr.mxu0 0.0
        %3119 = vmatpush1.msra.mxu0 0.0
        %3120 = vmatprep.subr.mxu0 0.0
        %3121 = vmatpush1.msra.mxu0 0.0
        %3122 = vmatprep.subr.mxu0 0.0
        %3123 = vmatpush1.msra.mxu0 0.0
        %3124 = vmatprep.mubr.f32.mxu0 0.0
        %3125 = vmatmul.mubr.f32.gmra.mrb[0].mxu0 %v3058
        %v3126 = vpop.f32.mrb[0].mxu0
        %v3127 = vadd.f32 0.0, %v3126
        %v3128 = vpop.f32.mrb[0].mxu0
        %3129 = vdwg.mxu0
        %v3130 = vadd.f32 %v3048, %v3127
        %v3131 = vmul.f32 %v2886, %v829
        %v3132 = vmul.f32 %v2888, %v829
        %s3133 = scalar_lea.vmem %s4, 40
        %v3134 = vld [vmem:[%s3133] sm:$0xff]
        %v3136 = vsel %vm2738, %v3134, 0
        %3138 = vmatprep.subr.mxu0 0.0
        %3139 = vmatpush1.msra.mxu0 %v3131
        %3140 = vmatprep.subr.mxu0 0.0
        %3141 = vmatpush1.msra.mxu0 %v3132
        %3142 = vmatprep.subr.mxu0 0.0
        %3143 = vmatpush1.msra.mxu0 0.0
        %3144 = vmatprep.subr.mxu0 0.0
        %3145 = vmatpush1.msra.mxu0 0.0
        %3146 = vmatprep.subr.mxu0 0.0
        %3147 = vmatpush1.msra.mxu0 0.0
        %3148 = vmatprep.subr.mxu0 0.0
        %3149 = vmatpush1.msra.mxu0 0.0
        %3150 = vmatprep.subr.mxu0 0.0
        %3151 = vmatpush1.msra.mxu0 0.0
        %3152 = vmatprep.subr.mxu0 0.0
        %3153 = vmatpush1.msra.mxu0 0.0
        %3154 = vmatprep.subr.mxu0 0.0
        %3155 = vmatpush1.msra.mxu0 0.0
        %3156 = vmatprep.subr.mxu0 0.0
        %3157 = vmatpush1.msra.mxu0 0.0
        %3158 = vmatprep.subr.mxu0 0.0
        %3159 = vmatpush1.msra.mxu0 0.0
        %3160 = vmatprep.subr.mxu0 0.0
        %3161 = vmatpush1.msra.mxu0 0.0
        %3162 = vmatprep.subr.mxu0 0.0
        %3163 = vmatpush1.msra.mxu0 0.0
        %3164 = vmatprep.subr.mxu0 0.0
        %3165 = vmatpush1.msra.mxu0 0.0
        %3166 = vmatprep.subr.mxu0 0.0
        %3167 = vmatpush1.msra.mxu0 0.0
        %3168 = vmatprep.subr.mxu0 0.0
        %3169 = vmatpush1.msra.mxu0 0.0
        %3170 = vmatprep.subr.mxu0 0.0
        %3171 = vmatpush1.msra.mxu0 0.0
        %3172 = vmatprep.subr.mxu0 0.0
        %3173 = vmatpush1.msra.mxu0 0.0
        %3174 = vmatprep.subr.mxu0 0.0
        %3175 = vmatpush1.msra.mxu0 0.0
        %3176 = vmatprep.subr.mxu0 0.0
        %3177 = vmatpush1.msra.mxu0 0.0
        %3178 = vmatprep.subr.mxu0 0.0
        %3179 = vmatpush1.msra.mxu0 0.0
        %3180 = vmatprep.subr.mxu0 0.0
        %3181 = vmatpush1.msra.mxu0 0.0
        %3182 = vmatprep.subr.mxu0 0.0
        %3183 = vmatpush1.msra.mxu0 0.0
        %3184 = vmatprep.subr.mxu0 0.0
        %3185 = vmatpush1.msra.mxu0 0.0
        %3186 = vmatprep.subr.mxu0 0.0
        %3187 = vmatpush1.msra.mxu0 0.0
        %3188 = vmatprep.subr.mxu0 0.0
        %3189 = vmatpush1.msra.mxu0 0.0
        %3190 = vmatprep.subr.mxu0 0.0
        %3191 = vmatpush1.msra.mxu0 0.0
        %3192 = vmatprep.subr.mxu0 0.0
        %3193 = vmatpush1.msra.mxu0 0.0
        %3194 = vmatprep.subr.mxu0 0.0
        %3195 = vmatpush1.msra.mxu0 0.0
        %3196 = vmatprep.subr.mxu0 0.0
        %3197 = vmatpush1.msra.mxu0 0.0
        %3198 = vmatprep.subr.mxu0 0.0
        %3199 = vmatpush1.msra.mxu0 0.0
        %3200 = vmatprep.subr.mxu0 0.0
        %3201 = vmatpush1.msra.mxu0 0.0
        %3202 = vmatprep.mubr.f32.mxu0 0.0
        %3203 = vmatmul.mubr.f32.gmra.mrb[0].mxu0 %v3136
        %v3204 = vpop.f32.mrb[0].mxu0
        %v3205 = vadd.f32 0.0, %v3204
        %v3206 = vpop.f32.mrb[0].mxu0
        %3207 = vdwg.mxu0
        %v3208 = vadd.f32 %v3130, %v3205
        %v3209 = vmul.f32 %v2968, %v920
        %v3210 = vmul.f32 %v2970, %v920
        %s3211 = scalar_lea.vmem %s4, 48
        %v3212 = vld [vmem:[%s3211] sm:$0xff]
        %v3214 = vsel %vm2738, %v3212, 0
        %3216 = vmatprep.subr.mxu0 0.0
        %3217 = vmatpush1.msra.mxu0 %v3209
        %3218 = vmatprep.subr.mxu0 0.0
        %3219 = vmatpush1.msra.mxu0 %v3210
        %3220 = vmatprep.subr.mxu0 0.0
        %3221 = vmatpush1.msra.mxu0 0.0
        %3222 = vmatprep.subr.mxu0 0.0
        %3223 = vmatpush1.msra.mxu0 0.0
        %3224 = vmatprep.subr.mxu0 0.0
        %3225 = vmatpush1.msra.mxu0 0.0
        %3226 = vmatprep.subr.mxu0 0.0
        %3227 = vmatpush1.msra.mxu0 0.0
        %3228 = vmatprep.subr.mxu0 0.0
        %3229 = vmatpush1.msra.mxu0 0.0
        %3230 = vmatprep.subr.mxu0 0.0
        %3231 = vmatpush1.msra.mxu0 0.0
        %3232 = vmatprep.subr.mxu0 0.0
        %3233 = vmatpush1.msra.mxu0 0.0
        %3234 = vmatprep.subr.mxu0 0.0
        %3235 = vmatpush1.msra.mxu0 0.0
        %3236 = vmatprep.subr.mxu0 0.0
        %3237 = vmatpush1.msra.mxu0 0.0
        %3238 = vmatprep.subr.mxu0 0.0
        %3239 = vmatpush1.msra.mxu0 0.0
        %3240 = vmatprep.subr.mxu0 0.0
        %3241 = vmatpush1.msra.mxu0 0.0
        %3242 = vmatprep.subr.mxu0 0.0
        %3243 = vmatpush1.msra.mxu0 0.0
        %3244 = vmatprep.subr.mxu0 0.0
        %3245 = vmatpush1.msra.mxu0 0.0
        %3246 = vmatprep.subr.mxu0 0.0
        %3247 = vmatpush1.msra.mxu0 0.0
        %3248 = vmatprep.subr.mxu0 0.0
        %3249 = vmatpush1.msra.mxu0 0.0
        %3250 = vmatprep.subr.mxu0 0.0
        %3251 = vmatpush1.msra.mxu0 0.0
        %3252 = vmatprep.subr.mxu0 0.0
        %3253 = vmatpush1.msra.mxu0 0.0
        %3254 = vmatprep.subr.mxu0 0.0
        %3255 = vmatpush1.msra.mxu0 0.0
        %3256 = vmatprep.subr.mxu0 0.0
        %3257 = vmatpush1.msra.mxu0 0.0
        %3258 = vmatprep.subr.mxu0 0.0
        %3259 = vmatpush1.msra.mxu0 0.0
        %3260 = vmatprep.subr.mxu0 0.0
        %3261 = vmatpush1.msra.mxu0 0.0
        %3262 = vmatprep.subr.mxu0 0.0
        %3263 = vmatpush1.msra.mxu0 0.0
        %3264 = vmatprep.subr.mxu0 0.0
        %3265 = vmatpush1.msra.mxu0 0.0
        %3266 = vmatprep.subr.mxu0 0.0
        %3267 = vmatpush1.msra.mxu0 0.0
        %3268 = vmatprep.subr.mxu0 0.0
        %3269 = vmatpush1.msra.mxu0 0.0
        %3270 = vmatprep.subr.mxu0 0.0
        %3271 = vmatpush1.msra.mxu0 0.0
        %3272 = vmatprep.subr.mxu0 0.0
        %3273 = vmatpush1.msra.mxu0 0.0
        %3274 = vmatprep.subr.mxu0 0.0
        %3275 = vmatpush1.msra.mxu0 0.0
        %3276 = vmatprep.subr.mxu0 0.0
        %3277 = vmatpush1.msra.mxu0 0.0
        %3278 = vmatprep.subr.mxu0 0.0
        %3279 = vmatpush1.msra.mxu0 0.0
        %3280 = vmatprep.mubr.f32.mxu0 0.0
        %3281 = vmatmul.mubr.f32.gmra.mrb[0].mxu0 %v3214
        %v3282 = vpop.f32.mrb[0].mxu0
        %v3283 = vadd.f32 0.0, %v3282
        %v3284 = vpop.f32.mrb[0].mxu0
        %3285 = vdwg.mxu0
        %v3286 = vadd.f32 %v3208, %v3283
        %v3287 = vmul.f32 %v3050, %v1011
        %v3288 = vmul.f32 %v3052, %v1011
        %s3289 = scalar_lea.vmem %s4, 56
        %v3290 = vld [vmem:[%s3289] sm:$0xff]
        %v3292 = vsel %vm2738, %v3290, 0
        %3294 = vmatprep.subr.mxu0 0.0
        %3295 = vmatpush1.msra.mxu0 %v3287
        %3296 = vmatprep.subr.mxu0 0.0
        %3297 = vmatpush1.msra.mxu0 %v3288
        %3298 = vmatprep.subr.mxu0 0.0
        %3299 = vmatpush1.msra.mxu0 0.0
        %3300 = vmatprep.subr.mxu0 0.0
        %3301 = vmatpush1.msra.mxu0 0.0
        %3302 = vmatprep.subr.mxu0 0.0
        %3303 = vmatpush1.msra.mxu0 0.0
        %3304 = vmatprep.subr.mxu0 0.0
        %3305 = vmatpush1.msra.mxu0 0.0
        %3306 = vmatprep.subr.mxu0 0.0
        %3307 = vmatpush1.msra.mxu0 0.0
        %3308 = vmatprep.subr.mxu0 0.0
        %3309 = vmatpush1.msra.mxu0 0.0
        %3310 = vmatprep.subr.mxu0 0.0
        %3311 = vmatpush1.msra.mxu0 0.0
        %3312 = vmatprep.subr.mxu0 0.0
        %3313 = vmatpush1.msra.mxu0 0.0
        %3314 = vmatprep.subr.mxu0 0.0
        %3315 = vmatpush1.msra.mxu0 0.0
        %3316 = vmatprep.subr.mxu0 0.0
        %3317 = vmatpush1.msra.mxu0 0.0
        %3318 = vmatprep.subr.mxu0 0.0
        %3319 = vmatpush1.msra.mxu0 0.0
        %3320 = vmatprep.subr.mxu0 0.0
        %3321 = vmatpush1.msra.mxu0 0.0
        %3322 = vmatprep.subr.mxu0 0.0
        %3323 = vmatpush1.msra.mxu0 0.0
        %3324 = vmatprep.subr.mxu0 0.0
        %3325 = vmatpush1.msra.mxu0 0.0
        %3326 = vmatprep.subr.mxu0 0.0
        %3327 = vmatpush1.msra.mxu0 0.0
        %3328 = vmatprep.subr.mxu0 0.0
        %3329 = vmatpush1.msra.mxu0 0.0
        %3330 = vmatprep.subr.mxu0 0.0
        %3331 = vmatpush1.msra.mxu0 0.0
        %3332 = vmatprep.subr.mxu0 0.0
        %3333 = vmatpush1.msra.mxu0 0.0
        %3334 = vmatprep.subr.mxu0 0.0
        %3335 = vmatpush1.msra.mxu0 0.0
        %3336 = vmatprep.subr.mxu0 0.0
        %3337 = vmatpush1.msra.mxu0 0.0
        %3338 = vmatprep.subr.mxu0 0.0
        %3339 = vmatpush1.msra.mxu0 0.0
        %3340 = vmatprep.subr.mxu0 0.0
        %3341 = vmatpush1.msra.mxu0 0.0
        %3342 = vmatprep.subr.mxu0 0.0
        %3343 = vmatpush1.msra.mxu0 0.0
        %3344 = vmatprep.subr.mxu0 0.0
        %3345 = vmatpush1.msra.mxu0 0.0
        %3346 = vmatprep.subr.mxu0 0.0
        %3347 = vmatpush1.msra.mxu0 0.0
        %3348 = vmatprep.subr.mxu0 0.0
        %3349 = vmatpush1.msra.mxu0 0.0
        %3350 = vmatprep.subr.mxu0 0.0
        %3351 = vmatpush1.msra.mxu0 0.0
        %3352 = vmatprep.subr.mxu0 0.0
        %3353 = vmatpush1.msra.mxu0 0.0
        %3354 = vmatprep.subr.mxu0 0.0
        %3355 = vmatpush1.msra.mxu0 0.0
        %3356 = vmatprep.subr.mxu0 0.0
        %3357 = vmatpush1.msra.mxu0 0.0
        %3358 = vmatprep.mubr.f32.mxu0 0.0
        %3359 = vmatmul.mubr.f32.gmra.mrb[0].mxu0 %v3292
        %v3360 = vpop.f32.mrb[0].mxu0
        %v3361 = vadd.f32 0.0, %v3360
        %v3362 = vpop.f32.mrb[0].mxu0
        %3363 = vdwg.mxu0
        %v3364 = vadd.f32 %v3286, %v3361
        %3365 = vrot.lane.b32.xlu0 %v2721, 1
        %v3366 = vpop.permute.xlu0 %3365
        %3367 = vrot.lane.b32.xlu0 %v2722, 1
        %v3368 = vpop.permute.xlu0 %3367
        %v3369 = vmul.f32 %v3366, %v1104
        %v3370 = vmul.f32 %v3368, %v1104
        %s3371 = scalar_lea.vmem %s4, 64
        %v3372 = vld [vmem:[%s3371] sm:$0xff]
        %v3374 = vsel %vm2738, %v3372, 0
        %3376 = vmatprep.subr.mxu0 0.0
        %3377 = vmatpush1.msra.mxu0 %v3369
        %3378 = vmatprep.subr.mxu0 0.0
        %3379 = vmatpush1.msra.mxu0 %v3370
        %3380 = vmatprep.subr.mxu0 0.0
        %3381 = vmatpush1.msra.mxu0 0.0
        %3382 = vmatprep.subr.mxu0 0.0
        %3383 = vmatpush1.msra.mxu0 0.0
        %3384 = vmatprep.subr.mxu0 0.0
        %3385 = vmatpush1.msra.mxu0 0.0
        %3386 = vmatprep.subr.mxu0 0.0
        %3387 = vmatpush1.msra.mxu0 0.0
        %3388 = vmatprep.subr.mxu0 0.0
        %3389 = vmatpush1.msra.mxu0 0.0
        %3390 = vmatprep.subr.mxu0 0.0
        %3391 = vmatpush1.msra.mxu0 0.0
        %3392 = vmatprep.subr.mxu0 0.0
        %3393 = vmatpush1.msra.mxu0 0.0
        %3394 = vmatprep.subr.mxu0 0.0
        %3395 = vmatpush1.msra.mxu0 0.0
        %3396 = vmatprep.subr.mxu0 0.0
        %3397 = vmatpush1.msra.mxu0 0.0
        %3398 = vmatprep.subr.mxu0 0.0
        %3399 = vmatpush1.msra.mxu0 0.0
        %3400 = vmatprep.subr.mxu0 0.0
        %3401 = vmatpush1.msra.mxu0 0.0
        %3402 = vmatprep.subr.mxu0 0.0
        %3403 = vmatpush1.msra.mxu0 0.0
        %3404 = vmatprep.subr.mxu0 0.0
        %3405 = vmatpush1.msra.mxu0 0.0
        %3406 = vmatprep.subr.mxu0 0.0
        %3407 = vmatpush1.msra.mxu0 0.0
        %3408 = vmatprep.subr.mxu0 0.0
        %3409 = vmatpush1.msra.mxu0 0.0
        %3410 = vmatprep.subr.mxu0 0.0
        %3411 = vmatpush1.msra.mxu0 0.0
        %3412 = vmatprep.subr.mxu0 0.0
        %3413 = vmatpush1.msra.mxu0 0.0
        %3414 = vmatprep.subr.mxu0 0.0
        %3415 = vmatpush1.msra.mxu0 0.0
        %3416 = vmatprep.subr.mxu0 0.0
        %3417 = vmatpush1.msra.mxu0 0.0
        %3418 = vmatprep.subr.mxu0 0.0
        %3419 = vmatpush1.msra.mxu0 0.0
        %3420 = vmatprep.subr.mxu0 0.0
        %3421 = vmatpush1.msra.mxu0 0.0
        %3422 = vmatprep.subr.mxu0 0.0
        %3423 = vmatpush1.msra.mxu0 0.0
        %3424 = vmatprep.subr.mxu0 0.0
        %3425 = vmatpush1.msra.mxu0 0.0
        %3426 = vmatprep.subr.mxu0 0.0
        %3427 = vmatpush1.msra.mxu0 0.0
        %3428 = vmatprep.subr.mxu0 0.0
        %3429 = vmatpush1.msra.mxu0 0.0
        %3430 = vmatprep.subr.mxu0 0.0
        %3431 = vmatpush1.msra.mxu0 0.0
        %3432 = vmatprep.subr.mxu0 0.0
        %3433 = vmatpush1.msra.mxu0 0.0
        %3434 = vmatprep.subr.mxu0 0.0
        %3435 = vmatpush1.msra.mxu0 0.0
        %3436 = vmatprep.subr.mxu0 0.0
        %3437 = vmatpush1.msra.mxu0 0.0
        %3438 = vmatprep.subr.mxu0 0.0
        %3439 = vmatpush1.msra.mxu0 0.0
        %3440 = vmatprep.mubr.f32.mxu0 0.0
        %3441 = vmatmul.mubr.f32.gmra.mrb[0].mxu0 %v3374
        %v3442 = vpop.f32.mrb[0].mxu0
        %v3443 = vadd.f32 0.0, %v3442
        %v3444 = vpop.f32.mrb[0].mxu0
        %3445 = vdwg.mxu0
        %v3446 = vadd.f32 %v3364, %v3443
        %v3447 = vmul.f32 %v2721, %v1195
        %v3448 = vmul.f32 %v2722, %v1195
        %s3449 = scalar_lea.vmem %s4, 72
        %v3450 = vld [vmem:[%s3449] sm:$0xff]
        %v3452 = vsel %vm2738, %v3450, 0
        %3454 = vmatprep.subr.mxu0 0.0
        %3455 = vmatpush1.msra.mxu0 %v3447
        %3456 = vmatprep.subr.mxu0 0.0
        %3457 = vmatpush1.msra.mxu0 %v3448
        %3458 = vmatprep.subr.mxu0 0.0
        %3459 = vmatpush1.msra.mxu0 0.0
        %3460 = vmatprep.subr.mxu0 0.0
        %3461 = vmatpush1.msra.mxu0 0.0
        %3462 = vmatprep.subr.mxu0 0.0
        %3463 = vmatpush1.msra.mxu0 0.0
        %3464 = vmatprep.subr.mxu0 0.0
        %3465 = vmatpush1.msra.mxu0 0.0
        %3466 = vmatprep.subr.mxu0 0.0
        %3467 = vmatpush1.msra.mxu0 0.0
        %3468 = vmatprep.subr.mxu0 0.0
        %3469 = vmatpush1.msra.mxu0 0.0
        %3470 = vmatprep.subr.mxu0 0.0
        %3471 = vmatpush1.msra.mxu0 0.0
        %3472 = vmatprep.subr.mxu0 0.0
        %3473 = vmatpush1.msra.mxu0 0.0
        %3474 = vmatprep.subr.mxu0 0.0
        %3475 = vmatpush1.msra.mxu0 0.0
        %3476 = vmatprep.subr.mxu0 0.0
        %3477 = vmatpush1.msra.mxu0 0.0
        %3478 = vmatprep.subr.mxu0 0.0
        %3479 = vmatpush1.msra.mxu0 0.0
        %3480 = vmatprep.subr.mxu0 0.0
        %3481 = vmatpush1.msra.mxu0 0.0
        %3482 = vmatprep.subr.mxu0 0.0
        %3483 = vmatpush1.msra.mxu0 0.0
        %3484 = vmatprep.subr.mxu0 0.0
        %3485 = vmatpush1.msra.mxu0 0.0
        %3486 = vmatprep.subr.mxu0 0.0
        %3487 = vmatpush1.msra.mxu0 0.0
        %3488 = vmatprep.subr.mxu0 0.0
        %3489 = vmatpush1.msra.mxu0 0.0
        %3490 = vmatprep.subr.mxu0 0.0
        %3491 = vmatpush1.msra.mxu0 0.0
        %3492 = vmatprep.subr.mxu0 0.0
        %3493 = vmatpush1.msra.mxu0 0.0
        %3494 = vmatprep.subr.mxu0 0.0
        %3495 = vmatpush1.msra.mxu0 0.0
        %3496 = vmatprep.subr.mxu0 0.0
        %3497 = vmatpush1.msra.mxu0 0.0
        %3498 = vmatprep.subr.mxu0 0.0
        %3499 = vmatpush1.msra.mxu0 0.0
        %3500 = vmatprep.subr.mxu0 0.0
        %3501 = vmatpush1.msra.mxu0 0.0
        %3502 = vmatprep.subr.mxu0 0.0
        %3503 = vmatpush1.msra.mxu0 0.0
        %3504 = vmatprep.subr.mxu0 0.0
        %3505 = vmatpush1.msra.mxu0 0.0
        %3506 = vmatprep.subr.mxu0 0.0
        %3507 = vmatpush1.msra.mxu0 0.0
        %3508 = vmatprep.subr.mxu0 0.0
        %3509 = vmatpush1.msra.mxu0 0.0
        %3510 = vmatprep.subr.mxu0 0.0
        %3511 = vmatpush1.msra.mxu0 0.0
        %3512 = vmatprep.subr.mxu0 0.0
        %3513 = vmatpush1.msra.mxu0 0.0
        %3514 = vmatprep.subr.mxu0 0.0
        %3515 = vmatpush1.msra.mxu0 0.0
        %3516 = vmatprep.subr.mxu0 0.0
        %3517 = vmatpush1.msra.mxu0 0.0
        %3518 = vmatprep.mubr.f32.mxu0 0.0
        %3519 = vmatmul.mubr.f32.gmra.mrb[0].mxu0 %v3452
        %v3520 = vpop.f32.mrb[0].mxu0
        %v3521 = vadd.f32 0.0, %v3520
        %v3522 = vpop.f32.mrb[0].mxu0
        %3523 = vdwg.mxu0
        %v3524 = vadd.f32 %v3446, %v3521
        %v3525 = vmul.f32 %v3050, %v1286
        %v3526 = vmul.f32 %v3052, %v1286
        %s3527 = scalar_lea.vmem %s4, 80
        %v3528 = vld [vmem:[%s3527] sm:$0xff]
        %v3530 = vsel %vm2738, %v3528, 0
        %3532 = vmatprep.subr.mxu0 0.0
        %3533 = vmatpush1.msra.mxu0 %v3525
        %3534 = vmatprep.subr.mxu0 0.0
        %3535 = vmatpush1.msra.mxu0 %v3526
        %3536 = vmatprep.subr.mxu0 0.0
        %3537 = vmatpush1.msra.mxu0 0.0
        %3538 = vmatprep.subr.mxu0 0.0
        %3539 = vmatpush1.msra.mxu0 0.0
        %3540 = vmatprep.subr.mxu0 0.0
        %3541 = vmatpush1.msra.mxu0 0.0
        %3542 = vmatprep.subr.mxu0 0.0
        %3543 = vmatpush1.msra.mxu0 0.0
        %3544 = vmatprep.subr.mxu0 0.0
        %3545 = vmatpush1.msra.mxu0 0.0
        %3546 = vmatprep.subr.mxu0 0.0
        %3547 = vmatpush1.msra.mxu0 0.0
        %3548 = vmatprep.subr.mxu0 0.0
        %3549 = vmatpush1.msra.mxu0 0.0
        %3550 = vmatprep.subr.mxu0 0.0
        %3551 = vmatpush1.msra.mxu0 0.0
        %3552 = vmatprep.subr.mxu0 0.0
        %3553 = vmatpush1.msra.mxu0 0.0
        %3554 = vmatprep.subr.mxu0 0.0
        %3555 = vmatpush1.msra.mxu0 0.0
        %3556 = vmatprep.subr.mxu0 0.0
        %3557 = vmatpush1.msra.mxu0 0.0
        %3558 = vmatprep.subr.mxu0 0.0
        %3559 = vmatpush1.msra.mxu0 0.0
        %3560 = vmatprep.subr.mxu0 0.0
        %3561 = vmatpush1.msra.mxu0 0.0
        %3562 = vmatprep.subr.mxu0 0.0
        %3563 = vmatpush1.msra.mxu0 0.0
        %3564 = vmatprep.subr.mxu0 0.0
        %3565 = vmatpush1.msra.mxu0 0.0
        %3566 = vmatprep.subr.mxu0 0.0
        %3567 = vmatpush1.msra.mxu0 0.0
        %3568 = vmatprep.subr.mxu0 0.0
        %3569 = vmatpush1.msra.mxu0 0.0
        %3570 = vmatprep.subr.mxu0 0.0
        %3571 = vmatpush1.msra.mxu0 0.0
        %3572 = vmatprep.subr.mxu0 0.0
        %3573 = vmatpush1.msra.mxu0 0.0
        %3574 = vmatprep.subr.mxu0 0.0
        %3575 = vmatpush1.msra.mxu0 0.0
        %3576 = vmatprep.subr.mxu0 0.0
        %3577 = vmatpush1.msra.mxu0 0.0
        %3578 = vmatprep.subr.mxu0 0.0
        %3579 = vmatpush1.msra.mxu0 0.0
        %3580 = vmatprep.subr.mxu0 0.0
        %3581 = vmatpush1.msra.mxu0 0.0
        %3582 = vmatprep.subr.mxu0 0.0
        %3583 = vmatpush1.msra.mxu0 0.0
        %3584 = vmatprep.subr.mxu0 0.0
        %3585 = vmatpush1.msra.mxu0 0.0
        %3586 = vmatprep.subr.mxu0 0.0
        %3587 = vmatpush1.msra.mxu0 0.0
        %3588 = vmatprep.subr.mxu0 0.0
        %3589 = vmatpush1.msra.mxu0 0.0
        %3590 = vmatprep.subr.mxu0 0.0
        %3591 = vmatpush1.msra.mxu0 0.0
        %3592 = vmatprep.subr.mxu0 0.0
        %3593 = vmatpush1.msra.mxu0 0.0
        %3594 = vmatprep.subr.mxu0 0.0
        %3595 = vmatpush1.msra.mxu0 0.0
        %3596 = vmatprep.mubr.f32.mxu0 0.0
        %3597 = vmatmul.mubr.f32.gmra.mrb[0].mxu0 %v3530
        %v3598 = vpop.f32.mrb[0].mxu0
        %v3599 = vadd.f32 0.0, %v3598
        %v3600 = vpop.f32.mrb[0].mxu0
        %3601 = vdwg.mxu0
        %v3602 = vadd.f32 %v3524, %v3599
        %v3603 = vmul.f32 %v3366, %v1377
        %v3604 = vmul.f32 %v3368, %v1377
        %s3605 = scalar_lea.vmem %s4, 88
        %v3606 = vld [vmem:[%s3605] sm:$0xff]
        %v3608 = vsel %vm2738, %v3606, 0
        %3610 = vmatprep.subr.mxu0 0.0
        %3611 = vmatpush1.msra.mxu0 %v3603
        %3612 = vmatprep.subr.mxu0 0.0
        %3613 = vmatpush1.msra.mxu0 %v3604
        %3614 = vmatprep.subr.mxu0 0.0
        %3615 = vmatpush1.msra.mxu0 0.0
        %3616 = vmatprep.subr.mxu0 0.0
        %3617 = vmatpush1.msra.mxu0 0.0
        %3618 = vmatprep.subr.mxu0 0.0
        %3619 = vmatpush1.msra.mxu0 0.0
        %3620 = vmatprep.subr.mxu0 0.0
        %3621 = vmatpush1.msra.mxu0 0.0
        %3622 = vmatprep.subr.mxu0 0.0
        %3623 = vmatpush1.msra.mxu0 0.0
        %3624 = vmatprep.subr.mxu0 0.0
        %3625 = vmatpush1.msra.mxu0 0.0
        %3626 = vmatprep.subr.mxu0 0.0
        %3627 = vmatpush1.msra.mxu0 0.0
        %3628 = vmatprep.subr.mxu0 0.0
        %3629 = vmatpush1.msra.mxu0 0.0
        %3630 = vmatprep.subr.mxu0 0.0
        %3631 = vmatpush1.msra.mxu0 0.0
        %3632 = vmatprep.subr.mxu0 0.0
        %3633 = vmatpush1.msra.mxu0 0.0
        %3634 = vmatprep.subr.mxu0 0.0
        %3635 = vmatpush1.msra.mxu0 0.0
        %3636 = vmatprep.subr.mxu0 0.0
        %3637 = vmatpush1.msra.mxu0 0.0
        %3638 = vmatprep.subr.mxu0 0.0
        %3639 = vmatpush1.msra.mxu0 0.0
        %3640 = vmatprep.subr.mxu0 0.0
        %3641 = vmatpush1.msra.mxu0 0.0
        %3642 = vmatprep.subr.mxu0 0.0
        %3643 = vmatpush1.msra.mxu0 0.0
        %3644 = vmatprep.subr.mxu0 0.0
        %3645 = vmatpush1.msra.mxu0 0.0
        %3646 = vmatprep.subr.mxu0 0.0
        %3647 = vmatpush1.msra.mxu0 0.0
        %3648 = vmatprep.subr.mxu0 0.0
        %3649 = vmatpush1.msra.mxu0 0.0
        %3650 = vmatprep.subr.mxu0 0.0
        %3651 = vmatpush1.msra.mxu0 0.0
        %3652 = vmatprep.subr.mxu0 0.0
        %3653 = vmatpush1.msra.mxu0 0.0
        %3654 = vmatprep.subr.mxu0 0.0
        %3655 = vmatpush1.msra.mxu0 0.0
        %3656 = vmatprep.subr.mxu0 0.0
        %3657 = vmatpush1.msra.mxu0 0.0
        %3658 = vmatprep.subr.mxu0 0.0
        %3659 = vmatpush1.msra.mxu0 0.0
        %3660 = vmatprep.subr.mxu0 0.0
        %3661 = vmatpush1.msra.mxu0 0.0
        %3662 = vmatprep.subr.mxu0 0.0
        %3663 = vmatpush1.msra.mxu0 0.0
        %3664 = vmatprep.subr.mxu0 0.0
        %3665 = vmatpush1.msra.mxu0 0.0
        %3666 = vmatprep.subr.mxu0 0.0
        %3667 = vmatpush1.msra.mxu0 0.0
        %3668 = vmatprep.subr.mxu0 0.0
        %3669 = vmatpush1.msra.mxu0 0.0
        %3670 = vmatprep.subr.mxu0 0.0
        %3671 = vmatpush1.msra.mxu0 0.0
        %3672 = vmatprep.subr.mxu0 0.0
        %3673 = vmatpush1.msra.mxu0 0.0
        %3674 = vmatprep.mubr.f32.mxu0 0.0
        %3675 = vmatmul.mubr.f32.gmra.mrb[0].mxu0 %v3608
        %v3676 = vpop.f32.mrb[0].mxu0
        %v3677 = vadd.f32 0.0, %v3676
        %v3678 = vpop.f32.mrb[0].mxu0
        %3679 = vdwg.mxu0
        %v3680 = vadd.f32 %v3602, %v3677
        %s3681 = scalar_lea.vmem %s4, 96
        %v3682 = vld [vmem:[%s3681] sm:$0xff]
        %v3684 = vsel %vm2738, %v3682, 0
        %3686 = vmatprep.subr.mxu0 0.0
        %3687 = vmatpush1.msra.mxu0 %v2721
        %3688 = vmatprep.subr.mxu0 0.0
        %3689 = vmatpush1.msra.mxu0 %v2722
        %3690 = vmatprep.subr.mxu0 0.0
        %3691 = vmatpush1.msra.mxu0 0.0
        %3692 = vmatprep.subr.mxu0 0.0
        %3693 = vmatpush1.msra.mxu0 0.0
        %3694 = vmatprep.subr.mxu0 0.0
        %3695 = vmatpush1.msra.mxu0 0.0
        %3696 = vmatprep.subr.mxu0 0.0
        %3697 = vmatpush1.msra.mxu0 0.0
        %3698 = vmatprep.subr.mxu0 0.0
        %3699 = vmatpush1.msra.mxu0 0.0
        %3700 = vmatprep.subr.mxu0 0.0
        %3701 = vmatpush1.msra.mxu0 0.0
        %3702 = vmatprep.subr.mxu0 0.0
        %3703 = vmatpush1.msra.mxu0 0.0
        %3704 = vmatprep.subr.mxu0 0.0
        %3705 = vmatpush1.msra.mxu0 0.0
        %3706 = vmatprep.subr.mxu0 0.0
        %3707 = vmatpush1.msra.mxu0 0.0
        %3708 = vmatprep.subr.mxu0 0.0
        %3709 = vmatpush1.msra.mxu0 0.0
        %3710 = vmatprep.subr.mxu0 0.0
        %3711 = vmatpush1.msra.mxu0 0.0
        %3712 = vmatprep.subr.mxu0 0.0
        %3713 = vmatpush1.msra.mxu0 0.0
        %3714 = vmatprep.subr.mxu0 0.0
        %3715 = vmatpush1.msra.mxu0 0.0
        %3716 = vmatprep.subr.mxu0 0.0
        %3717 = vmatpush1.msra.mxu0 0.0
        %3718 = vmatprep.subr.mxu0 0.0
        %3719 = vmatpush1.msra.mxu0 0.0
        %3720 = vmatprep.subr.mxu0 0.0
        %3721 = vmatpush1.msra.mxu0 0.0
        %3722 = vmatprep.subr.mxu0 0.0
        %3723 = vmatpush1.msra.mxu0 0.0
        %3724 = vmatprep.subr.mxu0 0.0
        %3725 = vmatpush1.msra.mxu0 0.0
        %3726 = vmatprep.subr.mxu0 0.0
        %3727 = vmatpush1.msra.mxu0 0.0
        %3728 = vmatprep.subr.mxu0 0.0
        %3729 = vmatpush1.msra.mxu0 0.0
        %3730 = vmatprep.subr.mxu0 0.0
        %3731 = vmatpush1.msra.mxu0 0.0
        %3732 = vmatprep.subr.mxu0 0.0
        %3733 = vmatpush1.msra.mxu0 0.0
        %3734 = vmatprep.subr.mxu0 0.0
        %3735 = vmatpush1.msra.mxu0 0.0
        %3736 = vmatprep.subr.mxu0 0.0
        %3737 = vmatpush1.msra.mxu0 0.0
        %3738 = vmatprep.subr.mxu0 0.0
        %3739 = vmatpush1.msra.mxu0 0.0
        %3740 = vmatprep.subr.mxu0 0.0
        %3741 = vmatpush1.msra.mxu0 0.0
        %3742 = vmatprep.subr.mxu0 0.0
        %3743 = vmatpush1.msra.mxu0 0.0
        %3744 = vmatprep.subr.mxu0 0.0
        %3745 = vmatpush1.msra.mxu0 0.0
        %3746 = vmatprep.subr.mxu0 0.0
        %3747 = vmatpush1.msra.mxu0 0.0
        %3748 = vmatprep.subr.mxu0 0.0
        %3749 = vmatpush1.msra.mxu0 0.0
        %3750 = vmatprep.mubr.f32.mxu0 0.0
        %3751 = vmatmul.mubr.f32.gmra.mrb[0].mxu0 %v3684
        %v3752 = vpop.f32.mrb[0].mxu0
        %v3753 = vadd.f32 0.0, %v3752
        %v3754 = vpop.f32.mrb[0].mxu0
        %3755 = vdwg.mxu0
        %v3756 = vadd.f32 %v3680, %v3753
        %3757 = vrot.lane.b32.xlu0 %v2721, 127
        %v3758 = vpop.permute.xlu0 %3757
        %3759 = vrot.lane.b32.xlu0 %v2722, 127
        %v3760 = vpop.permute.xlu0 %3759
        %v3761 = vmul.f32 %v3758, %v1556
        %v3762 = vmul.f32 %v3760, %v1556
        %s3763 = scalar_lea.vmem %s4, 104
        %v3764 = vld [vmem:[%s3763] sm:$0xff]
        %v3766 = vsel %vm2738, %v3764, 0
        %3768 = vmatprep.subr.mxu0 0.0
        %3769 = vmatpush1.msra.mxu0 %v3761
        %3770 = vmatprep.subr.mxu0 0.0
        %3771 = vmatpush1.msra.mxu0 %v3762
        %3772 = vmatprep.subr.mxu0 0.0
        %3773 = vmatpush1.msra.mxu0 0.0
        %3774 = vmatprep.subr.mxu0 0.0
        %3775 = vmatpush1.msra.mxu0 0.0
        %3776 = vmatprep.subr.mxu0 0.0
        %3777 = vmatpush1.msra.mxu0 0.0
        %3778 = vmatprep.subr.mxu0 0.0
        %3779 = vmatpush1.msra.mxu0 0.0
        %3780 = vmatprep.subr.mxu0 0.0
        %3781 = vmatpush1.msra.mxu0 0.0
        %3782 = vmatprep.subr.mxu0 0.0
        %3783 = vmatpush1.msra.mxu0 0.0
        %3784 = vmatprep.subr.mxu0 0.0
        %3785 = vmatpush1.msra.mxu0 0.0
        %3786 = vmatprep.subr.mxu0 0.0
        %3787 = vmatpush1.msra.mxu0 0.0
        %3788 = vmatprep.subr.mxu0 0.0
        %3789 = vmatpush1.msra.mxu0 0.0
        %3790 = vmatprep.subr.mxu0 0.0
        %3791 = vmatpush1.msra.mxu0 0.0
        %3792 = vmatprep.subr.mxu0 0.0
        %3793 = vmatpush1.msra.mxu0 0.0
        %3794 = vmatprep.subr.mxu0 0.0
        %3795 = vmatpush1.msra.mxu0 0.0
        %3796 = vmatprep.subr.mxu0 0.0
        %3797 = vmatpush1.msra.mxu0 0.0
        %3798 = vmatprep.subr.mxu0 0.0
        %3799 = vmatpush1.msra.mxu0 0.0
        %3800 = vmatprep.subr.mxu0 0.0
        %3801 = vmatpush1.msra.mxu0 0.0
        %3802 = vmatprep.subr.mxu0 0.0
        %3803 = vmatpush1.msra.mxu0 0.0
        %3804 = vmatprep.subr.mxu0 0.0
        %3805 = vmatpush1.msra.mxu0 0.0
        %3806 = vmatprep.subr.mxu0 0.0
        %3807 = vmatpush1.msra.mxu0 0.0
        %3808 = vmatprep.subr.mxu0 0.0
        %3809 = vmatpush1.msra.mxu0 0.0
        %3810 = vmatprep.subr.mxu0 0.0
        %3811 = vmatpush1.msra.mxu0 0.0
        %3812 = vmatprep.subr.mxu0 0.0
        %3813 = vmatpush1.msra.mxu0 0.0
        %3814 = vmatprep.subr.mxu0 0.0
        %3815 = vmatpush1.msra.mxu0 0.0
        %3816 = vmatprep.subr.mxu0 0.0
        %3817 = vmatpush1.msra.mxu0 0.0
        %3818 = vmatprep.subr.mxu0 0.0
        %3819 = vmatpush1.msra.mxu0 0.0
        %3820 = vmatprep.subr.mxu0 0.0
        %3821 = vmatpush1.msra.mxu0 0.0
        %3822 = vmatprep.subr.mxu0 0.0
        %3823 = vmatpush1.msra.mxu0 0.0
        %3824 = vmatprep.subr.mxu0 0.0
        %3825 = vmatpush1.msra.mxu0 0.0
        %3826 = vmatprep.subr.mxu0 0.0
        %3827 = vmatpush1.msra.mxu0 0.0
        %3828 = vmatprep.subr.mxu0 0.0
        %3829 = vmatpush1.msra.mxu0 0.0
        %3830 = vmatprep.subr.mxu0 0.0
        %3831 = vmatpush1.msra.mxu0 0.0
        %3832 = vmatprep.mubr.f32.mxu0 0.0
        %3833 = vmatmul.mubr.f32.gmra.mrb[0].mxu0 %v3766
        %v3834 = vpop.f32.mrb[0].mxu0
        %v3835 = vadd.f32 0.0, %v3834
        %v3836 = vpop.f32.mrb[0].mxu0
        %3837 = vdwg.mxu0
        %v3838 = vadd.f32 %v3756, %v3835
        %3839 = vrot.lane.b32.xlu0 %v2721, 126
        %v3840 = vpop.permute.xlu0 %3839
        %3841 = vrot.lane.b32.xlu0 %v2722, 126
        %v3842 = vpop.permute.xlu0 %3841
        %v3843 = vmul.f32 %v3840, %v1649
        %v3844 = vmul.f32 %v3842, %v1649
        %s3845 = scalar_lea.vmem %s4, 112
        %v3846 = vld [vmem:[%s3845] sm:$0xff]
        %v3848 = vsel %vm2738, %v3846, 0
        %3850 = vmatprep.subr.mxu0 0.0
        %3851 = vmatpush1.msra.mxu0 %v3843
        %3852 = vmatprep.subr.mxu0 0.0
        %3853 = vmatpush1.msra.mxu0 %v3844
        %3854 = vmatprep.subr.mxu0 0.0
        %3855 = vmatpush1.msra.mxu0 0.0
        %3856 = vmatprep.subr.mxu0 0.0
        %3857 = vmatpush1.msra.mxu0 0.0
        %3858 = vmatprep.subr.mxu0 0.0
        %3859 = vmatpush1.msra.mxu0 0.0
        %3860 = vmatprep.subr.mxu0 0.0
        %3861 = vmatpush1.msra.mxu0 0.0
        %3862 = vmatprep.subr.mxu0 0.0
        %3863 = vmatpush1.msra.mxu0 0.0
        %3864 = vmatprep.subr.mxu0 0.0
        %3865 = vmatpush1.msra.mxu0 0.0
        %3866 = vmatprep.subr.mxu0 0.0
        %3867 = vmatpush1.msra.mxu0 0.0
        %3868 = vmatprep.subr.mxu0 0.0
        %3869 = vmatpush1.msra.mxu0 0.0
        %3870 = vmatprep.subr.mxu0 0.0
        %3871 = vmatpush1.msra.mxu0 0.0
        %3872 = vmatprep.subr.mxu0 0.0
        %3873 = vmatpush1.msra.mxu0 0.0
        %3874 = vmatprep.subr.mxu0 0.0
        %3875 = vmatpush1.msra.mxu0 0.0
        %3876 = vmatprep.subr.mxu0 0.0
        %3877 = vmatpush1.msra.mxu0 0.0
        %3878 = vmatprep.subr.mxu0 0.0
        %3879 = vmatpush1.msra.mxu0 0.0
        %3880 = vmatprep.subr.mxu0 0.0
        %3881 = vmatpush1.msra.mxu0 0.0
        %3882 = vmatprep.subr.mxu0 0.0
        %3883 = vmatpush1.msra.mxu0 0.0
        %3884 = vmatprep.subr.mxu0 0.0
        %3885 = vmatpush1.msra.mxu0 0.0
        %3886 = vmatprep.subr.mxu0 0.0
        %3887 = vmatpush1.msra.mxu0 0.0
        %3888 = vmatprep.subr.mxu0 0.0
        %3889 = vmatpush1.msra.mxu0 0.0
        %3890 = vmatprep.subr.mxu0 0.0
        %3891 = vmatpush1.msra.mxu0 0.0
        %3892 = vmatprep.subr.mxu0 0.0
        %3893 = vmatpush1.msra.mxu0 0.0
        %3894 = vmatprep.subr.mxu0 0.0
        %3895 = vmatpush1.msra.mxu0 0.0
        %3896 = vmatprep.subr.mxu0 0.0
        %3897 = vmatpush1.msra.mxu0 0.0
        %3898 = vmatprep.subr.mxu0 0.0
        %3899 = vmatpush1.msra.mxu0 0.0
        %3900 = vmatprep.subr.mxu0 0.0
        %3901 = vmatpush1.msra.mxu0 0.0
        %3902 = vmatprep.subr.mxu0 0.0
        %3903 = vmatpush1.msra.mxu0 0.0
        %3904 = vmatprep.subr.mxu0 0.0
        %3905 = vmatpush1.msra.mxu0 0.0
        %3906 = vmatprep.subr.mxu0 0.0
        %3907 = vmatpush1.msra.mxu0 0.0
        %3908 = vmatprep.subr.mxu0 0.0
        %3909 = vmatpush1.msra.mxu0 0.0
        %3910 = vmatprep.subr.mxu0 0.0
        %3911 = vmatpush1.msra.mxu0 0.0
        %3912 = vmatprep.subr.mxu0 0.0
        %3913 = vmatpush1.msra.mxu0 0.0
        %3914 = vmatprep.mubr.f32.mxu0 0.0
        %3915 = vmatmul.mubr.f32.gmra.mrb[0].mxu0 %v3848
        %v3916 = vpop.f32.mrb[0].mxu0
        %v3917 = vadd.f32 0.0, %v3916
        %v3918 = vpop.f32.mrb[0].mxu0
        %3919 = vdwg.mxu0
        %v3920 = vadd.f32 %v3838, %v3917
        %v3921 = vmul.f32 %v2721, %v1740
        %v3922 = vmul.f32 %v2722, %v1740
        %s3923 = scalar_lea.vmem %s4, 120
        %v3924 = vld [vmem:[%s3923] sm:$0xff]
        %v3926 = vsel %vm2738, %v3924, 0
        %3928 = vmatprep.subr.mxu0 0.0
        %3929 = vmatpush1.msra.mxu0 %v3921
        %3930 = vmatprep.subr.mxu0 0.0
        %3931 = vmatpush1.msra.mxu0 %v3922
        %3932 = vmatprep.subr.mxu0 0.0
        %3933 = vmatpush1.msra.mxu0 0.0
        %3934 = vmatprep.subr.mxu0 0.0
        %3935 = vmatpush1.msra.mxu0 0.0
        %3936 = vmatprep.subr.mxu0 0.0
        %3937 = vmatpush1.msra.mxu0 0.0
        %3938 = vmatprep.subr.mxu0 0.0
        %3939 = vmatpush1.msra.mxu0 0.0
        %3940 = vmatprep.subr.mxu0 0.0
        %3941 = vmatpush1.msra.mxu0 0.0
        %3942 = vmatprep.subr.mxu0 0.0
        %3943 = vmatpush1.msra.mxu0 0.0
        %3944 = vmatprep.subr.mxu0 0.0
        %3945 = vmatpush1.msra.mxu0 0.0
        %3946 = vmatprep.subr.mxu0 0.0
        %3947 = vmatpush1.msra.mxu0 0.0
        %3948 = vmatprep.subr.mxu0 0.0
        %3949 = vmatpush1.msra.mxu0 0.0
        %3950 = vmatprep.subr.mxu0 0.0
        %3951 = vmatpush1.msra.mxu0 0.0
        %3952 = vmatprep.subr.mxu0 0.0
        %3953 = vmatpush1.msra.mxu0 0.0
        %3954 = vmatprep.subr.mxu0 0.0
        %3955 = vmatpush1.msra.mxu0 0.0
        %3956 = vmatprep.subr.mxu0 0.0
        %3957 = vmatpush1.msra.mxu0 0.0
        %3958 = vmatprep.subr.mxu0 0.0
        %3959 = vmatpush1.msra.mxu0 0.0
        %3960 = vmatprep.subr.mxu0 0.0
        %3961 = vmatpush1.msra.mxu0 0.0
        %3962 = vmatprep.subr.mxu0 0.0
        %3963 = vmatpush1.msra.mxu0 0.0
        %3964 = vmatprep.subr.mxu0 0.0
        %3965 = vmatpush1.msra.mxu0 0.0
        %3966 = vmatprep.subr.mxu0 0.0
        %3967 = vmatpush1.msra.mxu0 0.0
        %3968 = vmatprep.subr.mxu0 0.0
        %3969 = vmatpush1.msra.mxu0 0.0
        %3970 = vmatprep.subr.mxu0 0.0
        %3971 = vmatpush1.msra.mxu0 0.0
        %3972 = vmatprep.subr.mxu0 0.0
        %3973 = vmatpush1.msra.mxu0 0.0
        %3974 = vmatprep.subr.mxu0 0.0
        %3975 = vmatpush1.msra.mxu0 0.0
        %3976 = vmatprep.subr.mxu0 0.0
        %3977 = vmatpush1.msra.mxu0 0.0
        %3978 = vmatprep.subr.mxu0 0.0
        %3979 = vmatpush1.msra.mxu0 0.0
        %3980 = vmatprep.subr.mxu0 0.0
        %3981 = vmatpush1.msra.mxu0 0.0
        %3982 = vmatprep.subr.mxu0 0.0
        %3983 = vmatpush1.msra.mxu0 0.0
        %3984 = vmatprep.subr.mxu0 0.0
        %3985 = vmatpush1.msra.mxu0 0.0
        %3986 = vmatprep.subr.mxu0 0.0
        %3987 = vmatpush1.msra.mxu0 0.0
        %3988 = vmatprep.subr.mxu0 0.0
        %3989 = vmatpush1.msra.mxu0 0.0
        %3990 = vmatprep.subr.mxu0 0.0
        %3991 = vmatpush1.msra.mxu0 0.0
        %3992 = vmatprep.mubr.f32.mxu0 0.0
        %3993 = vmatmul.mubr.f32.gmra.mrb[0].mxu0 %v3926
        %v3994 = vpop.f32.mrb[0].mxu0
        %v3995 = vadd.f32 0.0, %v3994
        %v3996 = vpop.f32.mrb[0].mxu0
        %3997 = vdwg.mxu0
        %v3998 = vadd.f32 %v3920, %v3995
        %v3999 = vmul.f32 %v3758, %v1831
        %v4000 = vmul.f32 %v3760, %v1831
        %s4001 = scalar_lea.vmem %s4, 128
        %v4002 = vld [vmem:[%s4001] sm:$0xff]
        %v4004 = vsel %vm2738, %v4002, 0
        %4006 = vmatprep.subr.mxu0 0.0
        %4007 = vmatpush1.msra.mxu0 %v3999
        %4008 = vmatprep.subr.mxu0 0.0
        %4009 = vmatpush1.msra.mxu0 %v4000
        %4010 = vmatprep.subr.mxu0 0.0
        %4011 = vmatpush1.msra.mxu0 0.0
        %4012 = vmatprep.subr.mxu0 0.0
        %4013 = vmatpush1.msra.mxu0 0.0
        %4014 = vmatprep.subr.mxu0 0.0
        %4015 = vmatpush1.msra.mxu0 0.0
        %4016 = vmatprep.subr.mxu0 0.0
        %4017 = vmatpush1.msra.mxu0 0.0
        %4018 = vmatprep.subr.mxu0 0.0
        %4019 = vmatpush1.msra.mxu0 0.0
        %4020 = vmatprep.subr.mxu0 0.0
        %4021 = vmatpush1.msra.mxu0 0.0
        %4022 = vmatprep.subr.mxu0 0.0
        %4023 = vmatpush1.msra.mxu0 0.0
        %4024 = vmatprep.subr.mxu0 0.0
        %4025 = vmatpush1.msra.mxu0 0.0
        %4026 = vmatprep.subr.mxu0 0.0
        %4027 = vmatpush1.msra.mxu0 0.0
        %4028 = vmatprep.subr.mxu0 0.0
        %4029 = vmatpush1.msra.mxu0 0.0
        %4030 = vmatprep.subr.mxu0 0.0
        %4031 = vmatpush1.msra.mxu0 0.0
        %4032 = vmatprep.subr.mxu0 0.0
        %4033 = vmatpush1.msra.mxu0 0.0
        %4034 = vmatprep.subr.mxu0 0.0
        %4035 = vmatpush1.msra.mxu0 0.0
        %4036 = vmatprep.subr.mxu0 0.0
        %4037 = vmatpush1.msra.mxu0 0.0
        %4038 = vmatprep.subr.mxu0 0.0
        %4039 = vmatpush1.msra.mxu0 0.0
        %4040 = vmatprep.subr.mxu0 0.0
        %4041 = vmatpush1.msra.mxu0 0.0
        %4042 = vmatprep.subr.mxu0 0.0
        %4043 = vmatpush1.msra.mxu0 0.0
        %4044 = vmatprep.subr.mxu0 0.0
        %4045 = vmatpush1.msra.mxu0 0.0
        %4046 = vmatprep.subr.mxu0 0.0
        %4047 = vmatpush1.msra.mxu0 0.0
        %4048 = vmatprep.subr.mxu0 0.0
        %4049 = vmatpush1.msra.mxu0 0.0
        %4050 = vmatprep.subr.mxu0 0.0
        %4051 = vmatpush1.msra.mxu0 0.0
        %4052 = vmatprep.subr.mxu0 0.0
        %4053 = vmatpush1.msra.mxu0 0.0
        %4054 = vmatprep.subr.mxu0 0.0
        %4055 = vmatpush1.msra.mxu0 0.0
        %4056 = vmatprep.subr.mxu0 0.0
        %4057 = vmatpush1.msra.mxu0 0.0
        %4058 = vmatprep.subr.mxu0 0.0
        %4059 = vmatpush1.msra.mxu0 0.0
        %4060 = vmatprep.subr.mxu0 0.0
        %4061 = vmatpush1.msra.mxu0 0.0
        %4062 = vmatprep.subr.mxu0 0.0
        %4063 = vmatpush1.msra.mxu0 0.0
        %4064 = vmatprep.subr.mxu0 0.0
        %4065 = vmatpush1.msra.mxu0 0.0
        %4066 = vmatprep.subr.mxu0 0.0
        %4067 = vmatpush1.msra.mxu0 0.0
        %4068 = vmatprep.subr.mxu0 0.0
        %4069 = vmatpush1.msra.mxu0 0.0
        %4070 = vmatprep.mubr.f32.mxu0 0.0
        %4071 = vmatmul.mubr.f32.gmra.mrb[0].mxu0 %v4004
        %v4072 = vpop.f32.mrb[0].mxu0
        %v4073 = vadd.f32 0.0, %v4072
        %v4074 = vpop.f32.mrb[0].mxu0
        %4075 = vdwg.mxu0
        %v4076 = vadd.f32 %v3998, %v4073
        %v4077 = vmul.f32 %v3840, %v1922
        %v4078 = vmul.f32 %v3842, %v1922
        %s4079 = scalar_lea.vmem %s4, 136
        %v4080 = vld [vmem:[%s4079] sm:$0xff]
        %v4082 = vsel %vm2738, %v4080, 0
        %4084 = vmatprep.subr.mxu0 0.0
        %4085 = vmatpush1.msra.mxu0 %v4077
        %4086 = vmatprep.subr.mxu0 0.0
        %4087 = vmatpush1.msra.mxu0 %v4078
        %4088 = vmatprep.subr.mxu0 0.0
        %4089 = vmatpush1.msra.mxu0 0.0
        %4090 = vmatprep.subr.mxu0 0.0
        %4091 = vmatpush1.msra.mxu0 0.0
        %4092 = vmatprep.subr.mxu0 0.0
        %4093 = vmatpush1.msra.mxu0 0.0
        %4094 = vmatprep.subr.mxu0 0.0
        %4095 = vmatpush1.msra.mxu0 0.0
        %4096 = vmatprep.subr.mxu0 0.0
        %4097 = vmatpush1.msra.mxu0 0.0
        %4098 = vmatprep.subr.mxu0 0.0
        %4099 = vmatpush1.msra.mxu0 0.0
        %4100 = vmatprep.subr.mxu0 0.0
        %4101 = vmatpush1.msra.mxu0 0.0
        %4102 = vmatprep.subr.mxu0 0.0
        %4103 = vmatpush1.msra.mxu0 0.0
        %4104 = vmatprep.subr.mxu0 0.0
        %4105 = vmatpush1.msra.mxu0 0.0
        %4106 = vmatprep.subr.mxu0 0.0
        %4107 = vmatpush1.msra.mxu0 0.0
        %4108 = vmatprep.subr.mxu0 0.0
        %4109 = vmatpush1.msra.mxu0 0.0
        %4110 = vmatprep.subr.mxu0 0.0
        %4111 = vmatpush1.msra.mxu0 0.0
        %4112 = vmatprep.subr.mxu0 0.0
        %4113 = vmatpush1.msra.mxu0 0.0
        %4114 = vmatprep.subr.mxu0 0.0
        %4115 = vmatpush1.msra.mxu0 0.0
        %4116 = vmatprep.subr.mxu0 0.0
        %4117 = vmatpush1.msra.mxu0 0.0
        %4118 = vmatprep.subr.mxu0 0.0
        %4119 = vmatpush1.msra.mxu0 0.0
        %4120 = vmatprep.subr.mxu0 0.0
        %4121 = vmatpush1.msra.mxu0 0.0
        %4122 = vmatprep.subr.mxu0 0.0
        %4123 = vmatpush1.msra.mxu0 0.0
        %4124 = vmatprep.subr.mxu0 0.0
        %4125 = vmatpush1.msra.mxu0 0.0
        %4126 = vmatprep.subr.mxu0 0.0
        %4127 = vmatpush1.msra.mxu0 0.0
        %4128 = vmatprep.subr.mxu0 0.0
        %4129 = vmatpush1.msra.mxu0 0.0
        %4130 = vmatprep.subr.mxu0 0.0
        %4131 = vmatpush1.msra.mxu0 0.0
        %4132 = vmatprep.subr.mxu0 0.0
        %4133 = vmatpush1.msra.mxu0 0.0
        %4134 = vmatprep.subr.mxu0 0.0
        %4135 = vmatpush1.msra.mxu0 0.0
        %4136 = vmatprep.subr.mxu0 0.0
        %4137 = vmatpush1.msra.mxu0 0.0
        %4138 = vmatprep.subr.mxu0 0.0
        %4139 = vmatpush1.msra.mxu0 0.0
        %4140 = vmatprep.subr.mxu0 0.0
        %4141 = vmatpush1.msra.mxu0 0.0
        %4142 = vmatprep.subr.mxu0 0.0
        %4143 = vmatpush1.msra.mxu0 0.0
        %4144 = vmatprep.subr.mxu0 0.0
        %4145 = vmatpush1.msra.mxu0 0.0
        %4146 = vmatprep.subr.mxu0 0.0
        %4147 = vmatpush1.msra.mxu0 0.0
        %4148 = vmatprep.mubr.f32.mxu0 0.0
        %4149 = vmatmul.mubr.f32.gmra.mrb[0].mxu0 %v4082
        %v4150 = vpop.f32.mrb[0].mxu0
        %v4151 = vadd.f32 0.0, %v4150
        %v4152 = vpop.f32.mrb[0].mxu0
        %4153 = vdwg.mxu0
        %v4154 = vadd.f32 %v4076, %v4151
        %4155 = vrot.lane.b32.xlu0 %v2721, 125
        %v4156 = vpop.permute.xlu0 %4155
        %4157 = vrot.lane.b32.xlu0 %v2722, 125
        %v4158 = vpop.permute.xlu0 %4157
        %v4159 = vmul.f32 %v4156, %v2015
        %v4160 = vmul.f32 %v4158, %v2015
        %s4161 = scalar_lea.vmem %s4, 144
        %v4162 = vld [vmem:[%s4161] sm:$0xff]
        %v4164 = vsel %vm2738, %v4162, 0
        %4166 = vmatprep.subr.mxu0 0.0
        %4167 = vmatpush1.msra.mxu0 %v4159
        %4168 = vmatprep.subr.mxu0 0.0
        %4169 = vmatpush1.msra.mxu0 %v4160
        %4170 = vmatprep.subr.mxu0 0.0
        %4171 = vmatpush1.msra.mxu0 0.0
        %4172 = vmatprep.subr.mxu0 0.0
        %4173 = vmatpush1.msra.mxu0 0.0
        %4174 = vmatprep.subr.mxu0 0.0
        %4175 = vmatpush1.msra.mxu0 0.0
        %4176 = vmatprep.subr.mxu0 0.0
        %4177 = vmatpush1.msra.mxu0 0.0
        %4178 = vmatprep.subr.mxu0 0.0
        %4179 = vmatpush1.msra.mxu0 0.0
        %4180 = vmatprep.subr.mxu0 0.0
        %4181 = vmatpush1.msra.mxu0 0.0
        %4182 = vmatprep.subr.mxu0 0.0
        %4183 = vmatpush1.msra.mxu0 0.0
        %4184 = vmatprep.subr.mxu0 0.0
        %4185 = vmatpush1.msra.mxu0 0.0
        %4186 = vmatprep.subr.mxu0 0.0
        %4187 = vmatpush1.msra.mxu0 0.0
        %4188 = vmatprep.subr.mxu0 0.0
        %4189 = vmatpush1.msra.mxu0 0.0
        %4190 = vmatprep.subr.mxu0 0.0
        %4191 = vmatpush1.msra.mxu0 0.0
        %4192 = vmatprep.subr.mxu0 0.0
        %4193 = vmatpush1.msra.mxu0 0.0
        %4194 = vmatprep.subr.mxu0 0.0
        %4195 = vmatpush1.msra.mxu0 0.0
        %4196 = vmatprep.subr.mxu0 0.0
        %4197 = vmatpush1.msra.mxu0 0.0
        %4198 = vmatprep.subr.mxu0 0.0
        %4199 = vmatpush1.msra.mxu0 0.0
        %4200 = vmatprep.subr.mxu0 0.0
        %4201 = vmatpush1.msra.mxu0 0.0
        %4202 = vmatprep.subr.mxu0 0.0
        %4203 = vmatpush1.msra.mxu0 0.0
        %4204 = vmatprep.subr.mxu0 0.0
        %4205 = vmatpush1.msra.mxu0 0.0
        %4206 = vmatprep.subr.mxu0 0.0
        %4207 = vmatpush1.msra.mxu0 0.0
        %4208 = vmatprep.subr.mxu0 0.0
        %4209 = vmatpush1.msra.mxu0 0.0
        %4210 = vmatprep.subr.mxu0 0.0
        %4211 = vmatpush1.msra.mxu0 0.0
        %4212 = vmatprep.subr.mxu0 0.0
        %4213 = vmatpush1.msra.mxu0 0.0
        %4214 = vmatprep.subr.mxu0 0.0
        %4215 = vmatpush1.msra.mxu0 0.0
        %4216 = vmatprep.subr.mxu0 0.0
        %4217 = vmatpush1.msra.mxu0 0.0
        %4218 = vmatprep.subr.mxu0 0.0
        %4219 = vmatpush1.msra.mxu0 0.0
        %4220 = vmatprep.subr.mxu0 0.0
        %4221 = vmatpush1.msra.mxu0 0.0
        %4222 = vmatprep.subr.mxu0 0.0
        %4223 = vmatpush1.msra.mxu0 0.0
        %4224 = vmatprep.subr.mxu0 0.0
        %4225 = vmatpush1.msra.mxu0 0.0
        %4226 = vmatprep.subr.mxu0 0.0
        %4227 = vmatpush1.msra.mxu0 0.0
        %4228 = vmatprep.subr.mxu0 0.0
        %4229 = vmatpush1.msra.mxu0 0.0
        %4230 = vmatprep.mubr.f32.mxu0 0.0
        %4231 = vmatmul.mubr.f32.gmra.mrb[0].mxu0 %v4164
        %v4232 = vpop.f32.mrb[0].mxu0
        %v4233 = vadd.f32 0.0, %v4232
        %v4234 = vpop.f32.mrb[0].mxu0
        %4235 = vdwg.mxu0
        %v4236 = vadd.f32 %v4154, %v4233
        %4237 = vrot.lane.b32.xlu0 %v2721, 124
        %v4238 = vpop.permute.xlu0 %4237
        %4239 = vrot.lane.b32.xlu0 %v2722, 124
        %v4240 = vpop.permute.xlu0 %4239
        %v4241 = vmul.f32 %v4238, %v2108
        %v4242 = vmul.f32 %v4240, %v2108
        %s4243 = scalar_lea.vmem %s4, 152
        %v4244 = vld [vmem:[%s4243] sm:$0xff]
        %v4246 = vsel %vm2738, %v4244, 0
        %4248 = vmatprep.subr.mxu0 0.0
        %4249 = vmatpush1.msra.mxu0 %v4241
        %4250 = vmatprep.subr.mxu0 0.0
        %4251 = vmatpush1.msra.mxu0 %v4242
        %4252 = vmatprep.subr.mxu0 0.0
        %4253 = vmatpush1.msra.mxu0 0.0
        %4254 = vmatprep.subr.mxu0 0.0
        %4255 = vmatpush1.msra.mxu0 0.0
        %4256 = vmatprep.subr.mxu0 0.0
        %4257 = vmatpush1.msra.mxu0 0.0
        %4258 = vmatprep.subr.mxu0 0.0
        %4259 = vmatpush1.msra.mxu0 0.0
        %4260 = vmatprep.subr.mxu0 0.0
        %4261 = vmatpush1.msra.mxu0 0.0
        %4262 = vmatprep.subr.mxu0 0.0
        %4263 = vmatpush1.msra.mxu0 0.0
        %4264 = vmatprep.subr.mxu0 0.0
        %4265 = vmatpush1.msra.mxu0 0.0
        %4266 = vmatprep.subr.mxu0 0.0
        %4267 = vmatpush1.msra.mxu0 0.0
        %4268 = vmatprep.subr.mxu0 0.0
        %4269 = vmatpush1.msra.mxu0 0.0
        %4270 = vmatprep.subr.mxu0 0.0
        %4271 = vmatpush1.msra.mxu0 0.0
        %4272 = vmatprep.subr.mxu0 0.0
        %4273 = vmatpush1.msra.mxu0 0.0
        %4274 = vmatprep.subr.mxu0 0.0
        %4275 = vmatpush1.msra.mxu0 0.0
        %4276 = vmatprep.subr.mxu0 0.0
        %4277 = vmatpush1.msra.mxu0 0.0
        %4278 = vmatprep.subr.mxu0 0.0
        %4279 = vmatpush1.msra.mxu0 0.0
        %4280 = vmatprep.subr.mxu0 0.0
        %4281 = vmatpush1.msra.mxu0 0.0
        %4282 = vmatprep.subr.mxu0 0.0
        %4283 = vmatpush1.msra.mxu0 0.0
        %4284 = vmatprep.subr.mxu0 0.0
        %4285 = vmatpush1.msra.mxu0 0.0
        %4286 = vmatprep.subr.mxu0 0.0
        %4287 = vmatpush1.msra.mxu0 0.0
        %4288 = vmatprep.subr.mxu0 0.0
        %4289 = vmatpush1.msra.mxu0 0.0
        %4290 = vmatprep.subr.mxu0 0.0
        %4291 = vmatpush1.msra.mxu0 0.0
        %4292 = vmatprep.subr.mxu0 0.0
        %4293 = vmatpush1.msra.mxu0 0.0
        %4294 = vmatprep.subr.mxu0 0.0
        %4295 = vmatpush1.msra.mxu0 0.0
        %4296 = vmatprep.subr.mxu0 0.0
        %4297 = vmatpush1.msra.mxu0 0.0
        %4298 = vmatprep.subr.mxu0 0.0
        %4299 = vmatpush1.msra.mxu0 0.0
        %4300 = vmatprep.subr.mxu0 0.0
        %4301 = vmatpush1.msra.mxu0 0.0
        %4302 = vmatprep.subr.mxu0 0.0
        %4303 = vmatpush1.msra.mxu0 0.0
        %4304 = vmatprep.subr.mxu0 0.0
        %4305 = vmatpush1.msra.mxu0 0.0
        %4306 = vmatprep.subr.mxu0 0.0
        %4307 = vmatpush1.msra.mxu0 0.0
        %4308 = vmatprep.subr.mxu0 0.0
        %4309 = vmatpush1.msra.mxu0 0.0
        %4310 = vmatprep.subr.mxu0 0.0
        %4311 = vmatpush1.msra.mxu0 0.0
        %4312 = vmatprep.mubr.f32.mxu0 0.0
        %4313 = vmatmul.mubr.f32.gmra.mrb[0].mxu0 %v4246
        %v4314 = vpop.f32.mrb[0].mxu0
        %v4315 = vadd.f32 0.0, %v4314
        %v4316 = vpop.f32.mrb[0].mxu0
        %4317 = vdwg.mxu0
        %v4318 = vadd.f32 %v4236, %v4315
        %v4319 = vmul.f32 %v3840, %v2199
        %v4320 = vmul.f32 %v3842, %v2199
        %s4321 = scalar_lea.vmem %s4, 160
        %v4322 = vld [vmem:[%s4321] sm:$0xff]
        %v4324 = vsel %vm2738, %v4322, 0
        %4326 = vmatprep.subr.mxu0 0.0
        %4327 = vmatpush1.msra.mxu0 %v4319
        %4328 = vmatprep.subr.mxu0 0.0
        %4329 = vmatpush1.msra.mxu0 %v4320
        %4330 = vmatprep.subr.mxu0 0.0
        %4331 = vmatpush1.msra.mxu0 0.0
        %4332 = vmatprep.subr.mxu0 0.0
        %4333 = vmatpush1.msra.mxu0 0.0
        %4334 = vmatprep.subr.mxu0 0.0
        %4335 = vmatpush1.msra.mxu0 0.0
        %4336 = vmatprep.subr.mxu0 0.0
        %4337 = vmatpush1.msra.mxu0 0.0
        %4338 = vmatprep.subr.mxu0 0.0
        %4339 = vmatpush1.msra.mxu0 0.0
        %4340 = vmatprep.subr.mxu0 0.0
        %4341 = vmatpush1.msra.mxu0 0.0
        %4342 = vmatprep.subr.mxu0 0.0
        %4343 = vmatpush1.msra.mxu0 0.0
        %4344 = vmatprep.subr.mxu0 0.0
        %4345 = vmatpush1.msra.mxu0 0.0
        %4346 = vmatprep.subr.mxu0 0.0
        %4347 = vmatpush1.msra.mxu0 0.0
        %4348 = vmatprep.subr.mxu0 0.0
        %4349 = vmatpush1.msra.mxu0 0.0
        %4350 = vmatprep.subr.mxu0 0.0
        %4351 = vmatpush1.msra.mxu0 0.0
        %4352 = vmatprep.subr.mxu0 0.0
        %4353 = vmatpush1.msra.mxu0 0.0
        %4354 = vmatprep.subr.mxu0 0.0
        %4355 = vmatpush1.msra.mxu0 0.0
        %4356 = vmatprep.subr.mxu0 0.0
        %4357 = vmatpush1.msra.mxu0 0.0
        %4358 = vmatprep.subr.mxu0 0.0
        %4359 = vmatpush1.msra.mxu0 0.0
        %4360 = vmatprep.subr.mxu0 0.0
        %4361 = vmatpush1.msra.mxu0 0.0
        %4362 = vmatprep.subr.mxu0 0.0
        %4363 = vmatpush1.msra.mxu0 0.0
        %4364 = vmatprep.subr.mxu0 0.0
        %4365 = vmatpush1.msra.mxu0 0.0
        %4366 = vmatprep.subr.mxu0 0.0
        %4367 = vmatpush1.msra.mxu0 0.0
        %4368 = vmatprep.subr.mxu0 0.0
        %4369 = vmatpush1.msra.mxu0 0.0
        %4370 = vmatprep.subr.mxu0 0.0
        %4371 = vmatpush1.msra.mxu0 0.0
        %4372 = vmatprep.subr.mxu0 0.0
        %4373 = vmatpush1.msra.mxu0 0.0
        %4374 = vmatprep.subr.mxu0 0.0
        %4375 = vmatpush1.msra.mxu0 0.0
        %4376 = vmatprep.subr.mxu0 0.0
        %4377 = vmatpush1.msra.mxu0 0.0
        %4378 = vmatprep.subr.mxu0 0.0
        %4379 = vmatpush1.msra.mxu0 0.0
        %4380 = vmatprep.subr.mxu0 0.0
        %4381 = vmatpush1.msra.mxu0 0.0
        %4382 = vmatprep.subr.mxu0 0.0
        %4383 = vmatpush1.msra.mxu0 0.0
        %4384 = vmatprep.subr.mxu0 0.0
        %4385 = vmatpush1.msra.mxu0 0.0
        %4386 = vmatprep.subr.mxu0 0.0
        %4387 = vmatpush1.msra.mxu0 0.0
        %4388 = vmatprep.subr.mxu0 0.0
        %4389 = vmatpush1.msra.mxu0 0.0
        %4390 = vmatprep.mubr.f32.mxu0 0.0
        %4391 = vmatmul.mubr.f32.gmra.mrb[0].mxu0 %v4324
        %v4392 = vpop.f32.mrb[0].mxu0
        %v4393 = vadd.f32 0.0, %v4392
        %v4394 = vpop.f32.mrb[0].mxu0
        %4395 = vdwg.mxu0
        %v4396 = vadd.f32 %v4318, %v4393
        %v4397 = vmul.f32 %v4156, %v2290
        %v4398 = vmul.f32 %v4158, %v2290
        %s4399 = scalar_lea.vmem %s4, 168
        %v4400 = vld [vmem:[%s4399] sm:$0xff]
        %v4402 = vsel %vm2738, %v4400, 0
        %4404 = vmatprep.subr.mxu0 0.0
        %4405 = vmatpush1.msra.mxu0 %v4397
        %4406 = vmatprep.subr.mxu0 0.0
        %4407 = vmatpush1.msra.mxu0 %v4398
        %4408 = vmatprep.subr.mxu0 0.0
        %4409 = vmatpush1.msra.mxu0 0.0
        %4410 = vmatprep.subr.mxu0 0.0
        %4411 = vmatpush1.msra.mxu0 0.0
        %4412 = vmatprep.subr.mxu0 0.0
        %4413 = vmatpush1.msra.mxu0 0.0
        %4414 = vmatprep.subr.mxu0 0.0
        %4415 = vmatpush1.msra.mxu0 0.0
        %4416 = vmatprep.subr.mxu0 0.0
        %4417 = vmatpush1.msra.mxu0 0.0
        %4418 = vmatprep.subr.mxu0 0.0
        %4419 = vmatpush1.msra.mxu0 0.0
        %4420 = vmatprep.subr.mxu0 0.0
        %4421 = vmatpush1.msra.mxu0 0.0
        %4422 = vmatprep.subr.mxu0 0.0
        %4423 = vmatpush1.msra.mxu0 0.0
        %4424 = vmatprep.subr.mxu0 0.0
        %4425 = vmatpush1.msra.mxu0 0.0
        %4426 = vmatprep.subr.mxu0 0.0
        %4427 = vmatpush1.msra.mxu0 0.0
        %4428 = vmatprep.subr.mxu0 0.0
        %4429 = vmatpush1.msra.mxu0 0.0
        %4430 = vmatprep.subr.mxu0 0.0
        %4431 = vmatpush1.msra.mxu0 0.0
        %4432 = vmatprep.subr.mxu0 0.0
        %4433 = vmatpush1.msra.mxu0 0.0
        %4434 = vmatprep.subr.mxu0 0.0
        %4435 = vmatpush1.msra.mxu0 0.0
        %4436 = vmatprep.subr.mxu0 0.0
        %4437 = vmatpush1.msra.mxu0 0.0
        %4438 = vmatprep.subr.mxu0 0.0
        %4439 = vmatpush1.msra.mxu0 0.0
        %4440 = vmatprep.subr.mxu0 0.0
        %4441 = vmatpush1.msra.mxu0 0.0
        %4442 = vmatprep.subr.mxu0 0.0
        %4443 = vmatpush1.msra.mxu0 0.0
        %4444 = vmatprep.subr.mxu0 0.0
        %4445 = vmatpush1.msra.mxu0 0.0
        %4446 = vmatprep.subr.mxu0 0.0
        %4447 = vmatpush1.msra.mxu0 0.0
        %4448 = vmatprep.subr.mxu0 0.0
        %4449 = vmatpush1.msra.mxu0 0.0
        %4450 = vmatprep.subr.mxu0 0.0
        %4451 = vmatpush1.msra.mxu0 0.0
        %4452 = vmatprep.subr.mxu0 0.0
        %4453 = vmatpush1.msra.mxu0 0.0
        %4454 = vmatprep.subr.mxu0 0.0
        %4455 = vmatpush1.msra.mxu0 0.0
        %4456 = vmatprep.subr.mxu0 0.0
        %4457 = vmatpush1.msra.mxu0 0.0
        %4458 = vmatprep.subr.mxu0 0.0
        %4459 = vmatpush1.msra.mxu0 0.0
        %4460 = vmatprep.subr.mxu0 0.0
        %4461 = vmatpush1.msra.mxu0 0.0
        %4462 = vmatprep.subr.mxu0 0.0
        %4463 = vmatpush1.msra.mxu0 0.0
        %4464 = vmatprep.subr.mxu0 0.0
        %4465 = vmatpush1.msra.mxu0 0.0
        %4466 = vmatprep.subr.mxu0 0.0
        %4467 = vmatpush1.msra.mxu0 0.0
        %4468 = vmatprep.mubr.f32.mxu0 0.0
        %4469 = vmatmul.mubr.f32.gmra.mrb[0].mxu0 %v4402
        %v4470 = vpop.f32.mrb[0].mxu0
        %v4471 = vadd.f32 0.0, %v4470
        %v4472 = vpop.f32.mrb[0].mxu0
        %4473 = vdwg.mxu0
        %v4474 = vadd.f32 %v4396, %v4471
        %v4475 = vmul.f32 %v4238, %v2381
        %v4476 = vmul.f32 %v4240, %v2381
        %s4477 = scalar_lea.vmem %s4, 176
        %v4478 = vld [vmem:[%s4477] sm:$0xff]
        %v4480 = vsel %vm2738, %v4478, 0
        %4482 = vmatprep.subr.mxu0 0.0
        %4483 = vmatpush1.msra.mxu0 %v4475
        %4484 = vmatprep.subr.mxu0 0.0
        %4485 = vmatpush1.msra.mxu0 %v4476
        %4486 = vmatprep.subr.mxu0 0.0
        %4487 = vmatpush1.msra.mxu0 0.0
        %4488 = vmatprep.subr.mxu0 0.0
        %4489 = vmatpush1.msra.mxu0 0.0
        %4490 = vmatprep.subr.mxu0 0.0
        %4491 = vmatpush1.msra.mxu0 0.0
        %4492 = vmatprep.subr.mxu0 0.0
        %4493 = vmatpush1.msra.mxu0 0.0
        %4494 = vmatprep.subr.mxu0 0.0
        %4495 = vmatpush1.msra.mxu0 0.0
        %4496 = vmatprep.subr.mxu0 0.0
        %4497 = vmatpush1.msra.mxu0 0.0
        %4498 = vmatprep.subr.mxu0 0.0
        %4499 = vmatpush1.msra.mxu0 0.0
        %4500 = vmatprep.subr.mxu0 0.0
        %4501 = vmatpush1.msra.mxu0 0.0
        %4502 = vmatprep.subr.mxu0 0.0
        %4503 = vmatpush1.msra.mxu0 0.0
        %4504 = vmatprep.subr.mxu0 0.0
        %4505 = vmatpush1.msra.mxu0 0.0
        %4506 = vmatprep.subr.mxu0 0.0
        %4507 = vmatpush1.msra.mxu0 0.0
        %4508 = vmatprep.subr.mxu0 0.0
        %4509 = vmatpush1.msra.mxu0 0.0
        %4510 = vmatprep.subr.mxu0 0.0
        %4511 = vmatpush1.msra.mxu0 0.0
        %4512 = vmatprep.subr.mxu0 0.0
        %4513 = vmatpush1.msra.mxu0 0.0
        %4514 = vmatprep.subr.mxu0 0.0
        %4515 = vmatpush1.msra.mxu0 0.0
        %4516 = vmatprep.subr.mxu0 0.0
        %4517 = vmatpush1.msra.mxu0 0.0
        %4518 = vmatprep.subr.mxu0 0.0
        %4519 = vmatpush1.msra.mxu0 0.0
        %4520 = vmatprep.subr.mxu0 0.0
        %4521 = vmatpush1.msra.mxu0 0.0
        %4522 = vmatprep.subr.mxu0 0.0
        %4523 = vmatpush1.msra.mxu0 0.0
        %4524 = vmatprep.subr.mxu0 0.0
        %4525 = vmatpush1.msra.mxu0 0.0
        %4526 = vmatprep.subr.mxu0 0.0
        %4527 = vmatpush1.msra.mxu0 0.0
        %4528 = vmatprep.subr.mxu0 0.0
        %4529 = vmatpush1.msra.mxu0 0.0
        %4530 = vmatprep.subr.mxu0 0.0
        %4531 = vmatpush1.msra.mxu0 0.0
        %4532 = vmatprep.subr.mxu0 0.0
        %4533 = vmatpush1.msra.mxu0 0.0
        %4534 = vmatprep.subr.mxu0 0.0
        %4535 = vmatpush1.msra.mxu0 0.0
        %4536 = vmatprep.subr.mxu0 0.0
        %4537 = vmatpush1.msra.mxu0 0.0
        %4538 = vmatprep.subr.mxu0 0.0
        %4539 = vmatpush1.msra.mxu0 0.0
        %4540 = vmatprep.subr.mxu0 0.0
        %4541 = vmatpush1.msra.mxu0 0.0
        %4542 = vmatprep.subr.mxu0 0.0
        %4543 = vmatpush1.msra.mxu0 0.0
        %4544 = vmatprep.subr.mxu0 0.0
        %4545 = vmatpush1.msra.mxu0 0.0
        %4546 = vmatprep.mubr.f32.mxu0 0.0
        %4547 = vmatmul.mubr.f32.gmra.mrb[0].mxu0 %v4480
        %v4548 = vpop.f32.mrb[0].mxu0
        %v4549 = vadd.f32 0.0, %v4548
        %v4550 = vpop.f32.mrb[0].mxu0
        %4551 = vdwg.mxu0
        %v4552 = vadd.f32 %v4474, %v4549
        %4553 = vrot.lane.b32.xlu0 %v2721, 123
        %v4554 = vpop.permute.xlu0 %4553
        %4555 = vrot.lane.b32.xlu0 %v2722, 123
        %v4556 = vpop.permute.xlu0 %4555
        %v4557 = vmul.f32 %v4554, %v2474
        %v4558 = vmul.f32 %v4556, %v2474
        %s4559 = scalar_lea.vmem %s4, 184
        %v4560 = vld [vmem:[%s4559] sm:$0xff]
        %v4562 = vsel %vm2738, %v4560, 0
        %4564 = vmatprep.subr.mxu0 0.0
        %4565 = vmatpush1.msra.mxu0 %v4557
        %4566 = vmatprep.subr.mxu0 0.0
        %4567 = vmatpush1.msra.mxu0 %v4558
        %4568 = vmatprep.subr.mxu0 0.0
        %4569 = vmatpush1.msra.mxu0 0.0
        %4570 = vmatprep.subr.mxu0 0.0
        %4571 = vmatpush1.msra.mxu0 0.0
        %4572 = vmatprep.subr.mxu0 0.0
        %4573 = vmatpush1.msra.mxu0 0.0
        %4574 = vmatprep.subr.mxu0 0.0
        %4575 = vmatpush1.msra.mxu0 0.0
        %4576 = vmatprep.subr.mxu0 0.0
        %4577 = vmatpush1.msra.mxu0 0.0
        %4578 = vmatprep.subr.mxu0 0.0
        %4579 = vmatpush1.msra.mxu0 0.0
        %4580 = vmatprep.subr.mxu0 0.0
        %4581 = vmatpush1.msra.mxu0 0.0
        %4582 = vmatprep.subr.mxu0 0.0
        %4583 = vmatpush1.msra.mxu0 0.0
        %4584 = vmatprep.subr.mxu0 0.0
        %4585 = vmatpush1.msra.mxu0 0.0
        %4586 = vmatprep.subr.mxu0 0.0
        %4587 = vmatpush1.msra.mxu0 0.0
        %4588 = vmatprep.subr.mxu0 0.0
        %4589 = vmatpush1.msra.mxu0 0.0
        %4590 = vmatprep.subr.mxu0 0.0
        %4591 = vmatpush1.msra.mxu0 0.0
        %4592 = vmatprep.subr.mxu0 0.0
        %4593 = vmatpush1.msra.mxu0 0.0
        %4594 = vmatprep.subr.mxu0 0.0
        %4595 = vmatpush1.msra.mxu0 0.0
        %4596 = vmatprep.subr.mxu0 0.0
        %4597 = vmatpush1.msra.mxu0 0.0
        %4598 = vmatprep.subr.mxu0 0.0
        %4599 = vmatpush1.msra.mxu0 0.0
        %4600 = vmatprep.subr.mxu0 0.0
        %4601 = vmatpush1.msra.mxu0 0.0
        %4602 = vmatprep.subr.mxu0 0.0
        %4603 = vmatpush1.msra.mxu0 0.0
        %4604 = vmatprep.subr.mxu0 0.0
        %4605 = vmatpush1.msra.mxu0 0.0
        %4606 = vmatprep.subr.mxu0 0.0
        %4607 = vmatpush1.msra.mxu0 0.0
        %4608 = vmatprep.subr.mxu0 0.0
        %4609 = vmatpush1.msra.mxu0 0.0
        %4610 = vmatprep.subr.mxu0 0.0
        %4611 = vmatpush1.msra.mxu0 0.0
        %4612 = vmatprep.subr.mxu0 0.0
        %4613 = vmatpush1.msra.mxu0 0.0
        %4614 = vmatprep.subr.mxu0 0.0
        %4615 = vmatpush1.msra.mxu0 0.0
        %4616 = vmatprep.subr.mxu0 0.0
        %4617 = vmatpush1.msra.mxu0 0.0
        %4618 = vmatprep.subr.mxu0 0.0
        %4619 = vmatpush1.msra.mxu0 0.0
        %4620 = vmatprep.subr.mxu0 0.0
        %4621 = vmatpush1.msra.mxu0 0.0
        %4622 = vmatprep.subr.mxu0 0.0
        %4623 = vmatpush1.msra.mxu0 0.0
        %4624 = vmatprep.subr.mxu0 0.0
        %4625 = vmatpush1.msra.mxu0 0.0
        %4626 = vmatprep.subr.mxu0 0.0
        %4627 = vmatpush1.msra.mxu0 0.0
        %4628 = vmatprep.mubr.f32.mxu0 0.0
        %4629 = vmatmul.mubr.f32.gmra.mrb[0].mxu0 %v4562
        %v4630 = vpop.f32.mrb[0].mxu0
        %v4631 = vadd.f32 0.0, %v4630
        %v4632 = vpop.f32.mrb[0].mxu0
        %4633 = vdwg.mxu0
        %v4634 = vadd.f32 %v4552, %v4631
        %4635 = vrot.lane.b32.xlu0 %v2721, 122
        %v4636 = vpop.permute.xlu0 %4635
        %4637 = vrot.lane.b32.xlu0 %v2722, 122
        %v4638 = vpop.permute.xlu0 %4637
        %v4639 = vmul.f32 %v4636, %v2567
        %v4640 = vmul.f32 %v4638, %v2567
        %s4641 = scalar_lea.vmem %s4, 192
        %v4642 = vld [vmem:[%s4641] sm:$0xff]
        %v4644 = vsel %vm2738, %v4642, 0
        %4646 = vmatprep.subr.mxu0 0.0
        %4647 = vmatpush1.msra.mxu0 %v4639
        %4648 = vmatprep.subr.mxu0 0.0
        %4649 = vmatpush1.msra.mxu0 %v4640
        %4650 = vmatprep.subr.mxu0 0.0
        %4651 = vmatpush1.msra.mxu0 0.0
        %4652 = vmatprep.subr.mxu0 0.0
        %4653 = vmatpush1.msra.mxu0 0.0
        %4654 = vmatprep.subr.mxu0 0.0
        %4655 = vmatpush1.msra.mxu0 0.0
        %4656 = vmatprep.subr.mxu0 0.0
        %4657 = vmatpush1.msra.mxu0 0.0
        %4658 = vmatprep.subr.mxu0 0.0
        %4659 = vmatpush1.msra.mxu0 0.0
        %4660 = vmatprep.subr.mxu0 0.0
        %4661 = vmatpush1.msra.mxu0 0.0
        %4662 = vmatprep.subr.mxu0 0.0
        %4663 = vmatpush1.msra.mxu0 0.0
        %4664 = vmatprep.subr.mxu0 0.0
        %4665 = vmatpush1.msra.mxu0 0.0
        %4666 = vmatprep.subr.mxu0 0.0
        %4667 = vmatpush1.msra.mxu0 0.0
        %4668 = vmatprep.subr.mxu0 0.0
        %4669 = vmatpush1.msra.mxu0 0.0
        %4670 = vmatprep.subr.mxu0 0.0
        %4671 = vmatpush1.msra.mxu0 0.0
        %4672 = vmatprep.subr.mxu0 0.0
        %4673 = vmatpush1.msra.mxu0 0.0
        %4674 = vmatprep.subr.mxu0 0.0
        %4675 = vmatpush1.msra.mxu0 0.0
        %4676 = vmatprep.subr.mxu0 0.0
        %4677 = vmatpush1.msra.mxu0 0.0
        %4678 = vmatprep.subr.mxu0 0.0
        %4679 = vmatpush1.msra.mxu0 0.0
        %4680 = vmatprep.subr.mxu0 0.0
        %4681 = vmatpush1.msra.mxu0 0.0
        %4682 = vmatprep.subr.mxu0 0.0
        %4683 = vmatpush1.msra.mxu0 0.0
        %4684 = vmatprep.subr.mxu0 0.0
        %4685 = vmatpush1.msra.mxu0 0.0
        %4686 = vmatprep.subr.mxu0 0.0
        %4687 = vmatpush1.msra.mxu0 0.0
        %4688 = vmatprep.subr.mxu0 0.0
        %4689 = vmatpush1.msra.mxu0 0.0
        %4690 = vmatprep.subr.mxu0 0.0
        %4691 = vmatpush1.msra.mxu0 0.0
        %4692 = vmatprep.subr.mxu0 0.0
        %4693 = vmatpush1.msra.mxu0 0.0
        %4694 = vmatprep.subr.mxu0 0.0
        %4695 = vmatpush1.msra.mxu0 0.0
        %4696 = vmatprep.subr.mxu0 0.0
        %4697 = vmatpush1.msra.mxu0 0.0
        %4698 = vmatprep.subr.mxu0 0.0
        %4699 = vmatpush1.msra.mxu0 0.0
        %4700 = vmatprep.subr.mxu0 0.0
        %4701 = vmatpush1.msra.mxu0 0.0
        %4702 = vmatprep.subr.mxu0 0.0
        %4703 = vmatpush1.msra.mxu0 0.0
        %4704 = vmatprep.subr.mxu0 0.0
        %4705 = vmatpush1.msra.mxu0 0.0
        %4706 = vmatprep.subr.mxu0 0.0
        %4707 = vmatpush1.msra.mxu0 0.0
        %4708 = vmatprep.subr.mxu0 0.0
        %4709 = vmatpush1.msra.mxu0 0.0
        %4710 = vmatprep.mubr.f32.mxu0 0.0
        %4711 = vmatmul.mubr.f32.gmra.mrb[0].mxu0 %v4644
        %v4712 = vpop.f32.mrb[0].mxu0
        %v4713 = vadd.f32 0.0, %v4712
        %v4714 = vpop.f32.mrb[0].mxu0
        %4715 = vdwg.mxu0
        %v4716 = vadd.f32 %v4634, %v4713
        %v4717 = vld [vmem:[%s5] sm:$0xff]
        %4719 = vset.pattern.permute.xlu0 0
        %4720 = vperm.xlu0 %4719, %v4717
        %v4721 = vpop.permute.xlu0 %4720
        %v4723 = vadd.f32 %v4716, %v4721
        %4724 = vst [vmem:[%s242] sm:$0xff] %v4723
        %s4725 = sand.u32 %s159, 1
        %s4726 = scalar_lea.sflag [#allocation3], %s4725
        %s4727 = sand.u32 %s159, 1
        %s4728 = smul.addr %s4727, 8
        %s4729 = scalar_lea.vmem [#allocation2], %s4728
        // Predicated region
        $region45: #{tpu_custom_call.1} parent=43 // pred_check
          %p4730 = pneg %p169
        $region46: #{tpu_custom_call.1} parent=43 // pred_check_branch
          %4732 = sbr.rel (%p4730) target = $region48
        $region47: #{tpu_custom_call.1} parent=43 // pred_region
          %s4734 = ssub.s32 128, 128
          %4735 = vsyncadd %s4726, %s4734
          %s4736 = smul.addr %s20, 128
          %s4737 = scalar_lea.hbm %s6, %s4736
          %s4739 = sshll.u32 %s4729, 4
          %s4740 = int_to_ptr.vmem [resolvable:$true] %s4739
          %4742 = dma.vmem_to_hbm [thread:$0]  %s4740, 128, %s4737, %s4726
        $region48: #{tpu_custom_call.1} parent=43 // pred_fallthru
          _
      $region44: #{tpu_custom_call.1} parent=5 // pred_fallthru
        _
      %p4743 = scmp.le.s32.totalorder 2, %s15
      // Predicated region
      $region49: #{tpu_custom_call.1} parent=5 // pred_check
        %p4744 = pneg %p4743
      $region50: #{tpu_custom_call.1} parent=5 // pred_check_branch
        %4746 = sbr.rel (%p4744) target = $region52
      $region51: #{tpu_custom_call.1} parent=5 // pred_region
        %s4747 = ssub.s32 %s15, 2
        // Predicated region
        $region53: #{tpu_custom_call.1} parent=51 // pred_check
          %p4748 = pneg %p175
        $region54: #{tpu_custom_call.1} parent=51 // pred_check_branch
          %4750 = sbr.rel (%p4748) target = $region56
        $region55: #{tpu_custom_call.1} parent=51 // pred_region
          %s4751 = sand.u32 %s160, 1
          %s4752 = scalar_lea.sflag [#allocation3], %s4751
          %s4753 = sand.u32 %s160, 1
          %s4754 = smul.addr %s4753, 8
          %s4755 = scalar_lea.vmem [#allocation2], %s4754
          %4756 = dma.done %s4752, 128
        $region56: #{tpu_custom_call.1} parent=51 // pred_fallthru
          _
      $region52: #{tpu_custom_call.1} parent=5 // pred_fallthru
        _
    $region6: #{tpu_custom_call.1} parent=1 // loop_footer
      %s19 = sadd.s32 1, %s15
    $region7: #{tpu_custom_call.1} parent=1 // loop_footer_branch
      %14 = sbr.rel target = $region3
    $region8: #{tpu_custom_call.1} parent=1 // loop_exit
      _
    %4757 = vsyncpa [#allocation3], 1
    %s4758 = scalar_lea.sflag [#allocation3], 1
    %4759 = vsyncpa %s4758, 1

</llo_original>
